<compile_context>
chip_gen: v6e
topology: v6e:2x2x1
jax: 0.10.0
libtpu: 0.0.40
codegen_flags: <defaults>
</compile_context>

<pallas_src>
from functools import partial

import jax
import jax.numpy as jnp
from jax import lax
from jax.experimental import pallas as pl
from jax.experimental.pallas import tpu as pltpu


def _round_up(x, m):
    return ((x + m - 1) // m) * m


# ---------------------------------------------------------------------------
# Fused kernel: downsample conv + (GN+SiLU -> conv1 -> GN -> conv2 -> +skip)*L
# ---------------------------------------------------------------------------

def _fused_downblock_kernel(*refs, num_layers, Ho, Wo, C, eps, use_bf16):
    """Processes ONE batch element entirely in VMEM.

    refs = (patch_ref, wd_ref, bd_ref,
            [g1, be1, w1, b1, g2, be2, w2, b2] * num_layers,
            o_ref, pad_ref)

      patch_ref : (1, Ho*Wo, Kdp)  im2col patches of the stride-2 down conv
      wd_ref    : (Kdp, C)         down-conv weight, rows = (tap-major, cin-minor)
      bd_ref    : (1, C)
      g*, be*   : (1, C)           GroupNorm gamma/beta (groups == C -> per-channel)
      w1/w2     : (9*C, C)         3x3 conv weights; rows [t*C:(t+1)*C] hold the
                                   (Cin, Cout) matrix of tap t = kh*3 + kw
      b1/b2     : (1, C)
      o_ref     : (1, Ho*Wo, C)    output block (only HBM write of the kernel)
      pad_ref   : (P_ROWS, C)      VMEM scratch: flattened (Ho+2, Wo+2, C) padded
                                   activation (circular W pad, zero H pad)
    """
    patch_ref, wd_ref, bd_ref = refs[0], refs[1], refs[2]
    layer_refs = refs[3:3 + 8 * num_layers]
    o_ref = refs[3 + 8 * num_layers]
    pad_ref = refs[4 + 8 * num_layers]

    HW = Ho * Wo
    Wp = Wo + 2                 # padded row width
    EXT = Ho * Wp               # rows of the "extended" conv-output domain

    def mm(a, w):
        # Optionally feed the MXU bf16 operands (v6e/v7x); accumulate in f32.
        if use_bf16:
            a = a.astype(jnp.bfloat16)
            w = w.astype(jnp.bfloat16)
        return jnp.dot(a, w, preferred_element_type=jnp.float32)

    def scatter_padded(src, row_stride):
        # Write activation rows into the padded buffer with circular W padding.
        # src rows for spatial row y start at y*row_stride (compact: Wo, extended: Wp).
        # Only rows Wp .. (Ho+1)*Wp - 1 are written, so the zero H-pad rows persist.
        for y in range(Ho):
            dst = (y + 1) * Wp
            s = y * row_stride
            pad_ref[dst + 1:dst + 1 + Wo, :] = src[s:s + Wo, :]
            pad_ref[dst:dst + 1, :] = src[s + Wo - 1:s + Wo, :]        # left pad = col Wo-1
            pad_ref[dst + Wo + 1:dst + Wo + 2, :] = src[s:s + 1, :]    # right pad = col 0

    def conv3x3(w_ref, b_ref):
        # 9 shifted MXU dots over the flattened padded buffer -> (EXT, C).
        # Extended row r = y*Wp + x; columns x >= Wo are junk and never used.
        acc = None
        for kh in range(3):
            for kw in range(3):
                t = kh * 3 + kw
                off = kh * Wp + kw
                tap = mm(pad_ref[off:off + EXT, :], w_ref[t * C:(t + 1) * C, :])
                acc = tap if acc is None else acc + tap
        return acc + b_ref[...]

    # Zero the padded buffer once per grid step; the H-pad zero rows and the
    # tail rows are never overwritten by the scatters.
    pad_ref[...] = jnp.zeros_like(pad_ref)

    # ---- Downsample: Conv2d(Cin, C, 3, stride=2, padding=1) as one matmul ----
    x = mm(patch_ref[0], wd_ref[...]) + bd_ref[...]          # (HW, C); residual input

    for l in range(num_layers):
        g1, be1, w1, b1, g2, be2, w2, b2 = layer_refs[8 * l:8 * (l + 1)]

        # -- in_layers: GroupNorm(32, 32) (group size 1 -> per-channel) + SiLU --
        mean1 = jnp.mean(x, axis=0, keepdims=True)                        # (1, C)
        var1 = jnp.mean((x - mean1) * (x - mean1), axis=0, keepdims=True)
        h = (x - mean1) * lax.rsqrt(var1 + eps) * g1[...] + be1[...]
        h = h * jax.nn.sigmoid(h)                                         # SiLU

        # -- PeriodicConv2d #1 --
        scatter_padded(h, Wo)
        e1 = conv3x3(w1, b1)                                              # (EXT, C)

        # -- out_layers: GroupNorm -> Identity (scale_shift=False) -> Dropout(0) --
        # Two-pass stats over the Wo valid columns of each extended row group.
        ssum = None
        for y in range(Ho):
            blk = e1[y * Wp:y * Wp + Wo, :]
            ssum = blk if ssum is None else ssum + blk                    # (Wo, C)
        mean2 = jnp.sum(ssum, axis=0, keepdims=True) * (1.0 / HW)         # (1, C)
        svar = None
        for y in range(Ho):
            d = e1[y * Wp:y * Wp + Wo, :] - mean2
            d = d * d
            svar = d if svar is None else svar + d
        var2 = jnp.sum(svar, axis=0, keepdims=True) * (1.0 / HW)
        h2 = (e1 - mean2) * lax.rsqrt(var2 + eps) * g2[...] + be2[...]

        # -- PeriodicConv2d #2, residual add fused into the epilogue --
        scatter_padded(h2, Wp)
        e2 = conv3x3(w2, b2)                                              # (EXT, C)
        for y in range(Ho):
            o_ref[0, y * Wo:(y + 1) * Wo, :] = (
                x[y * Wo:(y + 1) * Wo, :] + e2[y * Wp:y * Wp + Wo, :])

        if l + 1 < num_layers:
            x = o_ref[0, :, :]          # next layer's residual input (stays in VMEM)


# ---------------------------------------------------------------------------
# Parameter preparation (hoisted out of the per-forward path)
# ---------------------------------------------------------------------------

def init_params(key, in_channels, out_channels, num_layers=1):
    """Random params in torch layout (Conv2d weight = (Cout, Cin, kh, kw))."""
    ks = jax.random.split(key, 4 + 8 * num_layers)
    ki = iter(range(len(ks)))
    nrm = lambda shape, s=0.1: s * jax.random.normal(ks[next(ki)], shape, jnp.float32)
    params = {
        "down_w": nrm((out_channels, in_channels, 3, 3)),
        "down_b": nrm((out_channels,)),
        "resnets": [],
    }
    for _ in range(num_layers):
        params["resnets"].append({
            "gn1_g": 1.0 + nrm((out_channels,)),
            "gn1_b": nrm((out_channels,)),
            "conv1_w": nrm((out_channels, out_channels, 3, 3)),
            "conv1_b": nrm((out_channels,)),
            "gn2_g": 1.0 + nrm((out_channels,)),
            "gn2_b": nrm((out_channels,)),
            "conv2_w": nrm((out_channels, out_channels, 3, 3)),
            "conv2_b": nrm((out_channels,)),
        })
    return params


def prepare_params(params):
    """One-time conversion of torch-layout params into matmul-ready layouts."""
    C, Cin = params["down_w"].shape[0], params["down_w"].shape[1]
    Kd = 9 * Cin
    Kdp = _round_up(Kd, 8)                      # pad contraction dim to a sublane multiple
    wd = jnp.transpose(params["down_w"], (2, 3, 1, 0)).reshape(Kd, C)
    wd = jnp.pad(wd, ((0, Kdp - Kd), (0, 0))).astype(jnp.float32)
    prepped = {
        "wd": wd,
        "bd": params["down_b"].reshape(1, C).astype(jnp.float32),
        "resnets": [],
    }
    for blk in params["resnets"]:
        prepped["resnets"].append({
            "g1": blk["gn1_g"].reshape(1, C).astype(jnp.float32),
            "be1": blk["gn1_b"].reshape(1, C).astype(jnp.float32),
            "w1": jnp.transpose(blk["conv1_w"], (2, 3, 1, 0)).reshape(9 * C, C).astype(jnp.float32),
            "b1": blk["conv1_b"].reshape(1, C).astype(jnp.float32),
            "g2": blk["gn2_g"].reshape(1, C).astype(jnp.float32),
            "be2": blk["gn2_b"].reshape(1, C).astype(jnp.float32),
            "w2": jnp.transpose(blk["conv2_w"], (2, 3, 1, 0)).reshape(9 * C, C).astype(jnp.float32),
            "b2": blk["conv2_b"].reshape(1, C).astype(jnp.float32),
        })
    return prepped


# ---------------------------------------------------------------------------
# DownBlock2D forward (public API: NCHW in / NCHW out)
# ---------------------------------------------------------------------------

def downblock2d_forward(x_nchw, p, *, use_bf16_mxu=False):
    """x_nchw: (N, Cin, H, W) f32 -> (N, C, H//2, W//2).  p = prepare_params(...)."""
    N, Cin, H, W = x_nchw.shape
    Kdp, C = p["wd"].shape
    Ho, Wo = H // 2, W // 2
    HW = Ho * Wo
    num_layers = len(p["resnets"])
    # The module uses GroupNorm(num_groups=32, num_channels=C); the fused kernel
    # implements the instantiated case num_groups == C (group size 1).
    assert C == 32, "fused kernel implements GroupNorm with num_groups == num_channels"
    assert H % 2 == 0 and W % 2 == 0

    x = jnp.transpose(x_nchw, (0, 2, 3, 1)).astype(jnp.float32)           # NHWC
    # Input-side im2col for the stride-2, zero-padded downsample conv.  This is
    # prep of the tiny network *input* (Cin=4, ~9 KB/sample), not inter-stage
    # activation traffic; everything downstream stays in VMEM inside the kernel.
    xp = jnp.pad(x, ((0, 0), (1, 1), (1, 1), (0, 0)))
    taps = [xp[:, i:i + 2 * Ho - 1:2, j:j + 2 * Wo - 1:2, :]
            for i in range(3) for j in range(3)]
    patches = jnp.stack(taps, axis=3).reshape(N, HW, 9 * Cin)
    if Kdp != 9 * Cin:
        patches = jnp.pad(patches, ((0, 0), (0, 0), (0, Kdp - 9 * Cin)))

    Wp = Wo + 2
    p_rows = _round_up((Ho + 2) * Wp + 2, 8)    # flattened padded buffer (+ read slack)

    layer_args, layer_specs = [], []
    for blk in p["resnets"]:
        for name in ("g1", "be1", "w1", "b1", "g2", "be2", "w2", "b2"):
            arr = blk[name]
            layer_args.append(arr)
            layer_specs.append(pl.BlockSpec(arr.shape, lambda n: (0, 0)))

    kernel = partial(_fused_downblock_kernel, num_layers=num_layers,
                     Ho=Ho, Wo=Wo, C=C, eps=1e-6, use_bf16=use_bf16_mxu)

    out = pl.pallas_call(
        kernel,
        out_shape=jax.ShapeDtypeStruct((N, HW, C), jnp.float32),
        grid=(N,),
        in_specs=[pl.BlockSpec((1, HW, Kdp), lambda n: (n, 0, 0)),
                  pl.BlockSpec((Kdp, C), lambda n: (0, 0)),
                  pl.BlockSpec((1, C), lambda n: (0, 0))] + layer_specs,
        out_specs=pl.BlockSpec((1, HW, C), lambda n: (n, 0, 0)),
        scratch_shapes=[pltpu.VMEM((p_rows, C), jnp.float32)],
        compiler_params=pltpu.CompilerParams(
            dimension_semantics=("parallel",)),    # batch across v7x's 2 TensorCores
    )(patches, p["wd"], p["bd"], *layer_args)

    # Only this final ~8 KB/sample result touched HBM; convert to the public NCHW layout.
    return jnp.transpose(out.reshape(N, Ho, Wo, C), (0, 3, 1, 2))


# ---------------------------------------------------------------------------
# Pure-JAX reference (mirrors the PyTorch module op-for-op) for validation
# ---------------------------------------------------------------------------

def reference_forward(x_nchw, params):
    hi = lax.Precision.HIGHEST

    def conv(x, w, b, stride, periodic):
        if periodic:   # PeriodicConv2d: circular W pad, zero H pad
            x = jnp.pad(x, ((0, 0), (0, 0), (0, 0), (1, 1)), mode="wrap")
            x = jnp.pad(x, ((0, 0), (0, 0), (1, 1), (0, 0)))
            pad = "VALID"
        else:
            pad = ((1, 1), (1, 1))
        y = lax.conv_general_dilated(
            x, w, (stride, stride), pad,
            dimension_numbers=("NCHW", "OIHW", "NCHW"), precision=hi)
        return y + b.reshape(1, -1, 1, 1)

    def gn(x, g, b, eps=1e-6):   # GroupNorm(32, 32): group size 1 -> per channel
        m = jnp.mean(x, axis=(2, 3), keepdims=True)
        v = jnp.mean((x - m) ** 2, axis=(2, 3), keepdims=True)
        return (x - m) * lax.rsqrt(v + eps) * g.reshape(1, -1, 1, 1) + b.reshape(1, -1, 1, 1)

    x = conv(x_nchw.astype(jnp.float32), params["down_w"], params["down_b"], 2, False)
    for blk in params["resnets"]:
        h = gn(x, blk["gn1_g"], blk["gn1_b"])
        h = h * jax.nn.sigmoid(h)
        h = conv(h, blk["conv1_w"], blk["conv1_b"], 1, True)
        h = gn(h, blk["gn2_g"], blk["gn2_b"])
        h = conv(h, blk["conv2_w"], blk["conv2_b"], 1, True)
        x = x + h
    return x


if __name__ == "__main__":
    key = jax.random.PRNGKey(0)
    k_x, k_p = jax.random.split(key)

    N, Cin, H, W = 2, 4, 16, 16
    Cout = 32            # GroupNorm(num_groups=32, num_channels=32)
    num_layers = 1

    x = jax.random.normal(k_x, (N, Cin, H, W), jnp.float32)
    params = init_params(k_p, Cin, Cout, num_layers)
    prepped = prepare_params(params)          # weight relayout hoisted out of the forward

    fwd = jax.jit(downblock2d_forward)
    out = fwd(x, prepped)
    jax.block_until_ready(out)

    assert out.shape == (N, Cout, H // 2, W // 2), out.shape
    assert bool(jnp.all(jnp.isfinite(out)))

    ref = reference_forward(x, params)
    max_err = float(jnp.max(jnp.abs(out - ref)))
    assert max_err < 5e-2, f"mismatch vs pure-JAX reference: {max_err}"

    print("KERNEL_OK")
</pallas_src>

<mosaic_0001>
module attributes {stable_mosaic.version = 11 : i64} {
  func.func @_fused_downblock_kernel(%arg0: i32, %arg1: memref<1x64x40xf32, #tpu.memory_space<vmem>>, %arg2: memref<40x32xf32, #tpu.memory_space<vmem>>, %arg3: memref<1x32xf32, #tpu.memory_space<vmem>>, %arg4: memref<1x32xf32, #tpu.memory_space<vmem>>, %arg5: memref<1x32xf32, #tpu.memory_space<vmem>>, %arg6: memref<288x32xf32, #tpu.memory_space<vmem>>, %arg7: memref<1x32xf32, #tpu.memory_space<vmem>>, %arg8: memref<1x32xf32, #tpu.memory_space<vmem>>, %arg9: memref<1x32xf32, #tpu.memory_space<vmem>>, %arg10: memref<288x32xf32, #tpu.memory_space<vmem>>, %arg11: memref<1x32xf32, #tpu.memory_space<vmem>>, %arg12: memref<1x64x32xf32, #tpu.memory_space<vmem>>, %arg13: memref<104x32xf32, #tpu.memory_space<vmem>>) attributes {dimension_semantics = [#tpu.dimension_semantics<parallel>], iteration_bounds = array<i64: 2>, scalar_prefetch = 0 : i64, scratch_operands = 1 : i64, tpu.core_type = #tpu.core_type<tc>, window_params = [{transform_indices = @transform_0, window_bounds = array<i64: 1, 64, 40>}, {pipeline_mode = #tpu.pipeline_mode<synchronous>, transform_indices = @transform_1, window_bounds = array<i64: 40, 32>}, {pipeline_mode = #tpu.pipeline_mode<synchronous>, transform_indices = @transform_2, window_bounds = array<i64: 1, 32>}, {pipeline_mode = #tpu.pipeline_mode<synchronous>, transform_indices = @transform_3, window_bounds = array<i64: 1, 32>}, {pipeline_mode = #tpu.pipeline_mode<synchronous>, transform_indices = @transform_4, window_bounds = array<i64: 1, 32>}, {pipeline_mode = #tpu.pipeline_mode<synchronous>, transform_indices = @transform_5, window_bounds = array<i64: 288, 32>}, {pipeline_mode = #tpu.pipeline_mode<synchronous>, transform_indices = @transform_6, window_bounds = array<i64: 1, 32>}, {pipeline_mode = #tpu.pipeline_mode<synchronous>, transform_indices = @transform_7, window_bounds = array<i64: 1, 32>}, {pipeline_mode = #tpu.pipeline_mode<synchronous>, transform_indices = @transform_8, window_bounds = array<i64: 1, 32>}, {pipeline_mode = #tpu.pipeline_mode<synchronous>, transform_indices = @transform_9, window_bounds = array<i64: 288, 32>}, {pipeline_mode = #tpu.pipeline_mode<synchronous>, transform_indices = @transform_10, window_bounds = array<i64: 1, 32>}, {transform_indices = @transform_11, window_bounds = array<i64: 1, 64, 32>}]} {
    %cst = arith.constant 0.000000e+00 : f32
    %0 = vector.broadcast %cst : f32 to vector<104x32xf32>
    %c0 = arith.constant 0 : index
    %c0_0 = arith.constant 0 : index
    %1 = vector.load %arg13[%c0, %c0_0] : memref<104x32xf32, #tpu.memory_space<vmem>>, vector<104x32xf32>
    tpu.vector_store %arg13[%c0, %c0_0], %0 {strides = array<i32>} : memref<104x32xf32, #tpu.memory_space<vmem>>, vector<104x32xf32>,
    %c0_1 = arith.constant 0 : index
    %c0_2 = arith.constant 0 : index
    %c0_3 = arith.constant 0 : index
    %2 = vector.load %arg1[%c0_1, %c0_2, %c0_3] : memref<1x64x40xf32, #tpu.memory_space<vmem>>, vector<1x64x40xf32>
    %3 = vector.shape_cast %2 : vector<1x64x40xf32> to vector<64x40xf32>
    %c0_4 = arith.constant 0 : index
    %c0_5 = arith.constant 0 : index
    %4 = vector.load %arg2[%c0_4, %c0_5] : memref<40x32xf32, #tpu.memory_space<vmem>>, vector<40x32xf32>
    %cst_6 = arith.constant dense<0.000000e+00> : vector<64x32xf32>
    %5 = tpu.matmul %3, %4, %cst_6 {dimension_numbers = #tpu.dot_dimension_numbers<[1], [0], [0], [1], [0, 0, 1, 1], [], []>} : vector<64x40xf32>, vector<40x32xf32>, vector<64x32xf32> -> vector<64x32xf32>
    %c0_7 = arith.constant 0 : index
    %c0_8 = arith.constant 0 : index
    %6 = vector.load %arg3[%c0_7, %c0_8] : memref<1x32xf32, #tpu.memory_space<vmem>>, vector<1x32xf32>
    %7 = vector.broadcast %6 : vector<1x32xf32> to vector<64x32xf32>
    %8 = arith.addf %5, %7 : vector<64x32xf32>
    %cst_9 = arith.constant dense<0.000000e+00> : vector<32xf32>
    %9 = vector.multi_reduction <add>, %8, %cst_9 [0] : vector<64x32xf32> to vector<32xf32>
    %10 = vector.shape_cast %9 : vector<32xf32> to vector<1x32xf32>
    %cst_10 = arith.constant 6.400000e+01 : f32
    %11 = vector.broadcast %cst_10 : f32 to vector<1x32xf32>
    %12 = arith.divf %10, %11 : vector<1x32xf32>
    %13 = vector.broadcast %12 : vector<1x32xf32> to vector<64x32xf32>
    %14 = arith.subf %8, %13 : vector<64x32xf32>
    %15 = vector.broadcast %12 : vector<1x32xf32> to vector<64x32xf32>
    %16 = arith.subf %8, %15 : vector<64x32xf32>
    %17 = arith.mulf %14, %16 : vector<64x32xf32>
    %cst_11 = arith.constant dense<0.000000e+00> : vector<32xf32>
    %18 = vector.multi_reduction <add>, %17, %cst_11 [0] : vector<64x32xf32> to vector<32xf32>
    %19 = vector.shape_cast %18 : vector<32xf32> to vector<1x32xf32>
    %cst_12 = arith.constant 6.400000e+01 : f32
    %20 = vector.broadcast %cst_12 : f32 to vector<1x32xf32>
    %21 = arith.divf %19, %20 : vector<1x32xf32>
    %22 = vector.broadcast %12 : vector<1x32xf32> to vector<64x32xf32>
    %23 = arith.subf %8, %22 : vector<64x32xf32>
    %cst_13 = arith.constant 9.99999997E-7 : f32
    %24 = vector.broadcast %cst_13 : f32 to vector<1x32xf32>
    %25 = arith.addf %21, %24 : vector<1x32xf32>
    %26 = math.rsqrt %25 : vector<1x32xf32>
    %27 = vector.broadcast %26 : vector<1x32xf32> to vector<64x32xf32>
    %28 = arith.mulf %23, %27 : vector<64x32xf32>
    %c0_14 = arith.constant 0 : index
    %c0_15 = arith.constant 0 : index
    %29 = vector.load %arg4[%c0_14, %c0_15] : memref<1x32xf32, #tpu.memory_space<vmem>>, vector<1x32xf32>
    %30 = vector.broadcast %29 : vector<1x32xf32> to vector<64x32xf32>
    %31 = arith.mulf %28, %30 : vector<64x32xf32>
    %c0_16 = arith.constant 0 : index
    %c0_17 = arith.constant 0 : index
    %32 = vector.load %arg5[%c0_16, %c0_17] : memref<1x32xf32, #tpu.memory_space<vmem>>, vector<1x32xf32>
    %33 = vector.broadcast %32 : vector<1x32xf32> to vector<64x32xf32>
    %34 = arith.addf %31, %33 : vector<64x32xf32>
    %35 = arith.negf %34 : vector<64x32xf32>
    %36 = math.exp %35 : vector<64x32xf32>
    %cst_18 = arith.constant 1.000000e+00 : f32
    %37 = vector.broadcast %cst_18 : f32 to vector<64x32xf32>
    %38 = arith.addf %37, %36 : vector<64x32xf32>
    %39 = arith.divf %37, %38 : vector<64x32xf32>
    %40 = arith.mulf %34, %39 : vector<64x32xf32>
    %41 = vector.extract_strided_slice %40 {offsets = [0, 0], sizes = [8, 32], strides = [1, 1]} : vector<64x32xf32> to vector<8x32xf32>
    %c11 = arith.constant 11 : index
    %c0_19 = arith.constant 0 : index
    %42 = vector.load %arg13[%c11, %c0_19] : memref<104x32xf32, #tpu.memory_space<vmem>>, vector<8x32xf32>
    tpu.vector_store %arg13[%c11, %c0_19], %41 {strides = array<i32>} : memref<104x32xf32, #tpu.memory_space<vmem>>, vector<8x32xf32>,
    %43 = vector.extract_strided_slice %40 {offsets = [7, 0], sizes = [1, 32], strides = [1, 1]} : vector<64x32xf32> to vector<1x32xf32>
    %c10 = arith.constant 10 : index
    %c0_20 = arith.constant 0 : index
    %44 = vector.load %arg13[%c10, %c0_20] : memref<104x32xf32, #tpu.memory_space<vmem>>, vector<1x32xf32>
    tpu.vector_store %arg13[%c10, %c0_20], %43 {strides = array<i32>} : memref<104x32xf32, #tpu.memory_space<vmem>>, vector<1x32xf32>,
    %45 = vector.extract_strided_slice %40 {offsets = [0, 0], sizes = [1, 32], strides = [1, 1]} : vector<64x32xf32> to vector<1x32xf32>
    %c19 = arith.constant 19 : index
    %c0_21 = arith.constant 0 : index
    %46 = vector.load %arg13[%c19, %c0_21] : memref<104x32xf32, #tpu.memory_space<vmem>>, vector<1x32xf32>
    tpu.vector_store %arg13[%c19, %c0_21], %45 {strides = array<i32>} : memref<104x32xf32, #tpu.memory_space<vmem>>, vector<1x32xf32>,
    %47 = vector.extract_strided_slice %40 {offsets = [8, 0], sizes = [8, 32], strides = [1, 1]} : vector<64x32xf32> to vector<8x32xf32>
    %c21 = arith.constant 21 : index
    %c0_22 = arith.constant 0 : index
    %48 = vector.load %arg13[%c21, %c0_22] : memref<104x32xf32, #tpu.memory_space<vmem>>, vector<8x32xf32>
    tpu.vector_store %arg13[%c21, %c0_22], %47 {strides = array<i32>} : memref<104x32xf32, #tpu.memory_space<vmem>>, vector<8x32xf32>,
    %49 = vector.extract_strided_slice %40 {offsets = [15, 0], sizes = [1, 32], strides = [1, 1]} : vector<64x32xf32> to vector<1x32xf32>
    %c20 = arith.constant 20 : index
    %c0_23 = arith.constant 0 : index
    %50 = vector.load %arg13[%c20, %c0_23] : memref<104x32xf32, #tpu.memory_space<vmem>>, vector<1x32xf32>
    tpu.vector_store %arg13[%c20, %c0_23], %49 {strides = array<i32>} : memref<104x32xf32, #tpu.memory_space<vmem>>, vector<1x32xf32>,
    %51 = vector.extract_strided_slice %40 {offsets = [8, 0], sizes = [1, 32], strides = [1, 1]} : vector<64x32xf32> to vector<1x32xf32>
    %c29 = arith.constant 29 : index
    %c0_24 = arith.constant 0 : index
    %52 = vector.load %arg13[%c29, %c0_24] : memref<104x32xf32, #tpu.memory_space<vmem>>, vector<1x32xf32>
    tpu.vector_store %arg13[%c29, %c0_24], %51 {strides = array<i32>} : memref<104x32xf32, #tpu.memory_space<vmem>>, vector<1x32xf32>,
    %53 = vector.extract_strided_slice %40 {offsets = [16, 0], sizes = [8, 32], strides = [1, 1]} : vector<64x32xf32> to vector<8x32xf32>
    %c31 = arith.constant 31 : index
    %c0_25 = arith.constant 0 : index
    %54 = vector.load %arg13[%c31, %c0_25] : memref<104x32xf32, #tpu.memory_space<vmem>>, vector<8x32xf32>
    tpu.vector_store %arg13[%c31, %c0_25], %53 {strides = array<i32>} : memref<104x32xf32, #tpu.memory_space<vmem>>, vector<8x32xf32>,
    %55 = vector.extract_strided_slice %40 {offsets = [23, 0], sizes = [1, 32], strides = [1, 1]} : vector<64x32xf32> to vector<1x32xf32>
    %c30 = arith.constant 30 : index
    %c0_26 = arith.constant 0 : index
    %56 = vector.load %arg13[%c30, %c0_26] : memref<104x32xf32, #tpu.memory_space<vmem>>, vector<1x32xf32>
    tpu.vector_store %arg13[%c30, %c0_26], %55 {strides = array<i32>} : memref<104x32xf32, #tpu.memory_space<vmem>>, vector<1x32xf32>,
    %57 = vector.extract_strided_slice %40 {offsets = [16, 0], sizes = [1, 32], strides = [1, 1]} : vector<64x32xf32> to vector<1x32xf32>
    %c39 = arith.constant 39 : index
    %c0_27 = arith.constant 0 : index
    %58 = vector.load %arg13[%c39, %c0_27] : memref<104x32xf32, #tpu.memory_space<vmem>>, vector<1x32xf32>
    tpu.vector_store %arg13[%c39, %c0_27], %57 {strides = array<i32>} : memref<104x32xf32, #tpu.memory_space<vmem>>, vector<1x32xf32>,
    %59 = vector.extract_strided_slice %40 {offsets = [24, 0], sizes = [8, 32], strides = [1, 1]} : vector<64x32xf32> to vector<8x32xf32>
    %c41 = arith.constant 41 : index
    %c0_28 = arith.constant 0 : index
    %60 = vector.load %arg13[%c41, %c0_28] : memref<104x32xf32, #tpu.memory_space<vmem>>, vector<8x32xf32>
    tpu.vector_store %arg13[%c41, %c0_28], %59 {strides = array<i32>} : memref<104x32xf32, #tpu.memory_space<vmem>>, vector<8x32xf32>,
    %61 = vector.extract_strided_slice %40 {offsets = [31, 0], sizes = [1, 32], strides = [1, 1]} : vector<64x32xf32> to vector<1x32xf32>
    %c40 = arith.constant 40 : index
    %c0_29 = arith.constant 0 : index
    %62 = vector.load %arg13[%c40, %c0_29] : memref<104x32xf32, #tpu.memory_space<vmem>>, vector<1x32xf32>
    tpu.vector_store %arg13[%c40, %c0_29], %61 {strides = array<i32>} : memref<104x32xf32, #tpu.memory_space<vmem>>, vector<1x32xf32>,
    %63 = vector.extract_strided_slice %40 {offsets = [24, 0], sizes = [1, 32], strides = [1, 1]} : vector<64x32xf32> to vector<1x32xf32>
    %c49 = arith.constant 49 : index
    %c0_30 = arith.constant 0 : index
    %64 = vector.load %arg13[%c49, %c0_30] : memref<104x32xf32, #tpu.memory_space<vmem>>, vector<1x32xf32>
    tpu.vector_store %arg13[%c49, %c0_30], %63 {strides = array<i32>} : memref<104x32xf32, #tpu.memory_space<vmem>>, vector<1x32xf32>,
    %65 = vector.extract_strided_slice %40 {offsets = [32, 0], sizes = [8, 32], strides = [1, 1]} : vector<64x32xf32> to vector<8x32xf32>
    %c51 = arith.constant 51 : index
    %c0_31 = arith.constant 0 : index
    %66 = vector.load %arg13[%c51, %c0_31] : memref<104x32xf32, #tpu.memory_space<vmem>>, vector<8x32xf32>
    tpu.vector_store %arg13[%c51, %c0_31], %65 {strides = array<i32>} : memref<104x32xf32, #tpu.memory_space<vmem>>, vector<8x32xf32>,
    %67 = vector.extract_strided_slice %40 {offsets = [39, 0], sizes = [1, 32], strides = [1, 1]} : vector<64x32xf32> to vector<1x32xf32>
    %c50 = arith.constant 50 : index
    %c0_32 = arith.constant 0 : index
    %68 = vector.load %arg13[%c50, %c0_32] : memref<104x32xf32, #tpu.memory_space<vmem>>, vector<1x32xf32>
    tpu.vector_store %arg13[%c50, %c0_32], %67 {strides = array<i32>} : memref<104x32xf32, #tpu.memory_space<vmem>>, vector<1x32xf32>,
    %69 = vector.extract_strided_slice %40 {offsets = [32, 0], sizes = [1, 32], strides = [1, 1]} : vector<64x32xf32> to vector<1x32xf32>
    %c59 = arith.constant 59 : index
    %c0_33 = arith.constant 0 : index
    %70 = vector.load %arg13[%c59, %c0_33] : memref<104x32xf32, #tpu.memory_space<vmem>>, vector<1x32xf32>
    tpu.vector_store %arg13[%c59, %c0_33], %69 {strides = array<i32>} : memref<104x32xf32, #tpu.memory_space<vmem>>, vector<1x32xf32>,
    %71 = vector.extract_strided_slice %40 {offsets = [40, 0], sizes = [8, 32], strides = [1, 1]} : vector<64x32xf32> to vector<8x32xf32>
    %c61 = arith.constant 61 : index
    %c0_34 = arith.constant 0 : index
    %72 = vector.load %arg13[%c61, %c0_34] : memref<104x32xf32, #tpu.memory_space<vmem>>, vector<8x32xf32>
    tpu.vector_store %arg13[%c61, %c0_34], %71 {strides = array<i32>} : memref<104x32xf32, #tpu.memory_space<vmem>>, vector<8x32xf32>,
    %73 = vector.extract_strided_slice %40 {offsets = [47, 0], sizes = [1, 32], strides = [1, 1]} : vector<64x32xf32> to vector<1x32xf32>
    %c60 = arith.constant 60 : index
    %c0_35 = arith.constant 0 : index
    %74 = vector.load %arg13[%c60, %c0_35] : memref<104x32xf32, #tpu.memory_space<vmem>>, vector<1x32xf32>
    tpu.vector_store %arg13[%c60, %c0_35], %73 {strides = array<i32>} : memref<104x32xf32, #tpu.memory_space<vmem>>, vector<1x32xf32>,
    %75 = vector.extract_strided_slice %40 {offsets = [40, 0], sizes = [1, 32], strides = [1, 1]} : vector<64x32xf32> to vector<1x32xf32>
    %c69 = arith.constant 69 : index
    %c0_36 = arith.constant 0 : index
    %76 = vector.load %arg13[%c69, %c0_36] : memref<104x32xf32, #tpu.memory_space<vmem>>, vector<1x32xf32>
    tpu.vector_store %arg13[%c69, %c0_36], %75 {strides = array<i32>} : memref<104x32xf32, #tpu.memory_space<vmem>>, vector<1x32xf32>,
    %77 = vector.extract_strided_slice %40 {offsets = [48, 0], sizes = [8, 32], strides = [1, 1]} : vector<64x32xf32> to vector<8x32xf32>
    %c71 = arith.constant 71 : index
    %c0_37 = arith.constant 0 : index
    %78 = vector.load %arg13[%c71, %c0_37] : memref<104x32xf32, #tpu.memory_space<vmem>>, vector<8x32xf32>
    tpu.vector_store %arg13[%c71, %c0_37], %77 {strides = array<i32>} : memref<104x32xf32, #tpu.memory_space<vmem>>, vector<8x32xf32>,
    %79 = vector.extract_strided_slice %40 {offsets = [55, 0], sizes = [1, 32], strides = [1, 1]} : vector<64x32xf32> to vector<1x32xf32>
    %c70 = arith.constant 70 : index
    %c0_38 = arith.constant 0 : index
    %80 = vector.load %arg13[%c70, %c0_38] : memref<104x32xf32, #tpu.memory_space<vmem>>, vector<1x32xf32>
    tpu.vector_store %arg13[%c70, %c0_38], %79 {strides = array<i32>} : memref<104x32xf32, #tpu.memory_space<vmem>>, vector<1x32xf32>,
    %81 = vector.extract_strided_slice %40 {offsets = [48, 0], sizes = [1, 32], strides = [1, 1]} : vector<64x32xf32> to vector<1x32xf32>
    %c79 = arith.constant 79 : index
    %c0_39 = arith.constant 0 : index
    %82 = vector.load %arg13[%c79, %c0_39] : memref<104x32xf32, #tpu.memory_space<vmem>>, vector<1x32xf32>
    tpu.vector_store %arg13[%c79, %c0_39], %81 {strides = array<i32>} : memref<104x32xf32, #tpu.memory_space<vmem>>, vector<1x32xf32>,
    %83 = vector.extract_strided_slice %40 {offsets = [56, 0], sizes = [8, 32], strides = [1, 1]} : vector<64x32xf32> to vector<8x32xf32>
    %c81 = arith.constant 81 : index
    %c0_40 = arith.constant 0 : index
    %84 = vector.load %arg13[%c81, %c0_40] : memref<104x32xf32, #tpu.memory_space<vmem>>, vector<8x32xf32>
    tpu.vector_store %arg13[%c81, %c0_40], %83 {strides = array<i32>} : memref<104x32xf32, #tpu.memory_space<vmem>>, vector<8x32xf32>,
    %85 = vector.extract_strided_slice %40 {offsets = [63, 0], sizes = [1, 32], strides = [1, 1]} : vector<64x32xf32> to vector<1x32xf32>
    %c80 = arith.constant 80 : index
    %c0_41 = arith.constant 0 : index
    %86 = vector.load %arg13[%c80, %c0_41] : memref<104x32xf32, #tpu.memory_space<vmem>>, vector<1x32xf32>
    tpu.vector_store %arg13[%c80, %c0_41], %85 {strides = array<i32>} : memref<104x32xf32, #tpu.memory_space<vmem>>, vector<1x32xf32>,
    %87 = vector.extract_strided_slice %40 {offsets = [56, 0], sizes = [1, 32], strides = [1, 1]} : vector<64x32xf32> to vector<1x32xf32>
    %c89 = arith.constant 89 : index
    %c0_42 = arith.constant 0 : index
    %88 = vector.load %arg13[%c89, %c0_42] : memref<104x32xf32, #tpu.memory_space<vmem>>, vector<1x32xf32>
    tpu.vector_store %arg13[%c89, %c0_42], %87 {strides = array<i32>} : memref<104x32xf32, #tpu.memory_space<vmem>>, vector<1x32xf32>,
    %c0_43 = arith.constant 0 : index
    %c0_44 = arith.constant 0 : index
    %89 = vector.load %arg13[%c0_43, %c0_44] : memref<104x32xf32, #tpu.memory_space<vmem>>, vector<80x32xf32>
    %c0_45 = arith.constant 0 : index
    %c0_46 = arith.constant 0 : index
    %90 = vector.load %arg6[%c0_45, %c0_46] : memref<288x32xf32, #tpu.memory_space<vmem>>, vector<32x32xf32>
    %cst_47 = arith.constant dense<0.000000e+00> : vector<80x32xf32>
    %91 = tpu.matmul %89, %90, %cst_47 {dimension_numbers = #tpu.dot_dimension_numbers<[1], [0], [0], [1], [0, 0, 1, 1], [], []>} : vector<80x32xf32>, vector<32x32xf32>, vector<80x32xf32> -> vector<80x32xf32>
    %c1 = arith.constant 1 : index
    %c0_48 = arith.constant 0 : index
    %92 = vector.load %arg13[%c1, %c0_48] : memref<104x32xf32, #tpu.memory_space<vmem>>, vector<80x32xf32>
    %c32 = arith.constant 32 : index
    %c0_49 = arith.constant 0 : index
    %93 = vector.load %arg6[%c32, %c0_49] : memref<288x32xf32, #tpu.memory_space<vmem>>, vector<32x32xf32>
    %cst_50 = arith.constant dense<0.000000e+00> : vector<80x32xf32>
    %94 = tpu.matmul %92, %93, %cst_50 {dimension_numbers = #tpu.dot_dimension_numbers<[1], [0], [0], [1], [0, 0, 1, 1], [], []>} : vector<80x32xf32>, vector<32x32xf32>, vector<80x32xf32> -> vector<80x32xf32>
    %95 = arith.addf %91, %94 : vector<80x32xf32>
    %c2 = arith.constant 2 : index
    %c0_51 = arith.constant 0 : index
    %96 = vector.load %arg13[%c2, %c0_51] : memref<104x32xf32, #tpu.memory_space<vmem>>, vector<80x32xf32>
    %c64 = arith.constant 64 : index
    %c0_52 = arith.constant 0 : index
    %97 = vector.load %arg6[%c64, %c0_52] : memref<288x32xf32, #tpu.memory_space<vmem>>, vector<32x32xf32>
    %cst_53 = arith.constant dense<0.000000e+00> : vector<80x32xf32>
    %98 = tpu.matmul %96, %97, %cst_53 {dimension_numbers = #tpu.dot_dimension_numbers<[1], [0], [0], [1], [0, 0, 1, 1], [], []>} : vector<80x32xf32>, vector<32x32xf32>, vector<80x32xf32> -> vector<80x32xf32>
    %99 = arith.addf %95, %98 : vector<80x32xf32>
    %c10_54 = arith.constant 10 : index
    %c0_55 = arith.constant 0 : index
    %100 = vector.load %arg13[%c10_54, %c0_55] : memref<104x32xf32, #tpu.memory_space<vmem>>, vector<80x32xf32>
    %c96 = arith.constant 96 : index
    %c0_56 = arith.constant 0 : index
    %101 = vector.load %arg6[%c96, %c0_56] : memref<288x32xf32, #tpu.memory_space<vmem>>, vector<32x32xf32>
    %cst_57 = arith.constant dense<0.000000e+00> : vector<80x32xf32>
    %102 = tpu.matmul %100, %101, %cst_57 {dimension_numbers = #tpu.dot_dimension_numbers<[1], [0], [0], [1], [0, 0, 1, 1], [], []>} : vector<80x32xf32>, vector<32x32xf32>, vector<80x32xf32> -> vector<80x32xf32>
    %103 = arith.addf %99, %102 : vector<80x32xf32>
    %c11_58 = arith.constant 11 : index
    %c0_59 = arith.constant 0 : index
    %104 = vector.load %arg13[%c11_58, %c0_59] : memref<104x32xf32, #tpu.memory_space<vmem>>, vector<80x32xf32>
    %c128 = arith.constant 128 : index
    %c0_60 = arith.constant 0 : index
    %105 = vector.load %arg6[%c128, %c0_60] : memref<288x32xf32, #tpu.memory_space<vmem>>, vector<32x32xf32>
    %cst_61 = arith.constant dense<0.000000e+00> : vector<80x32xf32>
    %106 = tpu.matmul %104, %105, %cst_61 {dimension_numbers = #tpu.dot_dimension_numbers<[1], [0], [0], [1], [0, 0, 1, 1], [], []>} : vector<80x32xf32>, vector<32x32xf32>, vector<80x32xf32> -> vector<80x32xf32>
    %107 = arith.addf %103, %106 : vector<80x32xf32>
    %c12 = arith.constant 12 : index
    %c0_62 = arith.constant 0 : index
    %108 = vector.load %arg13[%c12, %c0_62] : memref<104x32xf32, #tpu.memory_space<vmem>>, vector<80x32xf32>
    %c160 = arith.constant 160 : index
    %c0_63 = arith.constant 0 : index
    %109 = vector.load %arg6[%c160, %c0_63] : memref<288x32xf32, #tpu.memory_space<vmem>>, vector<32x32xf32>
    %cst_64 = arith.constant dense<0.000000e+00> : vector<80x32xf32>
    %110 = tpu.matmul %108, %109, %cst_64 {dimension_numbers = #tpu.dot_dimension_numbers<[1], [0], [0], [1], [0, 0, 1, 1], [], []>} : vector<80x32xf32>, vector<32x32xf32>, vector<80x32xf32> -> vector<80x32xf32>
    %111 = arith.addf %107, %110 : vector<80x32xf32>
    %c20_65 = arith.constant 20 : index
    %c0_66 = arith.constant 0 : index
    %112 = vector.load %arg13[%c20_65, %c0_66] : memref<104x32xf32, #tpu.memory_space<vmem>>, vector<80x32xf32>
    %c192 = arith.constant 192 : index
    %c0_67 = arith.constant 0 : index
    %113 = vector.load %arg6[%c192, %c0_67] : memref<288x32xf32, #tpu.memory_space<vmem>>, vector<32x32xf32>
    %cst_68 = arith.constant dense<0.000000e+00> : vector<80x32xf32>
    %114 = tpu.matmul %112, %113, %cst_68 {dimension_numbers = #tpu.dot_dimension_numbers<[1], [0], [0], [1], [0, 0, 1, 1], [], []>} : vector<80x32xf32>, vector<32x32xf32>, vector<80x32xf32> -> vector<80x32xf32>
    %115 = arith.addf %111, %114 : vector<80x32xf32>
    %c21_69 = arith.constant 21 : index
    %c0_70 = arith.constant 0 : index
    %116 = vector.load %arg13[%c21_69, %c0_70] : memref<104x32xf32, #tpu.memory_space<vmem>>, vector<80x32xf32>
    %c224 = arith.constant 224 : index
    %c0_71 = arith.constant 0 : index
    %117 = vector.load %arg6[%c224, %c0_71] : memref<288x32xf32, #tpu.memory_space<vmem>>, vector<32x32xf32>
    %cst_72 = arith.constant dense<0.000000e+00> : vector<80x32xf32>
    %118 = tpu.matmul %116, %117, %cst_72 {dimension_numbers = #tpu.dot_dimension_numbers<[1], [0], [0], [1], [0, 0, 1, 1], [], []>} : vector<80x32xf32>, vector<32x32xf32>, vector<80x32xf32> -> vector<80x32xf32>
    %119 = arith.addf %115, %118 : vector<80x32xf32>
    %c22 = arith.constant 22 : index
    %c0_73 = arith.constant 0 : index
    %120 = vector.load %arg13[%c22, %c0_73] : memref<104x32xf32, #tpu.memory_space<vmem>>, vector<80x32xf32>
    %c256 = arith.constant 256 : index
    %c0_74 = arith.constant 0 : index
    %121 = vector.load %arg6[%c256, %c0_74] : memref<288x32xf32, #tpu.memory_space<vmem>>, vector<32x32xf32>
    %cst_75 = arith.constant dense<0.000000e+00> : vector<80x32xf32>
    %122 = tpu.matmul %120, %121, %cst_75 {dimension_numbers = #tpu.dot_dimension_numbers<[1], [0], [0], [1], [0, 0, 1, 1], [], []>} : vector<80x32xf32>, vector<32x32xf32>, vector<80x32xf32> -> vector<80x32xf32>
    %123 = arith.addf %119, %122 : vector<80x32xf32>
    %c0_76 = arith.constant 0 : index
    %c0_77 = arith.constant 0 : index
    %124 = vector.load %arg7[%c0_76, %c0_77] : memref<1x32xf32, #tpu.memory_space<vmem>>, vector<1x32xf32>
    %125 = vector.broadcast %124 : vector<1x32xf32> to vector<80x32xf32>
    %126 = arith.addf %123, %125 : vector<80x32xf32>
    %127 = vector.extract_strided_slice %126 {offsets = [0, 0], sizes = [8, 32], strides = [1, 1]} : vector<80x32xf32> to vector<8x32xf32>
    %128 = vector.extract_strided_slice %126 {offsets = [10, 0], sizes = [8, 32], strides = [1, 1]} : vector<80x32xf32> to vector<8x32xf32>
    %129 = arith.addf %127, %128 : vector<8x32xf32>
    %130 = vector.extract_strided_slice %126 {offsets = [20, 0], sizes = [8, 32], strides = [1, 1]} : vector<80x32xf32> to vector<8x32xf32>
    %131 = arith.addf %129, %130 : vector<8x32xf32>
    %132 = vector.extract_strided_slice %126 {offsets = [30, 0], sizes = [8, 32], strides = [1, 1]} : vector<80x32xf32> to vector<8x32xf32>
    %133 = arith.addf %131, %132 : vector<8x32xf32>
    %134 = vector.extract_strided_slice %126 {offsets = [40, 0], sizes = [8, 32], strides = [1, 1]} : vector<80x32xf32> to vector<8x32xf32>
    %135 = arith.addf %133, %134 : vector<8x32xf32>
    %136 = vector.extract_strided_slice %126 {offsets = [50, 0], sizes = [8, 32], strides = [1, 1]} : vector<80x32xf32> to vector<8x32xf32>
    %137 = arith.addf %135, %136 : vector<8x32xf32>
    %138 = vector.extract_strided_slice %126 {offsets = [60, 0], sizes = [8, 32], strides = [1, 1]} : vector<80x32xf32> to vector<8x32xf32>
    %139 = arith.addf %137, %138 : vector<8x32xf32>
    %140 = vector.extract_strided_slice %126 {offsets = [70, 0], sizes = [8, 32], strides = [1, 1]} : vector<80x32xf32> to vector<8x32xf32>
    %141 = arith.addf %139, %140 : vector<8x32xf32>
    %cst_78 = arith.constant dense<0.000000e+00> : vector<32xf32>
    %142 = vector.multi_reduction <add>, %141, %cst_78 [0] : vector<8x32xf32> to vector<32xf32>
    %143 = vector.shape_cast %142 : vector<32xf32> to vector<1x32xf32>
    %cst_79 = arith.constant 1.562500e-02 : f32
    %144 = vector.broadcast %cst_79 : f32 to vector<1x32xf32>
    %145 = arith.mulf %143, %144 : vector<1x32xf32>
    %146 = vector.extract_strided_slice %126 {offsets = [0, 0], sizes = [8, 32], strides = [1, 1]} : vector<80x32xf32> to vector<8x32xf32>
    %147 = vector.broadcast %145 : vector<1x32xf32> to vector<8x32xf32>
    %148 = arith.subf %146, %147 : vector<8x32xf32>
    %149 = arith.mulf %148, %148 : vector<8x32xf32>
    %150 = vector.extract_strided_slice %126 {offsets = [10, 0], sizes = [8, 32], strides = [1, 1]} : vector<80x32xf32> to vector<8x32xf32>
    %151 = vector.broadcast %145 : vector<1x32xf32> to vector<8x32xf32>
    %152 = arith.subf %150, %151 : vector<8x32xf32>
    %153 = arith.mulf %152, %152 : vector<8x32xf32>
    %154 = arith.addf %149, %153 : vector<8x32xf32>
    %155 = vector.extract_strided_slice %126 {offsets = [20, 0], sizes = [8, 32], strides = [1, 1]} : vector<80x32xf32> to vector<8x32xf32>
    %156 = vector.broadcast %145 : vector<1x32xf32> to vector<8x32xf32>
    %157 = arith.subf %155, %156 : vector<8x32xf32>
    %158 = arith.mulf %157, %157 : vector<8x32xf32>
    %159 = arith.addf %154, %158 : vector<8x32xf32>
    %160 = vector.extract_strided_slice %126 {offsets = [30, 0], sizes = [8, 32], strides = [1, 1]} : vector<80x32xf32> to vector<8x32xf32>
    %161 = vector.broadcast %145 : vector<1x32xf32> to vector<8x32xf32>
    %162 = arith.subf %160, %161 : vector<8x32xf32>
    %163 = arith.mulf %162, %162 : vector<8x32xf32>
    %164 = arith.addf %159, %163 : vector<8x32xf32>
    %165 = vector.extract_strided_slice %126 {offsets = [40, 0], sizes = [8, 32], strides = [1, 1]} : vector<80x32xf32> to vector<8x32xf32>
    %166 = vector.broadcast %145 : vector<1x32xf32> to vector<8x32xf32>
    %167 = arith.subf %165, %166 : vector<8x32xf32>
    %168 = arith.mulf %167, %167 : vector<8x32xf32>
    %169 = arith.addf %164, %168 : vector<8x32xf32>
    %170 = vector.extract_strided_slice %126 {offsets = [50, 0], sizes = [8, 32], strides = [1, 1]} : vector<80x32xf32> to vector<8x32xf32>
    %171 = vector.broadcast %145 : vector<1x32xf32> to vector<8x32xf32>
    %172 = arith.subf %170, %171 : vector<8x32xf32>
    %173 = arith.mulf %172, %172 : vector<8x32xf32>
    %174 = arith.addf %169, %173 : vector<8x32xf32>
    %175 = vector.extract_strided_slice %126 {offsets = [60, 0], sizes = [8, 32], strides = [1, 1]} : vector<80x32xf32> to vector<8x32xf32>
    %176 = vector.broadcast %145 : vector<1x32xf32> to vector<8x32xf32>
    %177 = arith.subf %175, %176 : vector<8x32xf32>
    %178 = arith.mulf %177, %177 : vector<8x32xf32>
    %179 = arith.addf %174, %178 : vector<8x32xf32>
    %180 = vector.extract_strided_slice %126 {offsets = [70, 0], sizes = [8, 32], strides = [1, 1]} : vector<80x32xf32> to vector<8x32xf32>
    %181 = vector.broadcast %145 : vector<1x32xf32> to vector<8x32xf32>
    %182 = arith.subf %180, %181 : vector<8x32xf32>
    %183 = arith.mulf %182, %182 : vector<8x32xf32>
    %184 = arith.addf %179, %183 : vector<8x32xf32>
    %cst_80 = arith.constant dense<0.000000e+00> : vector<32xf32>
    %185 = vector.multi_reduction <add>, %184, %cst_80 [0] : vector<8x32xf32> to vector<32xf32>
    %186 = vector.shape_cast %185 : vector<32xf32> to vector<1x32xf32>
    %cst_81 = arith.constant 1.562500e-02 : f32
    %187 = vector.broadcast %cst_81 : f32 to vector<1x32xf32>
    %188 = arith.mulf %186, %187 : vector<1x32xf32>
    %189 = vector.broadcast %145 : vector<1x32xf32> to vector<80x32xf32>
    %190 = arith.subf %126, %189 : vector<80x32xf32>
    %cst_82 = arith.constant 9.99999997E-7 : f32
    %191 = vector.broadcast %cst_82 : f32 to vector<1x32xf32>
    %192 = arith.addf %188, %191 : vector<1x32xf32>
    %193 = math.rsqrt %192 : vector<1x32xf32>
    %194 = vector.broadcast %193 : vector<1x32xf32> to vector<80x32xf32>
    %195 = arith.mulf %190, %194 : vector<80x32xf32>
    %c0_83 = arith.constant 0 : index
    %c0_84 = arith.constant 0 : index
    %196 = vector.load %arg8[%c0_83, %c0_84] : memref<1x32xf32, #tpu.memory_space<vmem>>, vector<1x32xf32>
    %197 = vector.broadcast %196 : vector<1x32xf32> to vector<80x32xf32>
    %198 = arith.mulf %195, %197 : vector<80x32xf32>
    %c0_85 = arith.constant 0 : index
    %c0_86 = arith.constant 0 : index
    %199 = vector.load %arg9[%c0_85, %c0_86] : memref<1x32xf32, #tpu.memory_space<vmem>>, vector<1x32xf32>
    %200 = vector.broadcast %199 : vector<1x32xf32> to vector<80x32xf32>
    %201 = arith.addf %198, %200 : vector<80x32xf32>
    %202 = vector.extract_strided_slice %201 {offsets = [0, 0], sizes = [8, 32], strides = [1, 1]} : vector<80x32xf32> to vector<8x32xf32>
    %c11_87 = arith.constant 11 : index
    %c0_88 = arith.constant 0 : index
    %203 = vector.load %arg13[%c11_87, %c0_88] : memref<104x32xf32, #tpu.memory_space<vmem>>, vector<8x32xf32>
    tpu.vector_store %arg13[%c11_87, %c0_88], %202 {strides = array<i32>} : memref<104x32xf32, #tpu.memory_space<vmem>>, vector<8x32xf32>,
    %204 = vector.extract_strided_slice %201 {offsets = [7, 0], sizes = [1, 32], strides = [1, 1]} : vector<80x32xf32> to vector<1x32xf32>
    %c10_89 = arith.constant 10 : index
    %c0_90 = arith.constant 0 : index
    %205 = vector.load %arg13[%c10_89, %c0_90] : memref<104x32xf32, #tpu.memory_space<vmem>>, vector<1x32xf32>
    tpu.vector_store %arg13[%c10_89, %c0_90], %204 {strides = array<i32>} : memref<104x32xf32, #tpu.memory_space<vmem>>, vector<1x32xf32>,
    %206 = vector.extract_strided_slice %201 {offsets = [0, 0], sizes = [1, 32], strides = [1, 1]} : vector<80x32xf32> to vector<1x32xf32>
    %c19_91 = arith.constant 19 : index
    %c0_92 = arith.constant 0 : index
    %207 = vector.load %arg13[%c19_91, %c0_92] : memref<104x32xf32, #tpu.memory_space<vmem>>, vector<1x32xf32>
    tpu.vector_store %arg13[%c19_91, %c0_92], %206 {strides = array<i32>} : memref<104x32xf32, #tpu.memory_space<vmem>>, vector<1x32xf32>,
    %208 = vector.extract_strided_slice %201 {offsets = [10, 0], sizes = [8, 32], strides = [1, 1]} : vector<80x32xf32> to vector<8x32xf32>
    %c21_93 = arith.constant 21 : index
    %c0_94 = arith.constant 0 : index
    %209 = vector.load %arg13[%c21_93, %c0_94] : memref<104x32xf32, #tpu.memory_space<vmem>>, vector<8x32xf32>
    tpu.vector_store %arg13[%c21_93, %c0_94], %208 {strides = array<i32>} : memref<104x32xf32, #tpu.memory_space<vmem>>, vector<8x32xf32>,
    %210 = vector.extract_strided_slice %201 {offsets = [17, 0], sizes = [1, 32], strides = [1, 1]} : vector<80x32xf32> to vector<1x32xf32>
    %c20_95 = arith.constant 20 : index
    %c0_96 = arith.constant 0 : index
    %211 = vector.load %arg13[%c20_95, %c0_96] : memref<104x32xf32, #tpu.memory_space<vmem>>, vector<1x32xf32>
    tpu.vector_store %arg13[%c20_95, %c0_96], %210 {strides = array<i32>} : memref<104x32xf32, #tpu.memory_space<vmem>>, vector<1x32xf32>,
    %212 = vector.extract_strided_slice %201 {offsets = [10, 0], sizes = [1, 32], strides = [1, 1]} : vector<80x32xf32> to vector<1x32xf32>
    %c29_97 = arith.constant 29 : index
    %c0_98 = arith.constant 0 : index
    %213 = vector.load %arg13[%c29_97, %c0_98] : memref<104x32xf32, #tpu.memory_space<vmem>>, vector<1x32xf32>
    tpu.vector_store %arg13[%c29_97, %c0_98], %212 {strides = array<i32>} : memref<104x32xf32, #tpu.memory_space<vmem>>, vector<1x32xf32>,
    %214 = vector.extract_strided_slice %201 {offsets = [20, 0], sizes = [8, 32], strides = [1, 1]} : vector<80x32xf32> to vector<8x32xf32>
    %c31_99 = arith.constant 31 : index
    %c0_100 = arith.constant 0 : index
    %215 = vector.load %arg13[%c31_99, %c0_100] : memref<104x32xf32, #tpu.memory_space<vmem>>, vector<8x32xf32>
    tpu.vector_store %arg13[%c31_99, %c0_100], %214 {strides = array<i32>} : memref<104x32xf32, #tpu.memory_space<vmem>>, vector<8x32xf32>,
    %216 = vector.extract_strided_slice %201 {offsets = [27, 0], sizes = [1, 32], strides = [1, 1]} : vector<80x32xf32> to vector<1x32xf32>
    %c30_101 = arith.constant 30 : index
    %c0_102 = arith.constant 0 : index
    %217 = vector.load %arg13[%c30_101, %c0_102] : memref<104x32xf32, #tpu.memory_space<vmem>>, vector<1x32xf32>
    tpu.vector_store %arg13[%c30_101, %c0_102], %216 {strides = array<i32>} : memref<104x32xf32, #tpu.memory_space<vmem>>, vector<1x32xf32>,
    %218 = vector.extract_strided_slice %201 {offsets = [20, 0], sizes = [1, 32], strides = [1, 1]} : vector<80x32xf32> to vector<1x32xf32>
    %c39_103 = arith.constant 39 : index
    %c0_104 = arith.constant 0 : index
    %219 = vector.load %arg13[%c39_103, %c0_104] : memref<104x32xf32, #tpu.memory_space<vmem>>, vector<1x32xf32>
    tpu.vector_store %arg13[%c39_103, %c0_104], %218 {strides = array<i32>} : memref<104x32xf32, #tpu.memory_space<vmem>>, vector<1x32xf32>,
    %220 = vector.extract_strided_slice %201 {offsets = [30, 0], sizes = [8, 32], strides = [1, 1]} : vector<80x32xf32> to vector<8x32xf32>
    %c41_105 = arith.constant 41 : index
    %c0_106 = arith.constant 0 : index
    %221 = vector.load %arg13[%c41_105, %c0_106] : memref<104x32xf32, #tpu.memory_space<vmem>>, vector<8x32xf32>
    tpu.vector_store %arg13[%c41_105, %c0_106], %220 {strides = array<i32>} : memref<104x32xf32, #tpu.memory_space<vmem>>, vector<8x32xf32>,
    %222 = vector.extract_strided_slice %201 {offsets = [37, 0], sizes = [1, 32], strides = [1, 1]} : vector<80x32xf32> to vector<1x32xf32>
    %c40_107 = arith.constant 40 : index
    %c0_108 = arith.constant 0 : index
    %223 = vector.load %arg13[%c40_107, %c0_108] : memref<104x32xf32, #tpu.memory_space<vmem>>, vector<1x32xf32>
    tpu.vector_store %arg13[%c40_107, %c0_108], %222 {strides = array<i32>} : memref<104x32xf32, #tpu.memory_space<vmem>>, vector<1x32xf32>,
    %224 = vector.extract_strided_slice %201 {offsets = [30, 0], sizes = [1, 32], strides = [1, 1]} : vector<80x32xf32> to vector<1x32xf32>
    %c49_109 = arith.constant 49 : index
    %c0_110 = arith.constant 0 : index
    %225 = vector.load %arg13[%c49_109, %c0_110] : memref<104x32xf32, #tpu.memory_space<vmem>>, vector<1x32xf32>
    tpu.vector_store %arg13[%c49_109, %c0_110], %224 {strides = array<i32>} : memref<104x32xf32, #tpu.memory_space<vmem>>, vector<1x32xf32>,
    %226 = vector.extract_strided_slice %201 {offsets = [40, 0], sizes = [8, 32], strides = [1, 1]} : vector<80x32xf32> to vector<8x32xf32>
    %c51_111 = arith.constant 51 : index
    %c0_112 = arith.constant 0 : index
    %227 = vector.load %arg13[%c51_111, %c0_112] : memref<104x32xf32, #tpu.memory_space<vmem>>, vector<8x32xf32>
    tpu.vector_store %arg13[%c51_111, %c0_112], %226 {strides = array<i32>} : memref<104x32xf32, #tpu.memory_space<vmem>>, vector<8x32xf32>,
    %228 = vector.extract_strided_slice %201 {offsets = [47, 0], sizes = [1, 32], strides = [1, 1]} : vector<80x32xf32> to vector<1x32xf32>
    %c50_113 = arith.constant 50 : index
    %c0_114 = arith.constant 0 : index
    %229 = vector.load %arg13[%c50_113, %c0_114] : memref<104x32xf32, #tpu.memory_space<vmem>>, vector<1x32xf32>
    tpu.vector_store %arg13[%c50_113, %c0_114], %228 {strides = array<i32>} : memref<104x32xf32, #tpu.memory_space<vmem>>, vector<1x32xf32>,
    %230 = vector.extract_strided_slice %201 {offsets = [40, 0], sizes = [1, 32], strides = [1, 1]} : vector<80x32xf32> to vector<1x32xf32>
    %c59_115 = arith.constant 59 : index
    %c0_116 = arith.constant 0 : index
    %231 = vector.load %arg13[%c59_115, %c0_116] : memref<104x32xf32, #tpu.memory_space<vmem>>, vector<1x32xf32>
    tpu.vector_store %arg13[%c59_115, %c0_116], %230 {strides = array<i32>} : memref<104x32xf32, #tpu.memory_space<vmem>>, vector<1x32xf32>,
    %232 = vector.extract_strided_slice %201 {offsets = [50, 0], sizes = [8, 32], strides = [1, 1]} : vector<80x32xf32> to vector<8x32xf32>
    %c61_117 = arith.constant 61 : index
    %c0_118 = arith.constant 0 : index
    %233 = vector.load %arg13[%c61_117, %c0_118] : memref<104x32xf32, #tpu.memory_space<vmem>>, vector<8x32xf32>
    tpu.vector_store %arg13[%c61_117, %c0_118], %232 {strides = array<i32>} : memref<104x32xf32, #tpu.memory_space<vmem>>, vector<8x32xf32>,
    %234 = vector.extract_strided_slice %201 {offsets = [57, 0], sizes = [1, 32], strides = [1, 1]} : vector<80x32xf32> to vector<1x32xf32>
    %c60_119 = arith.constant 60 : index
    %c0_120 = arith.constant 0 : index
    %235 = vector.load %arg13[%c60_119, %c0_120] : memref<104x32xf32, #tpu.memory_space<vmem>>, vector<1x32xf32>
    tpu.vector_store %arg13[%c60_119, %c0_120], %234 {strides = array<i32>} : memref<104x32xf32, #tpu.memory_space<vmem>>, vector<1x32xf32>,
    %236 = vector.extract_strided_slice %201 {offsets = [50, 0], sizes = [1, 32], strides = [1, 1]} : vector<80x32xf32> to vector<1x32xf32>
    %c69_121 = arith.constant 69 : index
    %c0_122 = arith.constant 0 : index
    %237 = vector.load %arg13[%c69_121, %c0_122] : memref<104x32xf32, #tpu.memory_space<vmem>>, vector<1x32xf32>
    tpu.vector_store %arg13[%c69_121, %c0_122], %236 {strides = array<i32>} : memref<104x32xf32, #tpu.memory_space<vmem>>, vector<1x32xf32>,
    %238 = vector.extract_strided_slice %201 {offsets = [60, 0], sizes = [8, 32], strides = [1, 1]} : vector<80x32xf32> to vector<8x32xf32>
    %c71_123 = arith.constant 71 : index
    %c0_124 = arith.constant 0 : index
    %239 = vector.load %arg13[%c71_123, %c0_124] : memref<104x32xf32, #tpu.memory_space<vmem>>, vector<8x32xf32>
    tpu.vector_store %arg13[%c71_123, %c0_124], %238 {strides = array<i32>} : memref<104x32xf32, #tpu.memory_space<vmem>>, vector<8x32xf32>,
    %240 = vector.extract_strided_slice %201 {offsets = [67, 0], sizes = [1, 32], strides = [1, 1]} : vector<80x32xf32> to vector<1x32xf32>
    %c70_125 = arith.constant 70 : index
    %c0_126 = arith.constant 0 : index
    %241 = vector.load %arg13[%c70_125, %c0_126] : memref<104x32xf32, #tpu.memory_space<vmem>>, vector<1x32xf32>
    tpu.vector_store %arg13[%c70_125, %c0_126], %240 {strides = array<i32>} : memref<104x32xf32, #tpu.memory_space<vmem>>, vector<1x32xf32>,
    %242 = vector.extract_strided_slice %201 {offsets = [60, 0], sizes = [1, 32], strides = [1, 1]} : vector<80x32xf32> to vector<1x32xf32>
    %c79_127 = arith.constant 79 : index
    %c0_128 = arith.constant 0 : index
    %243 = vector.load %arg13[%c79_127, %c0_128] : memref<104x32xf32, #tpu.memory_space<vmem>>, vector<1x32xf32>
    tpu.vector_store %arg13[%c79_127, %c0_128], %242 {strides = array<i32>} : memref<104x32xf32, #tpu.memory_space<vmem>>, vector<1x32xf32>,
    %244 = vector.extract_strided_slice %201 {offsets = [70, 0], sizes = [8, 32], strides = [1, 1]} : vector<80x32xf32> to vector<8x32xf32>
    %c81_129 = arith.constant 81 : index
    %c0_130 = arith.constant 0 : index
    %245 = vector.load %arg13[%c81_129, %c0_130] : memref<104x32xf32, #tpu.memory_space<vmem>>, vector<8x32xf32>
    tpu.vector_store %arg13[%c81_129, %c0_130], %244 {strides = array<i32>} : memref<104x32xf32, #tpu.memory_space<vmem>>, vector<8x32xf32>,
    %246 = vector.extract_strided_slice %201 {offsets = [77, 0], sizes = [1, 32], strides = [1, 1]} : vector<80x32xf32> to vector<1x32xf32>
    %c80_131 = arith.constant 80 : index
    %c0_132 = arith.constant 0 : index
    %247 = vector.load %arg13[%c80_131, %c0_132] : memref<104x32xf32, #tpu.memory_space<vmem>>, vector<1x32xf32>
    tpu.vector_store %arg13[%c80_131, %c0_132], %246 {strides = array<i32>} : memref<104x32xf32, #tpu.memory_space<vmem>>, vector<1x32xf32>,
    %248 = vector.extract_strided_slice %201 {offsets = [70, 0], sizes = [1, 32], strides = [1, 1]} : vector<80x32xf32> to vector<1x32xf32>
    %c89_133 = arith.constant 89 : index
    %c0_134 = arith.constant 0 : index
    %249 = vector.load %arg13[%c89_133, %c0_134] : memref<104x32xf32, #tpu.memory_space<vmem>>, vector<1x32xf32>
    tpu.vector_store %arg13[%c89_133, %c0_134], %248 {strides = array<i32>} : memref<104x32xf32, #tpu.memory_space<vmem>>, vector<1x32xf32>,
    %c0_135 = arith.constant 0 : index
    %c0_136 = arith.constant 0 : index
    %250 = vector.load %arg13[%c0_135, %c0_136] : memref<104x32xf32, #tpu.memory_space<vmem>>, vector<80x32xf32>
    %c0_137 = arith.constant 0 : index
    %c0_138 = arith.constant 0 : index
    %251 = vector.load %arg10[%c0_137, %c0_138] : memref<288x32xf32, #tpu.memory_space<vmem>>, vector<32x32xf32>
    %cst_139 = arith.constant dense<0.000000e+00> : vector<80x32xf32>
    %252 = tpu.matmul %250, %251, %cst_139 {dimension_numbers = #tpu.dot_dimension_numbers<[1], [0], [0], [1], [0, 0, 1, 1], [], []>} : vector<80x32xf32>, vector<32x32xf32>, vector<80x32xf32> -> vector<80x32xf32>
    %c1_140 = arith.constant 1 : index
    %c0_141 = arith.constant 0 : index
    %253 = vector.load %arg13[%c1_140, %c0_141] : memref<104x32xf32, #tpu.memory_space<vmem>>, vector<80x32xf32>
    %c32_142 = arith.constant 32 : index
    %c0_143 = arith.constant 0 : index
    %254 = vector.load %arg10[%c32_142, %c0_143] : memref<288x32xf32, #tpu.memory_space<vmem>>, vector<32x32xf32>
    %cst_144 = arith.constant dense<0.000000e+00> : vector<80x32xf32>
    %255 = tpu.matmul %253, %254, %cst_144 {dimension_numbers = #tpu.dot_dimension_numbers<[1], [0], [0], [1], [0, 0, 1, 1], [], []>} : vector<80x32xf32>, vector<32x32xf32>, vector<80x32xf32> -> vector<80x32xf32>
    %256 = arith.addf %252, %255 : vector<80x32xf32>
    %c2_145 = arith.constant 2 : index
    %c0_146 = arith.constant 0 : index
    %257 = vector.load %arg13[%c2_145, %c0_146] : memref<104x32xf32, #tpu.memory_space<vmem>>, vector<80x32xf32>
    %c64_147 = arith.constant 64 : index
    %c0_148 = arith.constant 0 : index
    %258 = vector.load %arg10[%c64_147, %c0_148] : memref<288x32xf32, #tpu.memory_space<vmem>>, vector<32x32xf32>
    %cst_149 = arith.constant dense<0.000000e+00> : vector<80x32xf32>
    %259 = tpu.matmul %257, %258, %cst_149 {dimension_numbers = #tpu.dot_dimension_numbers<[1], [0], [0], [1], [0, 0, 1, 1], [], []>} : vector<80x32xf32>, vector<32x32xf32>, vector<80x32xf32> -> vector<80x32xf32>
    %260 = arith.addf %256, %259 : vector<80x32xf32>
    %c10_150 = arith.constant 10 : index
    %c0_151 = arith.constant 0 : index
    %261 = vector.load %arg13[%c10_150, %c0_151] : memref<104x32xf32, #tpu.memory_space<vmem>>, vector<80x32xf32>
    %c96_152 = arith.constant 96 : index
    %c0_153 = arith.constant 0 : index
    %262 = vector.load %arg10[%c96_152, %c0_153] : memref<288x32xf32, #tpu.memory_space<vmem>>, vector<32x32xf32>
    %cst_154 = arith.constant dense<0.000000e+00> : vector<80x32xf32>
    %263 = tpu.matmul %261, %262, %cst_154 {dimension_numbers = #tpu.dot_dimension_numbers<[1], [0], [0], [1], [0, 0, 1, 1], [], []>} : vector<80x32xf32>, vector<32x32xf32>, vector<80x32xf32> -> vector<80x32xf32>
    %264 = arith.addf %260, %263 : vector<80x32xf32>
    %c11_155 = arith.constant 11 : index
    %c0_156 = arith.constant 0 : index
    %265 = vector.load %arg13[%c11_155, %c0_156] : memref<104x32xf32, #tpu.memory_space<vmem>>, vector<80x32xf32>
    %c128_157 = arith.constant 128 : index
    %c0_158 = arith.constant 0 : index
    %266 = vector.load %arg10[%c128_157, %c0_158] : memref<288x32xf32, #tpu.memory_space<vmem>>, vector<32x32xf32>
    %cst_159 = arith.constant dense<0.000000e+00> : vector<80x32xf32>
    %267 = tpu.matmul %265, %266, %cst_159 {dimension_numbers = #tpu.dot_dimension_numbers<[1], [0], [0], [1], [0, 0, 1, 1], [], []>} : vector<80x32xf32>, vector<32x32xf32>, vector<80x32xf32> -> vector<80x32xf32>
    %268 = arith.addf %264, %267 : vector<80x32xf32>
    %c12_160 = arith.constant 12 : index
    %c0_161 = arith.constant 0 : index
    %269 = vector.load %arg13[%c12_160, %c0_161] : memref<104x32xf32, #tpu.memory_space<vmem>>, vector<80x32xf32>
    %c160_162 = arith.constant 160 : index
    %c0_163 = arith.constant 0 : index
    %270 = vector.load %arg10[%c160_162, %c0_163] : memref<288x32xf32, #tpu.memory_space<vmem>>, vector<32x32xf32>
    %cst_164 = arith.constant dense<0.000000e+00> : vector<80x32xf32>
    %271 = tpu.matmul %269, %270, %cst_164 {dimension_numbers = #tpu.dot_dimension_numbers<[1], [0], [0], [1], [0, 0, 1, 1], [], []>} : vector<80x32xf32>, vector<32x32xf32>, vector<80x32xf32> -> vector<80x32xf32>
    %272 = arith.addf %268, %271 : vector<80x32xf32>
    %c20_165 = arith.constant 20 : index
    %c0_166 = arith.constant 0 : index
    %273 = vector.load %arg13[%c20_165, %c0_166] : memref<104x32xf32, #tpu.memory_space<vmem>>, vector<80x32xf32>
    %c192_167 = arith.constant 192 : index
    %c0_168 = arith.constant 0 : index
    %274 = vector.load %arg10[%c192_167, %c0_168] : memref<288x32xf32, #tpu.memory_space<vmem>>, vector<32x32xf32>
    %cst_169 = arith.constant dense<0.000000e+00> : vector<80x32xf32>
    %275 = tpu.matmul %273, %274, %cst_169 {dimension_numbers = #tpu.dot_dimension_numbers<[1], [0], [0], [1], [0, 0, 1, 1], [], []>} : vector<80x32xf32>, vector<32x32xf32>, vector<80x32xf32> -> vector<80x32xf32>
    %276 = arith.addf %272, %275 : vector<80x32xf32>
    %c21_170 = arith.constant 21 : index
    %c0_171 = arith.constant 0 : index
    %277 = vector.load %arg13[%c21_170, %c0_171] : memref<104x32xf32, #tpu.memory_space<vmem>>, vector<80x32xf32>
    %c224_172 = arith.constant 224 : index
    %c0_173 = arith.constant 0 : index
    %278 = vector.load %arg10[%c224_172, %c0_173] : memref<288x32xf32, #tpu.memory_space<vmem>>, vector<32x32xf32>
    %cst_174 = arith.constant dense<0.000000e+00> : vector<80x32xf32>
    %279 = tpu.matmul %277, %278, %cst_174 {dimension_numbers = #tpu.dot_dimension_numbers<[1], [0], [0], [1], [0, 0, 1, 1], [], []>} : vector<80x32xf32>, vector<32x32xf32>, vector<80x32xf32> -> vector<80x32xf32>
    %280 = arith.addf %276, %279 : vector<80x32xf32>
    %c22_175 = arith.constant 22 : index
    %c0_176 = arith.constant 0 : index
    %281 = vector.load %arg13[%c22_175, %c0_176] : memref<104x32xf32, #tpu.memory_space<vmem>>, vector<80x32xf32>
    %c256_177 = arith.constant 256 : index
    %c0_178 = arith.constant 0 : index
    %282 = vector.load %arg10[%c256_177, %c0_178] : memref<288x32xf32, #tpu.memory_space<vmem>>, vector<32x32xf32>
    %cst_179 = arith.constant dense<0.000000e+00> : vector<80x32xf32>
    %283 = tpu.matmul %281, %282, %cst_179 {dimension_numbers = #tpu.dot_dimension_numbers<[1], [0], [0], [1], [0, 0, 1, 1], [], []>} : vector<80x32xf32>, vector<32x32xf32>, vector<80x32xf32> -> vector<80x32xf32>
    %284 = arith.addf %280, %283 : vector<80x32xf32>
    %c0_180 = arith.constant 0 : index
    %c0_181 = arith.constant 0 : index
    %285 = vector.load %arg11[%c0_180, %c0_181] : memref<1x32xf32, #tpu.memory_space<vmem>>, vector<1x32xf32>
    %286 = vector.broadcast %285 : vector<1x32xf32> to vector<80x32xf32>
    %287 = arith.addf %284, %286 : vector<80x32xf32>
    %288 = vector.extract_strided_slice %8 {offsets = [0, 0], sizes = [8, 32], strides = [1, 1]} : vector<64x32xf32> to vector<8x32xf32>
    %289 = vector.extract_strided_slice %287 {offsets = [0, 0], sizes = [8, 32], strides = [1, 1]} : vector<80x32xf32> to vector<8x32xf32>
    %290 = arith.addf %288, %289 : vector<8x32xf32>
    %c0_182 = arith.constant 0 : index
    %c0_183 = arith.constant 0 : index
    %c0_184 = arith.constant 0 : index
    %291 = vector.load %arg12[%c0_182, %c0_183, %c0_184] : memref<1x64x32xf32, #tpu.memory_space<vmem>>, vector<1x8x32xf32>
    %292 = vector.shape_cast %291 : vector<1x8x32xf32> to vector<8x32xf32>
    %293 = vector.shape_cast %290 : vector<8x32xf32> to vector<1x8x32xf32>
    tpu.vector_store %arg12[%c0_182, %c0_183, %c0_184], %293 {strides = array<i32>} : memref<1x64x32xf32, #tpu.memory_space<vmem>>, vector<1x8x32xf32>,
    %294 = vector.extract_strided_slice %8 {offsets = [8, 0], sizes = [8, 32], strides = [1, 1]} : vector<64x32xf32> to vector<8x32xf32>
    %295 = vector.extract_strided_slice %287 {offsets = [10, 0], sizes = [8, 32], strides = [1, 1]} : vector<80x32xf32> to vector<8x32xf32>
    %296 = arith.addf %294, %295 : vector<8x32xf32>
    %c0_185 = arith.constant 0 : index
    %c8 = arith.constant 8 : index
    %c0_186 = arith.constant 0 : index
    %297 = vector.load %arg12[%c0_185, %c8, %c0_186] : memref<1x64x32xf32, #tpu.memory_space<vmem>>, vector<1x8x32xf32>
    %298 = vector.shape_cast %297 : vector<1x8x32xf32> to vector<8x32xf32>
    %299 = vector.shape_cast %296 : vector<8x32xf32> to vector<1x8x32xf32>
    tpu.vector_store %arg12[%c0_185, %c8, %c0_186], %299 {strides = array<i32>} : memref<1x64x32xf32, #tpu.memory_space<vmem>>, vector<1x8x32xf32>,
    %300 = vector.extract_strided_slice %8 {offsets = [16, 0], sizes = [8, 32], strides = [1, 1]} : vector<64x32xf32> to vector<8x32xf32>
    %301 = vector.extract_strided_slice %287 {offsets = [20, 0], sizes = [8, 32], strides = [1, 1]} : vector<80x32xf32> to vector<8x32xf32>
    %302 = arith.addf %300, %301 : vector<8x32xf32>
    %c0_187 = arith.constant 0 : index
    %c16 = arith.constant 16 : index
    %c0_188 = arith.constant 0 : index
    %303 = vector.load %arg12[%c0_187, %c16, %c0_188] : memref<1x64x32xf32, #tpu.memory_space<vmem>>, vector<1x8x32xf32>
    %304 = vector.shape_cast %303 : vector<1x8x32xf32> to vector<8x32xf32>
    %305 = vector.shape_cast %302 : vector<8x32xf32> to vector<1x8x32xf32>
    tpu.vector_store %arg12[%c0_187, %c16, %c0_188], %305 {strides = array<i32>} : memref<1x64x32xf32, #tpu.memory_space<vmem>>, vector<1x8x32xf32>,
    %306 = vector.extract_strided_slice %8 {offsets = [24, 0], sizes = [8, 32], strides = [1, 1]} : vector<64x32xf32> to vector<8x32xf32>
    %307 = vector.extract_strided_slice %287 {offsets = [30, 0], sizes = [8, 32], strides = [1, 1]} : vector<80x32xf32> to vector<8x32xf32>
    %308 = arith.addf %306, %307 : vector<8x32xf32>
    %c0_189 = arith.constant 0 : index
    %c24 = arith.constant 24 : index
    %c0_190 = arith.constant 0 : index
    %309 = vector.load %arg12[%c0_189, %c24, %c0_190] : memref<1x64x32xf32, #tpu.memory_space<vmem>>, vector<1x8x32xf32>
    %310 = vector.shape_cast %309 : vector<1x8x32xf32> to vector<8x32xf32>
    %311 = vector.shape_cast %308 : vector<8x32xf32> to vector<1x8x32xf32>
    tpu.vector_store %arg12[%c0_189, %c24, %c0_190], %311 {strides = array<i32>} : memref<1x64x32xf32, #tpu.memory_space<vmem>>, vector<1x8x32xf32>,
    %312 = vector.extract_strided_slice %8 {offsets = [32, 0], sizes = [8, 32], strides = [1, 1]} : vector<64x32xf32> to vector<8x32xf32>
    %313 = vector.extract_strided_slice %287 {offsets = [40, 0], sizes = [8, 32], strides = [1, 1]} : vector<80x32xf32> to vector<8x32xf32>
    %314 = arith.addf %312, %313 : vector<8x32xf32>
    %c0_191 = arith.constant 0 : index
    %c32_192 = arith.constant 32 : index
    %c0_193 = arith.constant 0 : index
    %315 = vector.load %arg12[%c0_191, %c32_192, %c0_193] : memref<1x64x32xf32, #tpu.memory_space<vmem>>, vector<1x8x32xf32>
    %316 = vector.shape_cast %315 : vector<1x8x32xf32> to vector<8x32xf32>
    %317 = vector.shape_cast %314 : vector<8x32xf32> to vector<1x8x32xf32>
    tpu.vector_store %arg12[%c0_191, %c32_192, %c0_193], %317 {strides = array<i32>} : memref<1x64x32xf32, #tpu.memory_space<vmem>>, vector<1x8x32xf32>,
    %318 = vector.extract_strided_slice %8 {offsets = [40, 0], sizes = [8, 32], strides = [1, 1]} : vector<64x32xf32> to vector<8x32xf32>
    %319 = vector.extract_strided_slice %287 {offsets = [50, 0], sizes = [8, 32], strides = [1, 1]} : vector<80x32xf32> to vector<8x32xf32>
    %320 = arith.addf %318, %319 : vector<8x32xf32>
    %c0_194 = arith.constant 0 : index
    %c40_195 = arith.constant 40 : index
    %c0_196 = arith.constant 0 : index
    %321 = vector.load %arg12[%c0_194, %c40_195, %c0_196] : memref<1x64x32xf32, #tpu.memory_space<vmem>>, vector<1x8x32xf32>
    %322 = vector.shape_cast %321 : vector<1x8x32xf32> to vector<8x32xf32>
    %323 = vector.shape_cast %320 : vector<8x32xf32> to vector<1x8x32xf32>
    tpu.vector_store %arg12[%c0_194, %c40_195, %c0_196], %323 {strides = array<i32>} : memref<1x64x32xf32, #tpu.memory_space<vmem>>, vector<1x8x32xf32>,
    %324 = vector.extract_strided_slice %8 {offsets = [48, 0], sizes = [8, 32], strides = [1, 1]} : vector<64x32xf32> to vector<8x32xf32>
    %325 = vector.extract_strided_slice %287 {offsets = [60, 0], sizes = [8, 32], strides = [1, 1]} : vector<80x32xf32> to vector<8x32xf32>
    %326 = arith.addf %324, %325 : vector<8x32xf32>
    %c0_197 = arith.constant 0 : index
    %c48 = arith.constant 48 : index
    %c0_198 = arith.constant 0 : index
    %327 = vector.load %arg12[%c0_197, %c48, %c0_198] : memref<1x64x32xf32, #tpu.memory_space<vmem>>, vector<1x8x32xf32>
    %328 = vector.shape_cast %327 : vector<1x8x32xf32> to vector<8x32xf32>
    %329 = vector.shape_cast %326 : vector<8x32xf32> to vector<1x8x32xf32>
    tpu.vector_store %arg12[%c0_197, %c48, %c0_198], %329 {strides = array<i32>} : memref<1x64x32xf32, #tpu.memory_space<vmem>>, vector<1x8x32xf32>,
    %330 = vector.extract_strided_slice %8 {offsets = [56, 0], sizes = [8, 32], strides = [1, 1]} : vector<64x32xf32> to vector<8x32xf32>
    %331 = vector.extract_strided_slice %287 {offsets = [70, 0], sizes = [8, 32], strides = [1, 1]} : vector<80x32xf32> to vector<8x32xf32>
    %332 = arith.addf %330, %331 : vector<8x32xf32>
    %c0_199 = arith.constant 0 : index
    %c56 = arith.constant 56 : index
    %c0_200 = arith.constant 0 : index
    %333 = vector.load %arg12[%c0_199, %c56, %c0_200] : memref<1x64x32xf32, #tpu.memory_space<vmem>>, vector<1x8x32xf32>
    %334 = vector.shape_cast %333 : vector<1x8x32xf32> to vector<8x32xf32>
    %335 = vector.shape_cast %332 : vector<8x32xf32> to vector<1x8x32xf32>
    tpu.vector_store %arg12[%c0_199, %c56, %c0_200], %335 {strides = array<i32>} : memref<1x64x32xf32, #tpu.memory_space<vmem>>, vector<1x8x32xf32>,
    return
  }
  func.func @transform_0(%arg0: i32) -> (i32, i32, i32) {
    %c0_i32 = arith.constant 0 : i32
    %c0_i32_0 = arith.constant 0 : i32
    %c0_i32_1 = arith.constant 0 : i32
    return %arg0, %c0_i32, %c0_i32_0 : i32, i32, i32
  }
  func.func @transform_1(%arg0: i32) -> (i32, i32) {
    %c0_i32 = arith.constant 0 : i32
    %c0_i32_0 = arith.constant 0 : i32
    %c0_i32_1 = arith.constant 0 : i32
    return %c0_i32, %c0_i32_0 : i32, i32
  }
  func.func @transform_2(%arg0: i32) -> (i32, i32) {
    %c0_i32 = arith.constant 0 : i32
    %c0_i32_0 = arith.constant 0 : i32
    %c0_i32_1 = arith.constant 0 : i32
    return %c0_i32, %c0_i32_0 : i32, i32
  }
  func.func @transform_3(%arg0: i32) -> (i32, i32) {
    %c0_i32 = arith.constant 0 : i32
    %c0_i32_0 = arith.constant 0 : i32
    %c0_i32_1 = arith.constant 0 : i32
    return %c0_i32, %c0_i32_0 : i32, i32
  }
  func.func @transform_4(%arg0: i32) -> (i32, i32) {
    %c0_i32 = arith.constant 0 : i32
    %c0_i32_0 = arith.constant 0 : i32
    %c0_i32_1 = arith.constant 0 : i32
    return %c0_i32, %c0_i32_0 : i32, i32
  }
  func.func @transform_5(%arg0: i32) -> (i32, i32) {
    %c0_i32 = arith.constant 0 : i32
    %c0_i32_0 = arith.constant 0 : i32
    %c0_i32_1 = arith.constant 0 : i32
    return %c0_i32, %c0_i32_0 : i32, i32
  }
  func.func @transform_6(%arg0: i32) -> (i32, i32) {
    %c0_i32 = arith.constant 0 : i32
    %c0_i32_0 = arith.constant 0 : i32
    %c0_i32_1 = arith.constant 0 : i32
    return %c0_i32, %c0_i32_0 : i32, i32
  }
  func.func @transform_7(%arg0: i32) -> (i32, i32) {
    %c0_i32 = arith.constant 0 : i32
    %c0_i32_0 = arith.constant 0 : i32
    %c0_i32_1 = arith.constant 0 : i32
    return %c0_i32, %c0_i32_0 : i32, i32
  }
  func.func @transform_8(%arg0: i32) -> (i32, i32) {
    %c0_i32 = arith.constant 0 : i32
    %c0_i32_0 = arith.constant 0 : i32
    %c0_i32_1 = arith.constant 0 : i32
    return %c0_i32, %c0_i32_0 : i32, i32
  }
  func.func @transform_9(%arg0: i32) -> (i32, i32) {
    %c0_i32 = arith.constant 0 : i32
    %c0_i32_0 = arith.constant 0 : i32
    %c0_i32_1 = arith.constant 0 : i32
    return %c0_i32, %c0_i32_0 : i32, i32
  }
  func.func @transform_10(%arg0: i32) -> (i32, i32) {
    %c0_i32 = arith.constant 0 : i32
    %c0_i32_0 = arith.constant 0 : i32
    %c0_i32_1 = arith.constant 0 : i32
    return %c0_i32, %c0_i32_0 : i32, i32
  }
  func.func @transform_11(%arg0: i32) -> (i32, i32, i32) {
    %c0_i32 = arith.constant 0 : i32
    %c0_i32_0 = arith.constant 0 : i32
    %c0_i32_1 = arith.constant 0 : i32
    return %arg0, %c0_i32, %c0_i32_0 : i32, i32, i32
  }
}

</mosaic_0001>

<llo_original>
// kernel: downblock2d_forward.1
$region0: #{downblock2d_forward.1}
  #allocation0 [shape = 'u32[]', space=smem, size = 0x4, offset = 0x4, fixed_abs, tag = 'smem constant byte address 0x4 - core index']
  #allocation1 [shape = 'u32[144,128]{1,0:T(1,128)}', space=vmem, size = 0x12000, scoped, tag = 'internal scratch']
  #allocation2 [shape = 'f32[104,32]{1,0:T(8,128)}', space=vmem, size = 0xd000, scoped, tag = 'scratch operand']
  %s0 = inlined_call_operand.vmem [shape: f32[2,64,40], index: 0, kind: input, shape index: {}]
  %s1 = inlined_call_operand.vmem [shape: f32[40,32], index: 1, kind: input, shape index: {}]
  %s2 = inlined_call_operand.vmem [shape: f32[1,32], index: 2, kind: input, shape index: {}]
  %s3 = inlined_call_operand.vmem [shape: f32[1,32], index: 3, kind: input, shape index: {}]
  %s4 = inlined_call_operand.vmem [shape: f32[1,32], index: 4, kind: input, shape index: {}]
  %s5 = inlined_call_operand.vmem [shape: f32[288,32], index: 5, kind: input, shape index: {}]
  %s6 = inlined_call_operand.vmem [shape: f32[1,32], index: 6, kind: input, shape index: {}]
  %s7 = inlined_call_operand.vmem [shape: f32[1,32], index: 7, kind: input, shape index: {}]
  %s8 = inlined_call_operand.vmem [shape: f32[1,32], index: 8, kind: input, shape index: {}]
  %s9 = inlined_call_operand.vmem [shape: f32[288,32], index: 9, kind: input, shape index: {}]
  %s10 = inlined_call_operand.vmem [shape: f32[1,32], index: 10, kind: input, shape index: {}]
  %s11 = inlined_call_operand.hbm [shape: f32[2,64,32], index: 11, kind: output, shape index: {}]
  %s12 = sld [smem:[#allocation0]]
  $region77: #{downblock2d_forward.1} parent=0
    _
  %s14 = ssub.s32 1, %s12
  %s15 = scalar_select 0, %s14, %s12
  $region1: #{downblock2d_forward.1} parent=0
    #allocation3 [shape = 'u8[65536]{0}', space=vmem, size = 0x10000, scoped, tag = 'output window, operand 0']
    #allocation4 [shape = 's32[2]{0}', space=sflag, size = 0x8, scoped, tag = 'scoped memory for downblock2d_forward.1']
    %16 = vsyncpa [#allocation4], 0
    %s17 = scalar_lea.sflag [#allocation4], 1
    %18 = vsyncpa %s17, 0
    loop: start=0, step=1, limit=4
    $region2: #{downblock2d_forward.1} parent=1 // loop_pre_header
      _
    $region3: #{downblock2d_forward.1} parent=1 // loop_header
      %s20 = sphi 0, %s24
      %p21 = scmp.ge.s32.totalorder %s20, 4
      %s30 = sphi 0, %s32
      %s33 = sphi 0, %s30
      %s34 = sphi 0, %s33
      %s50 = sphi 0, %s34
      %s54 = sphi 0, %s54
      %s56 = sphi 0, %s54
      %s57 = sphi 0, %s56
      %s71 = sphi 0, %s57
      %s75 = sphi 0, %s75
      %s77 = sphi 0, %s75
      %s78 = sphi 0, %s77
      %s92 = sphi 0, %s78
      %s96 = sphi 0, %s96
      %s98 = sphi 0, %s96
      %s99 = sphi 0, %s98
      %s113 = sphi 0, %s99
      %s117 = sphi 0, %s117
      %s119 = sphi 0, %s117
      %s120 = sphi 0, %s119
      %s134 = sphi 0, %s120
      %s138 = sphi 0, %s138
      %s140 = sphi 0, %s138
      %s141 = sphi 0, %s140
      %s155 = sphi 0, %s141
      %s159 = sphi 0, %s159
      %s161 = sphi 0, %s159
      %s162 = sphi 0, %s161
      %s176 = sphi 0, %s162
      %s180 = sphi 0, %s180
      %s182 = sphi 0, %s180
      %s183 = sphi 0, %s182
      %s197 = sphi 0, %s183
      %s201 = sphi 0, %s201
      %s203 = sphi 0, %s201
      %s204 = sphi 0, %s203
      %s218 = sphi 0, %s204
      %s222 = sphi 0, %s222
      %s224 = sphi 0, %s222
      %s225 = sphi 0, %s224
      %s239 = sphi 0, %s225
      %s243 = sphi 0, %s243
      %s245 = sphi 0, %s243
      %s246 = sphi 0, %s245
      %s260 = sphi 0, %s246
      %s266 = sphi 0, %s268
      %s269 = sphi 0, %s266
      %s270 = sphi 0, %s269
      %s286 = sphi 0, %s270
    $region4: #{downblock2d_forward.1} parent=1 // loop_header_branch
      %23 = sbr.rel (%p21) target = $region8
    $region5: #{downblock2d_forward.1} parent=1 // loop_body
      %s25 = ssub.s32 %s20, 1
      %s26 = ssub.s32 %s20, 2
      %s27 = sadd.s32 %s20, 1
      %s28 = ssub.s32 %s20, %s27
      %p29 = scmp.eq.s32.totalorder %s28, 0
      %s31 = sadd.s32 %s30, 1
      %s32 = scalar_select %p29, %s30, %s31
      %p35 = pneg %p29
      %p36 = scmp.eq.s32.totalorder %s20, 1
      %p37 = por %p35, %p36
      %p38 = scmp.ne.s32.totalorder %s30, %s33
      %p39 = scmp.eq.s32.totalorder %s20, 0
      %p40 = por %p38, %p39
      %p41 = scmp.ne.s32.totalorder %s30, %s33
      %p42 = scmp.eq.s32.totalorder %s25, 1
      %p43 = por %p41, %p42
      %p44 = scmp.ne.s32.totalorder %s33, %s34
      %p45 = scmp.eq.s32.totalorder %s25, 0
      %p46 = por %p44, %p45
      %p47 = scmp.ne.s32.totalorder %s33, %s34
      %p48 = scmp.eq.s32.totalorder %s26, 1
      %p49 = por %p47, %p48
      %p51 = scmp.ne.s32.totalorder %s34, %s50
      %p52 = scmp.eq.s32.totalorder %s26, 0
      %p53 = por %p51, %p52
      %s55 = sadd.s32 %s54, 1
      %p58 = scmp.eq.s32.totalorder %s20, 1
      %p59 = scmp.ne.s32.totalorder %s54, %s56
      %p60 = scmp.eq.s32.totalorder %s20, 0
      %p61 = por %p59, %p60
      %p62 = scmp.ne.s32.totalorder %s54, %s56
      %p63 = scmp.eq.s32.totalorder %s25, 1
      %p64 = por %p62, %p63
      %p65 = scmp.ne.s32.totalorder %s56, %s57
      %p66 = scmp.eq.s32.totalorder %s25, 0
      %p67 = por %p65, %p66
      %p68 = scmp.ne.s32.totalorder %s56, %s57
      %p69 = scmp.eq.s32.totalorder %s26, 1
      %p70 = por %p68, %p69
      %p72 = scmp.ne.s32.totalorder %s57, %s71
      %p73 = scmp.eq.s32.totalorder %s26, 0
      %p74 = por %p72, %p73
      %s76 = sadd.s32 %s75, 1
      %p79 = scmp.eq.s32.totalorder %s20, 1
      %p80 = scmp.ne.s32.totalorder %s75, %s77
      %p81 = scmp.eq.s32.totalorder %s20, 0
      %p82 = por %p80, %p81
      %p83 = scmp.ne.s32.totalorder %s75, %s77
      %p84 = scmp.eq.s32.totalorder %s25, 1
      %p85 = por %p83, %p84
      %p86 = scmp.ne.s32.totalorder %s77, %s78
      %p87 = scmp.eq.s32.totalorder %s25, 0
      %p88 = por %p86, %p87
      %p89 = scmp.ne.s32.totalorder %s77, %s78
      %p90 = scmp.eq.s32.totalorder %s26, 1
      %p91 = por %p89, %p90
      %p93 = scmp.ne.s32.totalorder %s78, %s92
      %p94 = scmp.eq.s32.totalorder %s26, 0
      %p95 = por %p93, %p94
      %s97 = sadd.s32 %s96, 1
      %p100 = scmp.eq.s32.totalorder %s20, 1
      %p101 = scmp.ne.s32.totalorder %s96, %s98
      %p102 = scmp.eq.s32.totalorder %s20, 0
      %p103 = por %p101, %p102
      %p104 = scmp.ne.s32.totalorder %s96, %s98
      %p105 = scmp.eq.s32.totalorder %s25, 1
      %p106 = por %p104, %p105
      %p107 = scmp.ne.s32.totalorder %s98, %s99
      %p108 = scmp.eq.s32.totalorder %s25, 0
      %p109 = por %p107, %p108
      %p110 = scmp.ne.s32.totalorder %s98, %s99
      %p111 = scmp.eq.s32.totalorder %s26, 1
      %p112 = por %p110, %p111
      %p114 = scmp.ne.s32.totalorder %s99, %s113
      %p115 = scmp.eq.s32.totalorder %s26, 0
      %p116 = por %p114, %p115
      %s118 = sadd.s32 %s117, 1
      %p121 = scmp.eq.s32.totalorder %s20, 1
      %p122 = scmp.ne.s32.totalorder %s117, %s119
      %p123 = scmp.eq.s32.totalorder %s20, 0
      %p124 = por %p122, %p123
      %p125 = scmp.ne.s32.totalorder %s117, %s119
      %p126 = scmp.eq.s32.totalorder %s25, 1
      %p127 = por %p125, %p126
      %p128 = scmp.ne.s32.totalorder %s119, %s120
      %p129 = scmp.eq.s32.totalorder %s25, 0
      %p130 = por %p128, %p129
      %p131 = scmp.ne.s32.totalorder %s119, %s120
      %p132 = scmp.eq.s32.totalorder %s26, 1
      %p133 = por %p131, %p132
      %p135 = scmp.ne.s32.totalorder %s120, %s134
      %p136 = scmp.eq.s32.totalorder %s26, 0
      %p137 = por %p135, %p136
      %s139 = sadd.s32 %s138, 1
      %p142 = scmp.eq.s32.totalorder %s20, 1
      %p143 = scmp.ne.s32.totalorder %s138, %s140
      %p144 = scmp.eq.s32.totalorder %s20, 0
      %p145 = por %p143, %p144
      %p146 = scmp.ne.s32.totalorder %s138, %s140
      %p147 = scmp.eq.s32.totalorder %s25, 1
      %p148 = por %p146, %p147
      %p149 = scmp.ne.s32.totalorder %s140, %s141
      %p150 = scmp.eq.s32.totalorder %s25, 0
      %p151 = por %p149, %p150
      %p152 = scmp.ne.s32.totalorder %s140, %s141
      %p153 = scmp.eq.s32.totalorder %s26, 1
      %p154 = por %p152, %p153
      %p156 = scmp.ne.s32.totalorder %s141, %s155
      %p157 = scmp.eq.s32.totalorder %s26, 0
      %p158 = por %p156, %p157
      %s160 = sadd.s32 %s159, 1
      %p163 = scmp.eq.s32.totalorder %s20, 1
      %p164 = scmp.ne.s32.totalorder %s159, %s161
      %p165 = scmp.eq.s32.totalorder %s20, 0
      %p166 = por %p164, %p165
      %p167 = scmp.ne.s32.totalorder %s159, %s161
      %p168 = scmp.eq.s32.totalorder %s25, 1
      %p169 = por %p167, %p168
      %p170 = scmp.ne.s32.totalorder %s161, %s162
      %p171 = scmp.eq.s32.totalorder %s25, 0
      %p172 = por %p170, %p171
      %p173 = scmp.ne.s32.totalorder %s161, %s162
      %p174 = scmp.eq.s32.totalorder %s26, 1
      %p175 = por %p173, %p174
      %p177 = scmp.ne.s32.totalorder %s162, %s176
      %p178 = scmp.eq.s32.totalorder %s26, 0
      %p179 = por %p177, %p178
      %s181 = sadd.s32 %s180, 1
      %p184 = scmp.eq.s32.totalorder %s20, 1
      %p185 = scmp.ne.s32.totalorder %s180, %s182
      %p186 = scmp.eq.s32.totalorder %s20, 0
      %p187 = por %p185, %p186
      %p188 = scmp.ne.s32.totalorder %s180, %s182
      %p189 = scmp.eq.s32.totalorder %s25, 1
      %p190 = por %p188, %p189
      %p191 = scmp.ne.s32.totalorder %s182, %s183
      %p192 = scmp.eq.s32.totalorder %s25, 0
      %p193 = por %p191, %p192
      %p194 = scmp.ne.s32.totalorder %s182, %s183
      %p195 = scmp.eq.s32.totalorder %s26, 1
      %p196 = por %p194, %p195
      %p198 = scmp.ne.s32.totalorder %s183, %s197
      %p199 = scmp.eq.s32.totalorder %s26, 0
      %p200 = por %p198, %p199
      %s202 = sadd.s32 %s201, 1
      %p205 = scmp.eq.s32.totalorder %s20, 1
      %p206 = scmp.ne.s32.totalorder %s201, %s203
      %p207 = scmp.eq.s32.totalorder %s20, 0
      %p208 = por %p206, %p207
      %p209 = scmp.ne.s32.totalorder %s201, %s203
      %p210 = scmp.eq.s32.totalorder %s25, 1
      %p211 = por %p209, %p210
      %p212 = scmp.ne.s32.totalorder %s203, %s204
      %p213 = scmp.eq.s32.totalorder %s25, 0
      %p214 = por %p212, %p213
      %p215 = scmp.ne.s32.totalorder %s203, %s204
      %p216 = scmp.eq.s32.totalorder %s26, 1
      %p217 = por %p215, %p216
      %p219 = scmp.ne.s32.totalorder %s204, %s218
      %p220 = scmp.eq.s32.totalorder %s26, 0
      %p221 = por %p219, %p220
      %s223 = sadd.s32 %s222, 1
      %p226 = scmp.eq.s32.totalorder %s20, 1
      %p227 = scmp.ne.s32.totalorder %s222, %s224
      %p228 = scmp.eq.s32.totalorder %s20, 0
      %p229 = por %p227, %p228
      %p230 = scmp.ne.s32.totalorder %s222, %s224
      %p231 = scmp.eq.s32.totalorder %s25, 1
      %p232 = por %p230, %p231
      %p233 = scmp.ne.s32.totalorder %s224, %s225
      %p234 = scmp.eq.s32.totalorder %s25, 0
      %p235 = por %p233, %p234
      %p236 = scmp.ne.s32.totalorder %s224, %s225
      %p237 = scmp.eq.s32.totalorder %s26, 1
      %p238 = por %p236, %p237
      %p240 = scmp.ne.s32.totalorder %s225, %s239
      %p241 = scmp.eq.s32.totalorder %s26, 0
      %p242 = por %p240, %p241
      %s244 = sadd.s32 %s243, 1
      %p247 = scmp.eq.s32.totalorder %s20, 1
      %p248 = scmp.ne.s32.totalorder %s243, %s245
      %p249 = scmp.eq.s32.totalorder %s20, 0
      %p250 = por %p248, %p249
      %p251 = scmp.ne.s32.totalorder %s243, %s245
      %p252 = scmp.eq.s32.totalorder %s25, 1
      %p253 = por %p251, %p252
      %p254 = scmp.ne.s32.totalorder %s245, %s246
      %p255 = scmp.eq.s32.totalorder %s25, 0
      %p256 = por %p254, %p255
      %p257 = scmp.ne.s32.totalorder %s245, %s246
      %p258 = scmp.eq.s32.totalorder %s26, 1
      %p259 = por %p257, %p258
      %p261 = scmp.ne.s32.totalorder %s246, %s260
      %p262 = scmp.eq.s32.totalorder %s26, 0
      %p263 = por %p261, %p262
      %s264 = ssub.s32 %s20, %s27
      %p265 = scmp.eq.s32.totalorder %s264, 0
      %s267 = sadd.s32 %s266, 1
      %s268 = scalar_select %p265, %s266, %s267
      %p271 = pneg %p265
      %p272 = scmp.eq.s32.totalorder %s20, 1
      %p273 = por %p271, %p272
      %p274 = scmp.ne.s32.totalorder %s266, %s269
      %p275 = scmp.eq.s32.totalorder %s20, 0
      %p276 = por %p274, %p275
      %p277 = scmp.ne.s32.totalorder %s266, %s269
      %p278 = scmp.eq.s32.totalorder %s25, 1
      %p279 = por %p277, %p278
      %p280 = scmp.ne.s32.totalorder %s269, %s270
      %p281 = scmp.eq.s32.totalorder %s25, 0
      %p282 = por %p280, %p281
      %p283 = scmp.ne.s32.totalorder %s269, %s270
      %p284 = scmp.eq.s32.totalorder %s26, 1
      %p285 = por %p283, %p284
      %p287 = scmp.ne.s32.totalorder %s270, %s286
      %p288 = scmp.eq.s32.totalorder %s26, 0
      %p289 = por %p287, %p288
      %p290 = scmp.le.s32.totalorder 1, %s20
      %p291 = scmp.lt.s32.totalorder %s20, 3
      %p292 = pnand %p290, %p291
      %p293 = pneg %p292
      // Predicated region
      $region9: #{downblock2d_forward.1} parent=5 // pred_check
        _
      $region10: #{downblock2d_forward.1} parent=5 // pred_check_branch
        %295 = sbr.rel (%p292) target = $region12
      $region11: #{downblock2d_forward.1} parent=5 // pred_region
        %s296 = ssub.s32 %s20, 1
        // Predicated region
        $region13: #{downblock2d_forward.1} parent=11 // pred_check
          %p297 = pneg %p67
        $region14: #{downblock2d_forward.1} parent=11 // pred_check_branch
          %299 = sbr.rel (%p297) target = $region16
        $region15: #{downblock2d_forward.1} parent=11 // pred_region
          _
        $region16: #{downblock2d_forward.1} parent=11 // pred_fallthru
          _
        // Predicated region
        $region17: #{downblock2d_forward.1} parent=11 // pred_check
          %p300 = pneg %p88
        $region18: #{downblock2d_forward.1} parent=11 // pred_check_branch
          %302 = sbr.rel (%p300) target = $region20
        $region19: #{downblock2d_forward.1} parent=11 // pred_region
          _
        $region20: #{downblock2d_forward.1} parent=11 // pred_fallthru
          _
        // Predicated region
        $region21: #{downblock2d_forward.1} parent=11 // pred_check
          %p303 = pneg %p109
        $region22: #{downblock2d_forward.1} parent=11 // pred_check_branch
          %305 = sbr.rel (%p303) target = $region24
        $region23: #{downblock2d_forward.1} parent=11 // pred_region
          _
        $region24: #{downblock2d_forward.1} parent=11 // pred_fallthru
          _
        // Predicated region
        $region25: #{downblock2d_forward.1} parent=11 // pred_check
          %p306 = pneg %p130
        $region26: #{downblock2d_forward.1} parent=11 // pred_check_branch
          %308 = sbr.rel (%p306) target = $region28
        $region27: #{downblock2d_forward.1} parent=11 // pred_region
          _
        $region28: #{downblock2d_forward.1} parent=11 // pred_fallthru
          _
        // Predicated region
        $region29: #{downblock2d_forward.1} parent=11 // pred_check
          %p309 = pneg %p151
        $region30: #{downblock2d_forward.1} parent=11 // pred_check_branch
          %311 = sbr.rel (%p309) target = $region32
        $region31: #{downblock2d_forward.1} parent=11 // pred_region
          _
        $region32: #{downblock2d_forward.1} parent=11 // pred_fallthru
          _
        // Predicated region
        $region33: #{downblock2d_forward.1} parent=11 // pred_check
          %p312 = pneg %p172
        $region34: #{downblock2d_forward.1} parent=11 // pred_check_branch
          %314 = sbr.rel (%p312) target = $region36
        $region35: #{downblock2d_forward.1} parent=11 // pred_region
          _
        $region36: #{downblock2d_forward.1} parent=11 // pred_fallthru
          _
        // Predicated region
        $region37: #{downblock2d_forward.1} parent=11 // pred_check
          %p315 = pneg %p193
        $region38: #{downblock2d_forward.1} parent=11 // pred_check_branch
          %317 = sbr.rel (%p315) target = $region40
        $region39: #{downblock2d_forward.1} parent=11 // pred_region
          _
        $region40: #{downblock2d_forward.1} parent=11 // pred_fallthru
          _
        // Predicated region
        $region41: #{downblock2d_forward.1} parent=11 // pred_check
          %p318 = pneg %p214
        $region42: #{downblock2d_forward.1} parent=11 // pred_check_branch
          %320 = sbr.rel (%p318) target = $region44
        $region43: #{downblock2d_forward.1} parent=11 // pred_region
          _
        $region44: #{downblock2d_forward.1} parent=11 // pred_fallthru
          _
        // Predicated region
        $region45: #{downblock2d_forward.1} parent=11 // pred_check
          %p321 = pneg %p235
        $region46: #{downblock2d_forward.1} parent=11 // pred_check_branch
          %323 = sbr.rel (%p321) target = $region48
        $region47: #{downblock2d_forward.1} parent=11 // pred_region
          _
        $region48: #{downblock2d_forward.1} parent=11 // pred_fallthru
          _
        // Predicated region
        $region49: #{downblock2d_forward.1} parent=11 // pred_check
          %p324 = pneg %p256
        $region50: #{downblock2d_forward.1} parent=11 // pred_check_branch
          %326 = sbr.rel (%p324) target = $region52
        $region51: #{downblock2d_forward.1} parent=11 // pred_region
          _
        $region52: #{downblock2d_forward.1} parent=11 // pred_fallthru
          _
      $region12: #{downblock2d_forward.1} parent=5 // pred_fallthru
        _
      %p327 = scmp.lt.s32.totalorder %s20, 2
      // Predicated region
      $region53: #{downblock2d_forward.1} parent=5 // pred_check
        %p328 = pneg %p327
      $region54: #{downblock2d_forward.1} parent=5 // pred_check_branch
        %330 = sbr.rel (%p328) target = $region56
      $region55: #{downblock2d_forward.1} parent=5 // pred_region
        // Predicated region
        $region57: #{downblock2d_forward.1} parent=55 // pred_check
          %p331 = pneg %p40
        $region58: #{downblock2d_forward.1} parent=55 // pred_check_branch
          %333 = sbr.rel (%p331) target = $region60
        $region59: #{downblock2d_forward.1} parent=55 // pred_region
          %p334 = scmp.lt.s32.totalorder %s20, 1
          %s335 = scalar_select %p334, %s20, 1
          %s336 = smul.addr %s335, 8
          %s337 = smul.addr %s336, 8
          %s338 = scalar_lea.vmem %s0, %s337
        $region60: #{downblock2d_forward.1} parent=55 // pred_fallthru
          _
      $region56: #{downblock2d_forward.1} parent=5 // pred_fallthru
        _
      %p339 = scmp.le.s32.totalorder 1, %s20
      %p340 = scmp.lt.s32.totalorder %s20, 3
      %p341 = pnand %p339, %p340
      %p342 = pneg %p341
      // Predicated region
      $region61: #{downblock2d_forward.1} parent=5 // pred_check
        _
      $region62: #{downblock2d_forward.1} parent=5 // pred_check_branch
        %344 = sbr.rel (%p341) target = $region64
      $region63: #{downblock2d_forward.1} parent=5 // pred_region
        %s345 = ssub.s32 %s20, 1
        %p346 = scmp.lt.s32.totalorder %s25, 1
        %s347 = scalar_select %p346, %s25, 1
        %s348 = smul.addr %s347, 8
        %s349 = smul.addr %s348, 8
        %s350 = scalar_lea.vmem %s0, %s349
        %p351 = pneg %p46
        %p352 = pneg %p43
        %p353 = pneg %p67
        %p354 = pneg %p64
        %p355 = pneg %p88
        %p356 = pneg %p85
        %p357 = pneg %p109
        %p358 = pneg %p106
        %p359 = pneg %p130
        %p360 = pneg %p127
        %p361 = pneg %p151
        %p362 = pneg %p148
        %p363 = pneg %p172
        %p364 = pneg %p169
        %p365 = pneg %p193
        %p366 = pneg %p190
        %p367 = pneg %p214
        %p368 = pneg %p211
        %p369 = pneg %p235
        %p370 = pneg %p232
        %p371 = pneg %p256
        %p372 = pneg %p253
        %p373 = pneg %p282
        %p374 = pneg %p279
        %s375 = sand.u32 %s269, 1
        %s376 = scalar_lea.sflag [#allocation4], %s375
        %s377 = sand.u32 %s269, 1
        %s378 = smul.addr %s377, 64
        %s379 = scalar_lea.vmem [#allocation3], %s378
        %p380 = scmp.lt.s32.totalorder %s25, 1
        %s381 = scalar_select %p380, %s25, 1
        %s382 = smul.addr %s381, 8
        %s383 = smul.addr %s382, 8
        %s384 = scalar_lea.vmem %s0, %s383
        %vm385 = vcmask 261120
        %386 = vst.msk [vmem:[#allocation2] sm:$0xff] %vm385, 0.0
        %387 = vst.msk [vmem:[#allocation2 + $0x8] sm:$0xff] %vm385, 0.0
        %388 = vst.msk [vmem:[#allocation2 + $0x10] sm:$0xff] %vm385, 0.0
        %389 = vst.msk [vmem:[#allocation2 + $0x18] sm:$0xff] %vm385, 0.0
        %390 = vst.msk [vmem:[#allocation2 + $0x20] sm:$0xff] %vm385, 0.0
        %391 = vst.msk [vmem:[#allocation2 + $0x28] sm:$0xff] %vm385, 0.0
        %392 = vst.msk [vmem:[#allocation2 + $0x30] sm:$0xff] %vm385, 0.0
        %393 = vst.msk [vmem:[#allocation2 + $0x38] sm:$0xff] %vm385, 0.0
        %394 = vst.msk [vmem:[#allocation2 + $0x40] sm:$0xff] %vm385, 0.0
        %395 = vst.msk [vmem:[#allocation2 + $0x48] sm:$0xff] %vm385, 0.0
        %396 = vst.msk [vmem:[#allocation2 + $0x50] sm:$0xff] %vm385, 0.0
        %397 = vst.msk [vmem:[#allocation2 + $0x58] sm:$0xff] %vm385, 0.0
        %398 = vst.msk [vmem:[#allocation2 + $0x60] sm:$0xff] %vm385, 0.0
        %v399 = vld [vmem:[%s384] sm:$0xff]
        %v400 = vld [vmem:[%s384 + $0x8] sm:$0xff]
        %v401 = vld [vmem:[%s384 + $0x10] sm:$0xff]
        %v402 = vld [vmem:[%s384 + $0x18] sm:$0xff]
        %v403 = vld [vmem:[%s384 + $0x20] sm:$0xff]
        %v404 = vld [vmem:[%s384 + $0x28] sm:$0xff]
        %v405 = vld [vmem:[%s384 + $0x30] sm:$0xff]
        %v406 = vld [vmem:[%s384 + $0x38] sm:$0xff]
        %v407 = vld [vmem:[%s1] sm:$0xff]
        %v408 = vld [vmem:[%s1 + $0x8] sm:$0xff]
        %v409 = vld [vmem:[%s1 + $0x10] sm:$0xff]
        %v410 = vld [vmem:[%s1 + $0x18] sm:$0xff]
        %v411 = vld [vmem:[%s1 + $0x20] sm:$0xff]
        %v412 = vld [vmem:[%s2] sm:$0x1]
        %v414 = vlaneseq
        %v415 = vshrl.u32 %v414, 7
        %v416 = vsub.s32 0, %v415
        %v417 = vrot.slane %v412, %v416
        %vm419 = vcmask 326656
        %v421 = vsel %vm419, %v399, 0
        %v424 = vsel %vm419, %v400, 0
        %v427 = vsel %vm419, %v401, 0
        %v430 = vsel %vm419, %v402, 0
        %v433 = vsel %vm419, %v403, 0
        %v436 = vsel %vm419, %v404, 0
        %v439 = vsel %vm419, %v405, 0
        %v442 = vsel %vm419, %v406, 0
        %444 = vmatprep.subr.mxu0 0.0
        %445 = vmatpush1.msra.mxu0 0.0
        %446 = vmatprep.subr.mxu0 0.0
        %447 = vmatpush1.msra.mxu0 0.0
        %448 = vmatprep.subr.mxu0 0.0
        %449 = vmatpush1.msra.mxu0 0.0
        %450 = vmatprep.subr.mxu0 0.0
        %451 = vmatpush1.msra.mxu0 0.0
        %452 = vmatprep.subr.mxu0 0.0
        %453 = vmatpush1.msra.mxu0 0.0
        %454 = vmatprep.subr.mxu0 0.0
        %455 = vmatpush1.msra.mxu0 0.0
        %456 = vmatprep.subr.mxu0 0.0
        %457 = vmatpush1.msra.mxu0 0.0
        %458 = vmatprep.subr.mxu0 0.0
        %459 = vmatpush1.msra.mxu0 0.0
        %460 = vmatprep.subr.mxu0 0.0
        %461 = vmatpush1.msra.mxu0 0.0
        %462 = vmatprep.subr.mxu0 0.0
        %463 = vmatpush1.msra.mxu0 0.0
        %464 = vmatprep.subr.mxu0 0.0
        %465 = vmatpush1.msra.mxu0 0.0
        %466 = vmatprep.subr.mxu0 0.0
        %467 = vmatpush1.msra.mxu0 %v411
        %468 = vmatprep.subr.mxu0 0.0
        %469 = vmatpush1.msra.mxu0 %v410
        %470 = vmatprep.subr.mxu0 0.0
        %471 = vmatpush1.msra.mxu0 %v409
        %472 = vmatprep.subr.mxu0 0.0
        %473 = vmatpush1.msra.mxu0 %v408
        %474 = vmatprep.subr.mxu0 0.0
        %475 = vmatpush1.msra.mxu0 %v407
        %476 = vmatprep.subr.mxu0 0.0
        %477 = vmatpush2.msra.mxu0 0.0
        %478 = vmatprep.subr.mxu0 0.0
        %479 = vmatpush2.msra.mxu0 0.0
        %480 = vmatprep.subr.mxu0 0.0
        %481 = vmatpush2.msra.mxu0 0.0
        %482 = vmatprep.subr.mxu0 0.0
        %483 = vmatpush2.msra.mxu0 0.0
        %484 = vmatprep.subr.mxu0 0.0
        %485 = vmatpush2.msra.mxu0 0.0
        %486 = vmatprep.subr.mxu0 0.0
        %487 = vmatpush2.msra.mxu0 0.0
        %488 = vmatprep.subr.mxu0 0.0
        %489 = vmatpush2.msra.mxu0 0.0
        %490 = vmatprep.subr.mxu0 0.0
        %491 = vmatpush2.msra.mxu0 0.0
        %492 = vmatprep.subr.mxu0 0.0
        %493 = vmatpush2.msra.mxu0 0.0
        %494 = vmatprep.subr.mxu0 0.0
        %495 = vmatpush2.msra.mxu0 0.0
        %496 = vmatprep.subr.mxu0 0.0
        %497 = vmatpush2.msra.mxu0 0.0
        %498 = vmatprep.subr.mxu0 0.0
        %499 = vmatpush2.msra.mxu0 0.0
        %500 = vmatprep.subr.mxu0 0.0
        %501 = vmatpush2.msra.mxu0 0.0
        %502 = vmatprep.subr.mxu0 0.0
        %503 = vmatpush2.msra.mxu0 0.0
        %504 = vmatprep.subr.mxu0 0.0
        %505 = vmatpush2.msra.mxu0 0.0
        %506 = vmatprep.subr.mxu0 0.0
        %507 = vmatpush2.msra.mxu0 0.0
        %508 = vmatprep.mubr.f32.mxu0 0.0
        %509 = vmatmul.mubr.f32.gmra.mxu0 %v421
        %v510 = vpop.f32.mrf.mxu0
        %v511 = vadd.f32 %v417, %v510
        %v512 = vpop.f32.mrf.mxu0
        %513 = vmatprep.mubr.f32.mxu0 0.0
        %514 = vmatmul.mubr.f32.gmra.mxu0 %v424
        %v515 = vpop.f32.mrf.mxu0
        %v516 = vadd.f32 %v417, %v515
        %v517 = vpop.f32.mrf.mxu0
        %518 = vmatprep.mubr.f32.mxu0 0.0
        %519 = vmatmul.mubr.f32.gmra.mxu0 %v427
        %v520 = vpop.f32.mrf.mxu0
        %v521 = vadd.f32 %v417, %v520
        %v522 = vpop.f32.mrf.mxu0
        %523 = vmatprep.mubr.f32.mxu0 0.0
        %524 = vmatmul.mubr.f32.gmra.mxu0 %v430
        %v525 = vpop.f32.mrf.mxu0
        %v526 = vadd.f32 %v417, %v525
        %v527 = vpop.f32.mrf.mxu0
        %528 = vmatprep.mubr.f32.mxu0 0.0
        %529 = vmatmul.mubr.f32.gmra.mxu0 %v433
        %v530 = vpop.f32.mrf.mxu0
        %v531 = vadd.f32 %v417, %v530
        %v532 = vpop.f32.mrf.mxu0
        %533 = vmatprep.mubr.f32.mxu0 0.0
        %534 = vmatmul.mubr.f32.gmra.mxu0 %v436
        %v535 = vpop.f32.mrf.mxu0
        %v536 = vadd.f32 %v417, %v535
        %v537 = vpop.f32.mrf.mxu0
        %538 = vmatprep.mubr.f32.mxu0 0.0
        %539 = vmatmul.mubr.f32.gmra.mxu0 %v439
        %v540 = vpop.f32.mrf.mxu0
        %v541 = vadd.f32 %v417, %v540
        %v542 = vpop.f32.mrf.mxu0
        %543 = vmatprep.mubr.f32.mxu0 0.0
        %544 = vmatmul.mubr.f32.gmra.mxu0 %v442
        %v545 = vpop.f32.mrf.mxu0
        %v546 = vadd.f32 %v417, %v545
        %v547 = vpop.f32.mrf.mxu0
        %548 = vdwg.mxu0
        %v549 = vsel %vm385, %v511, 0.0
        %v550 = vsel %vm385, %v516, 0.0
        %v551 = vadd.f32 %v549, %v550
        %v552 = vsel %vm385, %v521, 0.0
        %v553 = vadd.f32 %v551, %v552
        %v554 = vsel %vm385, %v526, 0.0
        %v555 = vadd.f32 %v553, %v554
        %v556 = vsel %vm385, %v531, 0.0
        %v557 = vadd.f32 %v555, %v556
        %v558 = vsel %vm385, %v536, 0.0
        %v559 = vadd.f32 %v557, %v558
        %v560 = vsel %vm385, %v541, 0.0
        %v561 = vadd.f32 %v559, %v560
        %v562 = vsel %vm385, %v546, 0.0
        %v563 = vadd.f32 %v561, %v562
        %v564 = vrot.slane %v563, 4
        %v565 = vadd.f32 %v563, %v564
        %v566 = vrot.slane %v565, 2
        %v567 = vadd.f32 %v565, %v566
        %v568 = vrot.slane %v567, 1
        %v569 = vadd.f32 %v567, %v568
        %v570 = vrcp.pop 64.0
        %v571 = vmul.f32 %v569, %v570
        %v572 = vsub.f32 %v511, %v571
        %v573 = vsub.f32 %v516, %v571
        %v574 = vsub.f32 %v521, %v571
        %v575 = vsub.f32 %v526, %v571
        %v576 = vsub.f32 %v531, %v571
        %v577 = vsub.f32 %v536, %v571
        %v578 = vsub.f32 %v541, %v571
        %v579 = vsub.f32 %v546, %v571
        %v580 = vmul.f32 %v572, %v572
        %v581 = vmul.f32 %v573, %v573
        %v582 = vmul.f32 %v574, %v574
        %v583 = vmul.f32 %v575, %v575
        %v584 = vmul.f32 %v576, %v576
        %v585 = vmul.f32 %v577, %v577
        %v586 = vmul.f32 %v578, %v578
        %v587 = vmul.f32 %v579, %v579
        %v588 = vsel %vm385, %v580, 0.0
        %v589 = vsel %vm385, %v581, 0.0
        %v590 = vadd.f32 %v588, %v589
        %v591 = vsel %vm385, %v582, 0.0
        %v592 = vadd.f32 %v590, %v591
        %v593 = vsel %vm385, %v583, 0.0
        %v594 = vadd.f32 %v592, %v593
        %v595 = vsel %vm385, %v584, 0.0
        %v596 = vadd.f32 %v594, %v595
        %v597 = vsel %vm385, %v585, 0.0
        %v598 = vadd.f32 %v596, %v597
        %v599 = vsel %vm385, %v586, 0.0
        %v600 = vadd.f32 %v598, %v599
        %v601 = vsel %vm385, %v587, 0.0
        %v602 = vadd.f32 %v600, %v601
        %v603 = vrot.slane %v602, 4
        %v604 = vadd.f32 %v602, %v603
        %v605 = vrot.slane %v604, 2
        %v606 = vadd.f32 %v604, %v605
        %v607 = vrot.slane %v606, 1
        %v608 = vadd.f32 %v606, %v607
        %v609 = vmul.f32 %v608, %v570
        %v610 = vadd.f32 %v609, 1e-06
        %v611 = vrsqrt.pop %v610
        %v612 = vmul.f32 %v572, %v611
        %v613 = vmul.f32 %v573, %v611
        %v614 = vmul.f32 %v574, %v611
        %v615 = vmul.f32 %v575, %v611
        %v616 = vmul.f32 %v576, %v611
        %v617 = vmul.f32 %v577, %v611
        %v618 = vmul.f32 %v578, %v611
        %v619 = vmul.f32 %v579, %v611
        %v620 = vld [vmem:[%s3] sm:$0x1]
        %v622 = vlaneseq
        %v623 = vshrl.u32 %v622, 7
        %v624 = vsub.s32 0, %v623
        %v625 = vrot.slane %v620, %v624
        %v627 = vmul.f32 %v612, %v625
        %v628 = vmul.f32 %v613, %v625
        %v629 = vmul.f32 %v614, %v625
        %v630 = vmul.f32 %v615, %v625
        %v631 = vmul.f32 %v616, %v625
        %v632 = vmul.f32 %v617, %v625
        %v633 = vmul.f32 %v618, %v625
        %v634 = vmul.f32 %v619, %v625
        %v635 = vld [vmem:[%s4] sm:$0x1]
        %v637 = vlaneseq
        %v638 = vshrl.u32 %v637, 7
        %v639 = vsub.s32 0, %v638
        %v640 = vrot.slane %v635, %v639
        %v642 = vadd.f32 %v627, %v640
        %v643 = vadd.f32 %v628, %v640
        %v644 = vadd.f32 %v629, %v640
        %v645 = vadd.f32 %v630, %v640
        %v646 = vadd.f32 %v631, %v640
        %v647 = vadd.f32 %v632, %v640
        %v648 = vadd.f32 %v633, %v640
        %v649 = vadd.f32 %v634, %v640
        %v650 = vxor.u32 %v642, 2147483648
        %v651 = vxor.u32 %v643, 2147483648
        %v652 = vxor.u32 %v644, 2147483648
        %v653 = vxor.u32 %v645, 2147483648
        %v654 = vxor.u32 %v646, 2147483648
        %v655 = vxor.u32 %v647, 2147483648
        %v656 = vxor.u32 %v648, 2147483648
        %v657 = vxor.u32 %v649, 2147483648
        %v658 = vmul.f32 %v650, 1.442695
        %v659 = vpow.pop %v658
        %v660 = vmul.f32 %v651, 1.442695
        %v661 = vpow.pop %v660
        %v662 = vmul.f32 %v652, 1.442695
        %v663 = vpow.pop %v662
        %v664 = vmul.f32 %v653, 1.442695
        %v665 = vpow.pop %v664
        %v666 = vmul.f32 %v654, 1.442695
        %v667 = vpow.pop %v666
        %v668 = vmul.f32 %v655, 1.442695
        %v669 = vpow.pop %v668
        %v670 = vmul.f32 %v656, 1.442695
        %v671 = vpow.pop %v670
        %v672 = vmul.f32 %v657, 1.442695
        %v673 = vpow.pop %v672
        %v674 = vadd.f32 %v659, 1.0
        %v675 = vadd.f32 %v661, 1.0
        %v676 = vadd.f32 %v663, 1.0
        %v677 = vadd.f32 %v665, 1.0
        %v678 = vadd.f32 %v667, 1.0
        %v679 = vadd.f32 %v669, 1.0
        %v680 = vadd.f32 %v671, 1.0
        %v681 = vadd.f32 %v673, 1.0
        %v682 = vrcp.pop %v674
        %v683 = vmul.f32 1.0, %v682
        %v684 = vrcp.pop %v675
        %v685 = vmul.f32 1.0, %v684
        %v686 = vrcp.pop %v676
        %v687 = vmul.f32 1.0, %v686
        %v688 = vrcp.pop %v677
        %v689 = vmul.f32 1.0, %v688
        %v690 = vrcp.pop %v678
        %v691 = vmul.f32 1.0, %v690
        %v692 = vrcp.pop %v679
        %v693 = vmul.f32 1.0, %v692
        %v694 = vrcp.pop %v680
        %v695 = vmul.f32 1.0, %v694
        %v696 = vrcp.pop %v681
        %v697 = vmul.f32 1.0, %v696
        %v698 = vmul.f32 %v642, %v683
        %v699 = vmul.f32 %v643, %v685
        %v700 = vmul.f32 %v644, %v687
        %v701 = vmul.f32 %v645, %v689
        %v702 = vmul.f32 %v646, %v691
        %v703 = vmul.f32 %v647, %v693
        %v704 = vmul.f32 %v648, %v695
        %v705 = vmul.f32 %v649, %v697
        %706 = vst.msk [vmem:[#allocation2 + $0xb] sm:$0xff] %vm385, %v698
        %vm707 = vcmask 261127
        %708 = vst.msk [vmem:[#allocation2 + $0x3] sm:$0x80] %vm707, %v698
        %vm709 = vcmask 253952
        %710 = vst.msk [vmem:[#allocation2 + $0x13] sm:$0x1] %vm709, %v698
        %711 = vst.msk [vmem:[#allocation2 + $0x15] sm:$0xff] %vm385, %v699
        %712 = vst.msk [vmem:[#allocation2 + $0xd] sm:$0x80] %vm707, %v699
        %713 = vst.msk [vmem:[#allocation2 + $0x1d] sm:$0x1] %vm709, %v699
        %714 = vst.msk [vmem:[#allocation2 + $0x1f] sm:$0xff] %vm385, %v700
        %715 = vst.msk [vmem:[#allocation2 + $0x17] sm:$0x80] %vm707, %v700
        %716 = vst.msk [vmem:[#allocation2 + $0x27] sm:$0x1] %vm709, %v700
        %717 = vst.msk [vmem:[#allocation2 + $0x29] sm:$0xff] %vm385, %v701
        %718 = vst.msk [vmem:[#allocation2 + $0x21] sm:$0x80] %vm707, %v701
        %719 = vst.msk [vmem:[#allocation2 + $0x31] sm:$0x1] %vm709, %v701
        %720 = vst.msk [vmem:[#allocation2 + $0x33] sm:$0xff] %vm385, %v702
        %721 = vst.msk [vmem:[#allocation2 + $0x2b] sm:$0x80] %vm707, %v702
        %722 = vst.msk [vmem:[#allocation2 + $0x3b] sm:$0x1] %vm709, %v702
        %723 = vst.msk [vmem:[#allocation2 + $0x3d] sm:$0xff] %vm385, %v703
        %724 = vst.msk [vmem:[#allocation2 + $0x35] sm:$0x80] %vm707, %v703
        %725 = vst.msk [vmem:[#allocation2 + $0x45] sm:$0x1] %vm709, %v703
        %726 = vst.msk [vmem:[#allocation2 + $0x47] sm:$0xff] %vm385, %v704
        %727 = vst.msk [vmem:[#allocation2 + $0x3f] sm:$0x80] %vm707, %v704
        %728 = vst.msk [vmem:[#allocation2 + $0x4f] sm:$0x1] %vm709, %v704
        %729 = vst.msk [vmem:[#allocation2 + $0x51] sm:$0xff] %vm385, %v705
        %730 = vst.msk [vmem:[#allocation2 + $0x49] sm:$0x80] %vm707, %v705
        %731 = vst.msk [vmem:[#allocation2 + $0x59] sm:$0x1] %vm709, %v705
        %v732 = vld [vmem:[#allocation2] sm:$0xff]
        %v733 = vld [vmem:[#allocation2 + $0x8] sm:$0xff]
        %v734 = vld [vmem:[#allocation2 + $0x10] sm:$0xff]
        %v735 = vld [vmem:[#allocation2 + $0x18] sm:$0xff]
        %v736 = vld [vmem:[#allocation2 + $0x20] sm:$0xff]
        %v737 = vld [vmem:[#allocation2 + $0x28] sm:$0xff]
        %v738 = vld [vmem:[#allocation2 + $0x30] sm:$0xff]
        %v739 = vld [vmem:[#allocation2 + $0x38] sm:$0xff]
        %v740 = vld [vmem:[#allocation2 + $0x40] sm:$0xff]
        %v741 = vld [vmem:[#allocation2 + $0x48] sm:$0xff]
        %v742 = vld [vmem:[%s5] sm:$0xff]
        %v743 = vld [vmem:[%s5 + $0x8] sm:$0xff]
        %v744 = vld [vmem:[%s5 + $0x10] sm:$0xff]
        %v745 = vld [vmem:[%s5 + $0x18] sm:$0xff]
        %v746 = vld [vmem:[#allocation2 + $0x1] sm:$0xff]
        %v747 = vld [vmem:[#allocation2 + $0x9] sm:$0xff]
        %v748 = vld [vmem:[#allocation2 + $0x11] sm:$0xff]
        %v749 = vld [vmem:[#allocation2 + $0x19] sm:$0xff]
        %v750 = vld [vmem:[#allocation2 + $0x21] sm:$0xff]
        %v751 = vld [vmem:[#allocation2 + $0x29] sm:$0xff]
        %v752 = vld [vmem:[#allocation2 + $0x31] sm:$0xff]
        %v753 = vld [vmem:[#allocation2 + $0x39] sm:$0xff]
        %v754 = vld [vmem:[#allocation2 + $0x41] sm:$0xff]
        %v755 = vld [vmem:[#allocation2 + $0x49] sm:$0xff]
        %v756 = vld [vmem:[%s5 + $0x20] sm:$0xff]
        %v757 = vld [vmem:[%s5 + $0x28] sm:$0xff]
        %v758 = vld [vmem:[%s5 + $0x30] sm:$0xff]
        %v759 = vld [vmem:[%s5 + $0x38] sm:$0xff]
        %v761 = vsel %vm385, %v746, 0
        %v764 = vsel %vm385, %v747, 0
        %v767 = vsel %vm385, %v748, 0
        %v770 = vsel %vm385, %v749, 0
        %v773 = vsel %vm385, %v750, 0
        %v776 = vsel %vm385, %v751, 0
        %v779 = vsel %vm385, %v752, 0
        %v782 = vsel %vm385, %v753, 0
        %v785 = vsel %vm385, %v754, 0
        %v788 = vsel %vm385, %v755, 0
        %790 = vmatprep.subr.mxu0 0.0
        %791 = vmatpush1.msra.mxu0 0.0
        %792 = vmatprep.subr.mxu0 0.0
        %793 = vmatpush1.msra.mxu0 0.0
        %794 = vmatprep.subr.mxu0 0.0
        %795 = vmatpush1.msra.mxu0 0.0
        %796 = vmatprep.subr.mxu0 0.0
        %797 = vmatpush1.msra.mxu0 0.0
        %798 = vmatprep.subr.mxu0 0.0
        %799 = vmatpush1.msra.mxu0 0.0
        %800 = vmatprep.subr.mxu0 0.0
        %801 = vmatpush1.msra.mxu0 0.0
        %802 = vmatprep.subr.mxu0 0.0
        %803 = vmatpush1.msra.mxu0 0.0
        %804 = vmatprep.subr.mxu0 0.0
        %805 = vmatpush1.msra.mxu0 0.0
        %806 = vmatprep.subr.mxu0 0.0
        %807 = vmatpush1.msra.mxu0 0.0
        %808 = vmatprep.subr.mxu0 0.0
        %809 = vmatpush1.msra.mxu0 0.0
        %810 = vmatprep.subr.mxu0 0.0
        %811 = vmatpush1.msra.mxu0 0.0
        %812 = vmatprep.subr.mxu0 0.0
        %813 = vmatpush1.msra.mxu0 0.0
        %814 = vmatprep.subr.mxu0 0.0
        %815 = vmatpush1.msra.mxu0 %v759
        %816 = vmatprep.subr.mxu0 0.0
        %817 = vmatpush1.msra.mxu0 %v758
        %818 = vmatprep.subr.mxu0 0.0
        %819 = vmatpush1.msra.mxu0 %v757
        %820 = vmatprep.subr.mxu0 0.0
        %821 = vmatpush1.msra.mxu0 %v756
        %822 = vmatprep.subr.mxu0 0.0
        %823 = vmatpush2.msra.mxu0 0.0
        %824 = vmatprep.subr.mxu0 0.0
        %825 = vmatpush2.msra.mxu0 0.0
        %826 = vmatprep.subr.mxu0 0.0
        %827 = vmatpush2.msra.mxu0 0.0
        %828 = vmatprep.subr.mxu0 0.0
        %829 = vmatpush2.msra.mxu0 0.0
        %830 = vmatprep.subr.mxu0 0.0
        %831 = vmatpush2.msra.mxu0 0.0
        %832 = vmatprep.subr.mxu0 0.0
        %833 = vmatpush2.msra.mxu0 0.0
        %834 = vmatprep.subr.mxu0 0.0
        %835 = vmatpush2.msra.mxu0 0.0
        %836 = vmatprep.subr.mxu0 0.0
        %837 = vmatpush2.msra.mxu0 0.0
        %838 = vmatprep.subr.mxu0 0.0
        %839 = vmatpush2.msra.mxu0 0.0
        %840 = vmatprep.subr.mxu0 0.0
        %841 = vmatpush2.msra.mxu0 0.0
        %842 = vmatprep.subr.mxu0 0.0
        %843 = vmatpush2.msra.mxu0 0.0
        %844 = vmatprep.subr.mxu0 0.0
        %845 = vmatpush2.msra.mxu0 0.0
        %846 = vmatprep.subr.mxu0 0.0
        %847 = vmatpush2.msra.mxu0 0.0
        %848 = vmatprep.subr.mxu0 0.0
        %849 = vmatpush2.msra.mxu0 0.0
        %850 = vmatprep.subr.mxu0 0.0
        %851 = vmatpush2.msra.mxu0 0.0
        %852 = vmatprep.subr.mxu0 0.0
        %853 = vmatpush2.msra.mxu0 0.0
        %854 = vmatprep.mubr.f32.mxu0 0.0
        %855 = vmatmul.mubr.f32.gmra.mxu0 %v761
        %v856 = vpop.f32.mrf.mxu0
        %v857 = vadd.f32 0.0, %v856
        %v858 = vpop.f32.mrf.mxu0
        %859 = vmatprep.mubr.f32.mxu0 0.0
        %860 = vmatmul.mubr.f32.gmra.mxu0 %v764
        %v861 = vpop.f32.mrf.mxu0
        %v862 = vadd.f32 0.0, %v861
        %v863 = vpop.f32.mrf.mxu0
        %864 = vmatprep.mubr.f32.mxu0 0.0
        %865 = vmatmul.mubr.f32.gmra.mxu0 %v767
        %v866 = vpop.f32.mrf.mxu0
        %v867 = vadd.f32 0.0, %v866
        %v868 = vpop.f32.mrf.mxu0
        %869 = vmatprep.mubr.f32.mxu0 0.0
        %870 = vmatmul.mubr.f32.gmra.mxu0 %v770
        %v871 = vpop.f32.mrf.mxu0
        %v872 = vadd.f32 0.0, %v871
        %v873 = vpop.f32.mrf.mxu0
        %874 = vmatprep.mubr.f32.mxu0 0.0
        %875 = vmatmul.mubr.f32.gmra.mxu0 %v773
        %v876 = vpop.f32.mrf.mxu0
        %v877 = vadd.f32 0.0, %v876
        %v878 = vpop.f32.mrf.mxu0
        %879 = vmatprep.mubr.f32.mxu0 0.0
        %880 = vmatmul.mubr.f32.gmra.mxu0 %v776
        %v881 = vpop.f32.mrf.mxu0
        %v882 = vadd.f32 0.0, %v881
        %v883 = vpop.f32.mrf.mxu0
        %884 = vmatprep.mubr.f32.mxu0 0.0
        %885 = vmatmul.mubr.f32.gmra.mxu0 %v779
        %v886 = vpop.f32.mrf.mxu0
        %v887 = vadd.f32 0.0, %v886
        %v888 = vpop.f32.mrf.mxu0
        %889 = vmatprep.mubr.f32.mxu0 0.0
        %890 = vmatmul.mubr.f32.gmra.mxu0 %v782
        %v891 = vpop.f32.mrf.mxu0
        %v892 = vadd.f32 0.0, %v891
        %v893 = vpop.f32.mrf.mxu0
        %894 = vmatprep.mubr.f32.mxu0 0.0
        %895 = vmatmul.mubr.f32.gmra.mxu0 %v785
        %v896 = vpop.f32.mrf.mxu0
        %v897 = vadd.f32 0.0, %v896
        %v898 = vpop.f32.mrf.mxu0
        %899 = vmatprep.mubr.f32.mxu0 0.0
        %900 = vmatmul.mubr.f32.gmra.mxu0 %v788
        %v901 = vpop.f32.mrf.mxu0
        %v902 = vadd.f32 0.0, %v901
        %v903 = vpop.f32.mrf.mxu0
        %904 = vdwg.mxu0
        %v906 = vsel %vm385, %v732, 0
        %v909 = vsel %vm385, %v733, 0
        %v912 = vsel %vm385, %v734, 0
        %v915 = vsel %vm385, %v735, 0
        %v918 = vsel %vm385, %v736, 0
        %v921 = vsel %vm385, %v737, 0
        %v924 = vsel %vm385, %v738, 0
        %v927 = vsel %vm385, %v739, 0
        %v930 = vsel %vm385, %v740, 0
        %v933 = vsel %vm385, %v741, 0
        %935 = vmatprep.subr.mxu0 0.0
        %936 = vmatpush1.msra.mxu0 0.0
        %937 = vmatprep.subr.mxu0 0.0
        %938 = vmatpush1.msra.mxu0 0.0
        %939 = vmatprep.subr.mxu0 0.0
        %940 = vmatpush1.msra.mxu0 0.0
        %941 = vmatprep.subr.mxu0 0.0
        %942 = vmatpush1.msra.mxu0 0.0
        %943 = vmatprep.subr.mxu0 0.0
        %944 = vmatpush1.msra.mxu0 0.0
        %945 = vmatprep.subr.mxu0 0.0
        %946 = vmatpush1.msra.mxu0 0.0
        %947 = vmatprep.subr.mxu0 0.0
        %948 = vmatpush1.msra.mxu0 0.0
        %949 = vmatprep.subr.mxu0 0.0
        %950 = vmatpush1.msra.mxu0 0.0
        %951 = vmatprep.subr.mxu0 0.0
        %952 = vmatpush1.msra.mxu0 0.0
        %953 = vmatprep.subr.mxu0 0.0
        %954 = vmatpush1.msra.mxu0 0.0
        %955 = vmatprep.subr.mxu0 0.0
        %956 = vmatpush1.msra.mxu0 0.0
        %957 = vmatprep.subr.mxu0 0.0
        %958 = vmatpush1.msra.mxu0 0.0
        %959 = vmatprep.subr.mxu0 0.0
        %960 = vmatpush1.msra.mxu0 %v745
        %961 = vmatprep.subr.mxu0 0.0
        %962 = vmatpush1.msra.mxu0 %v744
        %963 = vmatprep.subr.mxu0 0.0
        %964 = vmatpush1.msra.mxu0 %v743
        %965 = vmatprep.subr.mxu0 0.0
        %966 = vmatpush1.msra.mxu0 %v742
        %967 = vmatprep.subr.mxu0 0.0
        %968 = vmatpush2.msra.mxu0 0.0
        %969 = vmatprep.subr.mxu0 0.0
        %970 = vmatpush2.msra.mxu0 0.0
        %971 = vmatprep.subr.mxu0 0.0
        %972 = vmatpush2.msra.mxu0 0.0
        %973 = vmatprep.subr.mxu0 0.0
        %974 = vmatpush2.msra.mxu0 0.0
        %975 = vmatprep.subr.mxu0 0.0
        %976 = vmatpush2.msra.mxu0 0.0
        %977 = vmatprep.subr.mxu0 0.0
        %978 = vmatpush2.msra.mxu0 0.0
        %979 = vmatprep.subr.mxu0 0.0
        %980 = vmatpush2.msra.mxu0 0.0
        %981 = vmatprep.subr.mxu0 0.0
        %982 = vmatpush2.msra.mxu0 0.0
        %983 = vmatprep.subr.mxu0 0.0
        %984 = vmatpush2.msra.mxu0 0.0
        %985 = vmatprep.subr.mxu0 0.0
        %986 = vmatpush2.msra.mxu0 0.0
        %987 = vmatprep.subr.mxu0 0.0
        %988 = vmatpush2.msra.mxu0 0.0
        %989 = vmatprep.subr.mxu0 0.0
        %990 = vmatpush2.msra.mxu0 0.0
        %991 = vmatprep.subr.mxu0 0.0
        %992 = vmatpush2.msra.mxu0 0.0
        %993 = vmatprep.subr.mxu0 0.0
        %994 = vmatpush2.msra.mxu0 0.0
        %995 = vmatprep.subr.mxu0 0.0
        %996 = vmatpush2.msra.mxu0 0.0
        %997 = vmatprep.subr.mxu0 0.0
        %998 = vmatpush2.msra.mxu0 0.0
        %999 = vmatprep.mubr.f32.mxu0 0.0
        %1000 = vmatmul.mubr.f32.gmra.mxu0 %v906
        %v1001 = vpop.f32.mrf.mxu0
        %v1002 = vadd.f32 %v857, %v1001
        %v1003 = vpop.f32.mrf.mxu0
        %1004 = vmatprep.mubr.f32.mxu0 0.0
        %1005 = vmatmul.mubr.f32.gmra.mxu0 %v909
        %v1006 = vpop.f32.mrf.mxu0
        %v1007 = vadd.f32 %v862, %v1006
        %v1008 = vpop.f32.mrf.mxu0
        %1009 = vmatprep.mubr.f32.mxu0 0.0
        %1010 = vmatmul.mubr.f32.gmra.mxu0 %v912
        %v1011 = vpop.f32.mrf.mxu0
        %v1012 = vadd.f32 %v867, %v1011
        %v1013 = vpop.f32.mrf.mxu0
        %1014 = vmatprep.mubr.f32.mxu0 0.0
        %1015 = vmatmul.mubr.f32.gmra.mxu0 %v915
        %v1016 = vpop.f32.mrf.mxu0
        %v1017 = vadd.f32 %v872, %v1016
        %v1018 = vpop.f32.mrf.mxu0
        %1019 = vmatprep.mubr.f32.mxu0 0.0
        %1020 = vmatmul.mubr.f32.gmra.mxu0 %v918
        %v1021 = vpop.f32.mrf.mxu0
        %v1022 = vadd.f32 %v877, %v1021
        %v1023 = vpop.f32.mrf.mxu0
        %1024 = vmatprep.mubr.f32.mxu0 0.0
        %1025 = vmatmul.mubr.f32.gmra.mxu0 %v921
        %v1026 = vpop.f32.mrf.mxu0
        %v1027 = vadd.f32 %v882, %v1026
        %v1028 = vpop.f32.mrf.mxu0
        %1029 = vmatprep.mubr.f32.mxu0 0.0
        %1030 = vmatmul.mubr.f32.gmra.mxu0 %v924
        %v1031 = vpop.f32.mrf.mxu0
        %v1032 = vadd.f32 %v887, %v1031
        %v1033 = vpop.f32.mrf.mxu0
        %1034 = vmatprep.mubr.f32.mxu0 0.0
        %1035 = vmatmul.mubr.f32.gmra.mxu0 %v927
        %v1036 = vpop.f32.mrf.mxu0
        %v1037 = vadd.f32 %v892, %v1036
        %v1038 = vpop.f32.mrf.mxu0
        %1039 = vmatprep.mubr.f32.mxu0 0.0
        %1040 = vmatmul.mubr.f32.gmra.mxu0 %v930
        %v1041 = vpop.f32.mrf.mxu0
        %v1042 = vadd.f32 %v897, %v1041
        %v1043 = vpop.f32.mrf.mxu0
        %1044 = vmatprep.mubr.f32.mxu0 0.0
        %1045 = vmatmul.mubr.f32.gmra.mxu0 %v933
        %v1046 = vpop.f32.mrf.mxu0
        %v1047 = vadd.f32 %v902, %v1046
        %v1048 = vpop.f32.mrf.mxu0
        %1049 = vdwg.mxu0
        %v1050 = vld [vmem:[#allocation2 + $0x2] sm:$0xff]
        %v1051 = vld [vmem:[#allocation2 + $0xa] sm:$0xff]
        %v1052 = vld [vmem:[#allocation2 + $0x12] sm:$0xff]
        %v1053 = vld [vmem:[#allocation2 + $0x1a] sm:$0xff]
        %v1054 = vld [vmem:[#allocation2 + $0x22] sm:$0xff]
        %v1055 = vld [vmem:[#allocation2 + $0x2a] sm:$0xff]
        %v1056 = vld [vmem:[#allocation2 + $0x32] sm:$0xff]
        %v1057 = vld [vmem:[#allocation2 + $0x3a] sm:$0xff]
        %v1058 = vld [vmem:[#allocation2 + $0x42] sm:$0xff]
        %v1059 = vld [vmem:[#allocation2 + $0x4a] sm:$0xff]
        %v1060 = vld [vmem:[%s5 + $0x40] sm:$0xff]
        %v1061 = vld [vmem:[%s5 + $0x48] sm:$0xff]
        %v1062 = vld [vmem:[%s5 + $0x50] sm:$0xff]
        %v1063 = vld [vmem:[%s5 + $0x58] sm:$0xff]
        %v1065 = vsel %vm385, %v1050, 0
        %v1068 = vsel %vm385, %v1051, 0
        %v1071 = vsel %vm385, %v1052, 0
        %v1074 = vsel %vm385, %v1053, 0
        %v1077 = vsel %vm385, %v1054, 0
        %v1080 = vsel %vm385, %v1055, 0
        %v1083 = vsel %vm385, %v1056, 0
        %v1086 = vsel %vm385, %v1057, 0
        %v1089 = vsel %vm385, %v1058, 0
        %v1092 = vsel %vm385, %v1059, 0
        %1094 = vmatprep.subr.mxu0 0.0
        %1095 = vmatpush1.msra.mxu0 0.0
        %1096 = vmatprep.subr.mxu0 0.0
        %1097 = vmatpush1.msra.mxu0 0.0
        %1098 = vmatprep.subr.mxu0 0.0
        %1099 = vmatpush1.msra.mxu0 0.0
        %1100 = vmatprep.subr.mxu0 0.0
        %1101 = vmatpush1.msra.mxu0 0.0
        %1102 = vmatprep.subr.mxu0 0.0
        %1103 = vmatpush1.msra.mxu0 0.0
        %1104 = vmatprep.subr.mxu0 0.0
        %1105 = vmatpush1.msra.mxu0 0.0
        %1106 = vmatprep.subr.mxu0 0.0
        %1107 = vmatpush1.msra.mxu0 0.0
        %1108 = vmatprep.subr.mxu0 0.0
        %1109 = vmatpush1.msra.mxu0 0.0
        %1110 = vmatprep.subr.mxu0 0.0
        %1111 = vmatpush1.msra.mxu0 0.0
        %1112 = vmatprep.subr.mxu0 0.0
        %1113 = vmatpush1.msra.mxu0 0.0
        %1114 = vmatprep.subr.mxu0 0.0
        %1115 = vmatpush1.msra.mxu0 0.0
        %1116 = vmatprep.subr.mxu0 0.0
        %1117 = vmatpush1.msra.mxu0 0.0
        %1118 = vmatprep.subr.mxu0 0.0
        %1119 = vmatpush1.msra.mxu0 %v1063
        %1120 = vmatprep.subr.mxu0 0.0
        %1121 = vmatpush1.msra.mxu0 %v1062
        %1122 = vmatprep.subr.mxu0 0.0
        %1123 = vmatpush1.msra.mxu0 %v1061
        %1124 = vmatprep.subr.mxu0 0.0
        %1125 = vmatpush1.msra.mxu0 %v1060
        %1126 = vmatprep.subr.mxu0 0.0
        %1127 = vmatpush2.msra.mxu0 0.0
        %1128 = vmatprep.subr.mxu0 0.0
        %1129 = vmatpush2.msra.mxu0 0.0
        %1130 = vmatprep.subr.mxu0 0.0
        %1131 = vmatpush2.msra.mxu0 0.0
        %1132 = vmatprep.subr.mxu0 0.0
        %1133 = vmatpush2.msra.mxu0 0.0
        %1134 = vmatprep.subr.mxu0 0.0
        %1135 = vmatpush2.msra.mxu0 0.0
        %1136 = vmatprep.subr.mxu0 0.0
        %1137 = vmatpush2.msra.mxu0 0.0
        %1138 = vmatprep.subr.mxu0 0.0
        %1139 = vmatpush2.msra.mxu0 0.0
        %1140 = vmatprep.subr.mxu0 0.0
        %1141 = vmatpush2.msra.mxu0 0.0
        %1142 = vmatprep.subr.mxu0 0.0
        %1143 = vmatpush2.msra.mxu0 0.0
        %1144 = vmatprep.subr.mxu0 0.0
        %1145 = vmatpush2.msra.mxu0 0.0
        %1146 = vmatprep.subr.mxu0 0.0
        %1147 = vmatpush2.msra.mxu0 0.0
        %1148 = vmatprep.subr.mxu0 0.0
        %1149 = vmatpush2.msra.mxu0 0.0
        %1150 = vmatprep.subr.mxu0 0.0
        %1151 = vmatpush2.msra.mxu0 0.0
        %1152 = vmatprep.subr.mxu0 0.0
        %1153 = vmatpush2.msra.mxu0 0.0
        %1154 = vmatprep.subr.mxu0 0.0
        %1155 = vmatpush2.msra.mxu0 0.0
        %1156 = vmatprep.subr.mxu0 0.0
        %1157 = vmatpush2.msra.mxu0 0.0
        %1158 = vmatprep.mubr.f32.mxu0 0.0
        %1159 = vmatmul.mubr.f32.gmra.mxu0 %v1065
        %v1160 = vpop.f32.mrf.mxu0
        %v1161 = vadd.f32 0.0, %v1160
        %v1162 = vpop.f32.mrf.mxu0
        %1163 = vmatprep.mubr.f32.mxu0 0.0
        %1164 = vmatmul.mubr.f32.gmra.mxu0 %v1068
        %v1165 = vpop.f32.mrf.mxu0
        %v1166 = vadd.f32 0.0, %v1165
        %v1167 = vpop.f32.mrf.mxu0
        %1168 = vmatprep.mubr.f32.mxu0 0.0
        %1169 = vmatmul.mubr.f32.gmra.mxu0 %v1071
        %v1170 = vpop.f32.mrf.mxu0
        %v1171 = vadd.f32 0.0, %v1170
        %v1172 = vpop.f32.mrf.mxu0
        %1173 = vmatprep.mubr.f32.mxu0 0.0
        %1174 = vmatmul.mubr.f32.gmra.mxu0 %v1074
        %v1175 = vpop.f32.mrf.mxu0
        %v1176 = vadd.f32 0.0, %v1175
        %v1177 = vpop.f32.mrf.mxu0
        %1178 = vmatprep.mubr.f32.mxu0 0.0
        %1179 = vmatmul.mubr.f32.gmra.mxu0 %v1077
        %v1180 = vpop.f32.mrf.mxu0
        %v1181 = vadd.f32 0.0, %v1180
        %v1182 = vpop.f32.mrf.mxu0
        %1183 = vmatprep.mubr.f32.mxu0 0.0
        %1184 = vmatmul.mubr.f32.gmra.mxu0 %v1080
        %v1185 = vpop.f32.mrf.mxu0
        %v1186 = vadd.f32 0.0, %v1185
        %v1187 = vpop.f32.mrf.mxu0
        %1188 = vmatprep.mubr.f32.mxu0 0.0
        %1189 = vmatmul.mubr.f32.gmra.mxu0 %v1083
        %v1190 = vpop.f32.mrf.mxu0
        %v1191 = vadd.f32 0.0, %v1190
        %v1192 = vpop.f32.mrf.mxu0
        %1193 = vmatprep.mubr.f32.mxu0 0.0
        %1194 = vmatmul.mubr.f32.gmra.mxu0 %v1086
        %v1195 = vpop.f32.mrf.mxu0
        %v1196 = vadd.f32 0.0, %v1195
        %v1197 = vpop.f32.mrf.mxu0
        %1198 = vmatprep.mubr.f32.mxu0 0.0
        %1199 = vmatmul.mubr.f32.gmra.mxu0 %v1089
        %v1200 = vpop.f32.mrf.mxu0
        %v1201 = vadd.f32 0.0, %v1200
        %v1202 = vpop.f32.mrf.mxu0
        %1203 = vmatprep.mubr.f32.mxu0 0.0
        %1204 = vmatmul.mubr.f32.gmra.mxu0 %v1092
        %v1205 = vpop.f32.mrf.mxu0
        %v1206 = vadd.f32 0.0, %v1205
        %v1207 = vpop.f32.mrf.mxu0
        %1208 = vdwg.mxu0
        %v1209 = vadd.f32 %v1002, %v1161
        %v1210 = vadd.f32 %v1007, %v1166
        %v1211 = vadd.f32 %v1012, %v1171
        %v1212 = vadd.f32 %v1017, %v1176
        %v1213 = vadd.f32 %v1022, %v1181
        %v1214 = vadd.f32 %v1027, %v1186
        %v1215 = vadd.f32 %v1032, %v1191
        %v1216 = vadd.f32 %v1037, %v1196
        %v1217 = vadd.f32 %v1042, %v1201
        %v1218 = vadd.f32 %v1047, %v1206
        %v1219 = vld [vmem:[#allocation2 + $0xa] sm:$0xff]
        %v1220 = vld [vmem:[#allocation2 + $0x12] sm:$0xff]
        %v1221 = vld [vmem:[#allocation2 + $0x1a] sm:$0xff]
        %v1222 = vld [vmem:[#allocation2 + $0x22] sm:$0xff]
        %v1223 = vld [vmem:[#allocation2 + $0x2a] sm:$0xff]
        %v1224 = vld [vmem:[#allocation2 + $0x32] sm:$0xff]
        %v1225 = vld [vmem:[#allocation2 + $0x3a] sm:$0xff]
        %v1226 = vld [vmem:[#allocation2 + $0x42] sm:$0xff]
        %v1227 = vld [vmem:[#allocation2 + $0x4a] sm:$0xff]
        %v1228 = vld [vmem:[#allocation2 + $0x52] sm:$0xff]
        %v1229 = vld [vmem:[%s5 + $0x60] sm:$0xff]
        %v1230 = vld [vmem:[%s5 + $0x68] sm:$0xff]
        %v1231 = vld [vmem:[%s5 + $0x70] sm:$0xff]
        %v1232 = vld [vmem:[%s5 + $0x78] sm:$0xff]
        %v1234 = vsel %vm385, %v1219, 0
        %v1237 = vsel %vm385, %v1220, 0
        %v1240 = vsel %vm385, %v1221, 0
        %v1243 = vsel %vm385, %v1222, 0
        %v1246 = vsel %vm385, %v1223, 0
        %v1249 = vsel %vm385, %v1224, 0
        %v1252 = vsel %vm385, %v1225, 0
        %v1255 = vsel %vm385, %v1226, 0
        %v1258 = vsel %vm385, %v1227, 0
        %v1261 = vsel %vm385, %v1228, 0
        %1263 = vmatprep.subr.mxu0 0.0
        %1264 = vmatpush1.msra.mxu0 0.0
        %1265 = vmatprep.subr.mxu0 0.0
        %1266 = vmatpush1.msra.mxu0 0.0
        %1267 = vmatprep.subr.mxu0 0.0
        %1268 = vmatpush1.msra.mxu0 0.0
        %1269 = vmatprep.subr.mxu0 0.0
        %1270 = vmatpush1.msra.mxu0 0.0
        %1271 = vmatprep.subr.mxu0 0.0
        %1272 = vmatpush1.msra.mxu0 0.0
        %1273 = vmatprep.subr.mxu0 0.0
        %1274 = vmatpush1.msra.mxu0 0.0
        %1275 = vmatprep.subr.mxu0 0.0
        %1276 = vmatpush1.msra.mxu0 0.0
        %1277 = vmatprep.subr.mxu0 0.0
        %1278 = vmatpush1.msra.mxu0 0.0
        %1279 = vmatprep.subr.mxu0 0.0
        %1280 = vmatpush1.msra.mxu0 0.0
        %1281 = vmatprep.subr.mxu0 0.0
        %1282 = vmatpush1.msra.mxu0 0.0
        %1283 = vmatprep.subr.mxu0 0.0
        %1284 = vmatpush1.msra.mxu0 0.0
        %1285 = vmatprep.subr.mxu0 0.0
        %1286 = vmatpush1.msra.mxu0 0.0
        %1287 = vmatprep.subr.mxu0 0.0
        %1288 = vmatpush1.msra.mxu0 %v1232
        %1289 = vmatprep.subr.mxu0 0.0
        %1290 = vmatpush1.msra.mxu0 %v1231
        %1291 = vmatprep.subr.mxu0 0.0
        %1292 = vmatpush1.msra.mxu0 %v1230
        %1293 = vmatprep.subr.mxu0 0.0
        %1294 = vmatpush1.msra.mxu0 %v1229
        %1295 = vmatprep.subr.mxu0 0.0
        %1296 = vmatpush2.msra.mxu0 0.0
        %1297 = vmatprep.subr.mxu0 0.0
        %1298 = vmatpush2.msra.mxu0 0.0
        %1299 = vmatprep.subr.mxu0 0.0
        %1300 = vmatpush2.msra.mxu0 0.0
        %1301 = vmatprep.subr.mxu0 0.0
        %1302 = vmatpush2.msra.mxu0 0.0
        %1303 = vmatprep.subr.mxu0 0.0
        %1304 = vmatpush2.msra.mxu0 0.0
        %1305 = vmatprep.subr.mxu0 0.0
        %1306 = vmatpush2.msra.mxu0 0.0
        %1307 = vmatprep.subr.mxu0 0.0
        %1308 = vmatpush2.msra.mxu0 0.0
        %1309 = vmatprep.subr.mxu0 0.0
        %1310 = vmatpush2.msra.mxu0 0.0
        %1311 = vmatprep.subr.mxu0 0.0
        %1312 = vmatpush2.msra.mxu0 0.0
        %1313 = vmatprep.subr.mxu0 0.0
        %1314 = vmatpush2.msra.mxu0 0.0
        %1315 = vmatprep.subr.mxu0 0.0
        %1316 = vmatpush2.msra.mxu0 0.0
        %1317 = vmatprep.subr.mxu0 0.0
        %1318 = vmatpush2.msra.mxu0 0.0
        %1319 = vmatprep.subr.mxu0 0.0
        %1320 = vmatpush2.msra.mxu0 0.0
        %1321 = vmatprep.subr.mxu0 0.0
        %1322 = vmatpush2.msra.mxu0 0.0
        %1323 = vmatprep.subr.mxu0 0.0
        %1324 = vmatpush2.msra.mxu0 0.0
        %1325 = vmatprep.subr.mxu0 0.0
        %1326 = vmatpush2.msra.mxu0 0.0
        %1327 = vmatprep.mubr.f32.mxu0 0.0
        %1328 = vmatmul.mubr.f32.gmra.mxu0 %v1234
        %v1329 = vpop.f32.mrf.mxu0
        %v1330 = vadd.f32 0.0, %v1329
        %v1331 = vpop.f32.mrf.mxu0
        %1332 = vmatprep.mubr.f32.mxu0 0.0
        %1333 = vmatmul.mubr.f32.gmra.mxu0 %v1237
        %v1334 = vpop.f32.mrf.mxu0
        %v1335 = vadd.f32 0.0, %v1334
        %v1336 = vpop.f32.mrf.mxu0
        %1337 = vmatprep.mubr.f32.mxu0 0.0
        %1338 = vmatmul.mubr.f32.gmra.mxu0 %v1240
        %v1339 = vpop.f32.mrf.mxu0
        %v1340 = vadd.f32 0.0, %v1339
        %v1341 = vpop.f32.mrf.mxu0
        %1342 = vmatprep.mubr.f32.mxu0 0.0
        %1343 = vmatmul.mubr.f32.gmra.mxu0 %v1243
        %v1344 = vpop.f32.mrf.mxu0
        %v1345 = vadd.f32 0.0, %v1344
        %v1346 = vpop.f32.mrf.mxu0
        %1347 = vmatprep.mubr.f32.mxu0 0.0
        %1348 = vmatmul.mubr.f32.gmra.mxu0 %v1246
        %v1349 = vpop.f32.mrf.mxu0
        %v1350 = vadd.f32 0.0, %v1349
        %v1351 = vpop.f32.mrf.mxu0
        %1352 = vmatprep.mubr.f32.mxu0 0.0
        %1353 = vmatmul.mubr.f32.gmra.mxu0 %v1249
        %v1354 = vpop.f32.mrf.mxu0
        %v1355 = vadd.f32 0.0, %v1354
        %v1356 = vpop.f32.mrf.mxu0
        %1357 = vmatprep.mubr.f32.mxu0 0.0
        %1358 = vmatmul.mubr.f32.gmra.mxu0 %v1252
        %v1359 = vpop.f32.mrf.mxu0
        %v1360 = vadd.f32 0.0, %v1359
        %v1361 = vpop.f32.mrf.mxu0
        %1362 = vmatprep.mubr.f32.mxu0 0.0
        %1363 = vmatmul.mubr.f32.gmra.mxu0 %v1255
        %v1364 = vpop.f32.mrf.mxu0
        %v1365 = vadd.f32 0.0, %v1364
        %v1366 = vpop.f32.mrf.mxu0
        %1367 = vmatprep.mubr.f32.mxu0 0.0
        %1368 = vmatmul.mubr.f32.gmra.mxu0 %v1258
        %v1369 = vpop.f32.mrf.mxu0
        %v1370 = vadd.f32 0.0, %v1369
        %v1371 = vpop.f32.mrf.mxu0
        %1372 = vmatprep.mubr.f32.mxu0 0.0
        %1373 = vmatmul.mubr.f32.gmra.mxu0 %v1261
        %v1374 = vpop.f32.mrf.mxu0
        %v1375 = vadd.f32 0.0, %v1374
        %v1376 = vpop.f32.mrf.mxu0
        %1377 = vdwg.mxu0
        %v1378 = vadd.f32 %v1209, %v1330
        %v1379 = vadd.f32 %v1210, %v1335
        %v1380 = vadd.f32 %v1211, %v1340
        %v1381 = vadd.f32 %v1212, %v1345
        %v1382 = vadd.f32 %v1213, %v1350
        %v1383 = vadd.f32 %v1214, %v1355
        %v1384 = vadd.f32 %v1215, %v1360
        %v1385 = vadd.f32 %v1216, %v1365
        %v1386 = vadd.f32 %v1217, %v1370
        %v1387 = vadd.f32 %v1218, %v1375
        %v1388 = vld [vmem:[#allocation2 + $0xb] sm:$0xff]
        %v1389 = vld [vmem:[#allocation2 + $0x13] sm:$0xff]
        %v1390 = vld [vmem:[#allocation2 + $0x1b] sm:$0xff]
        %v1391 = vld [vmem:[#allocation2 + $0x23] sm:$0xff]
        %v1392 = vld [vmem:[#allocation2 + $0x2b] sm:$0xff]
        %v1393 = vld [vmem:[#allocation2 + $0x33] sm:$0xff]
        %v1394 = vld [vmem:[#allocation2 + $0x3b] sm:$0xff]
        %v1395 = vld [vmem:[#allocation2 + $0x43] sm:$0xff]
        %v1396 = vld [vmem:[#allocation2 + $0x4b] sm:$0xff]
        %v1397 = vld [vmem:[#allocation2 + $0x53] sm:$0xff]
        %v1398 = vld [vmem:[%s5 + $0x80] sm:$0xff]
        %v1399 = vld [vmem:[%s5 + $0x88] sm:$0xff]
        %v1400 = vld [vmem:[%s5 + $0x90] sm:$0xff]
        %v1401 = vld [vmem:[%s5 + $0x98] sm:$0xff]
        %v1403 = vsel %vm385, %v1388, 0
        %v1406 = vsel %vm385, %v1389, 0
        %v1409 = vsel %vm385, %v1390, 0
        %v1412 = vsel %vm385, %v1391, 0
        %v1415 = vsel %vm385, %v1392, 0
        %v1418 = vsel %vm385, %v1393, 0
        %v1421 = vsel %vm385, %v1394, 0
        %v1424 = vsel %vm385, %v1395, 0
        %v1427 = vsel %vm385, %v1396, 0
        %v1430 = vsel %vm385, %v1397, 0
        %1432 = vmatprep.subr.mxu0 0.0
        %1433 = vmatpush1.msra.mxu0 0.0
        %1434 = vmatprep.subr.mxu0 0.0
        %1435 = vmatpush1.msra.mxu0 0.0
        %1436 = vmatprep.subr.mxu0 0.0
        %1437 = vmatpush1.msra.mxu0 0.0
        %1438 = vmatprep.subr.mxu0 0.0
        %1439 = vmatpush1.msra.mxu0 0.0
        %1440 = vmatprep.subr.mxu0 0.0
        %1441 = vmatpush1.msra.mxu0 0.0
        %1442 = vmatprep.subr.mxu0 0.0
        %1443 = vmatpush1.msra.mxu0 0.0
        %1444 = vmatprep.subr.mxu0 0.0
        %1445 = vmatpush1.msra.mxu0 0.0
        %1446 = vmatprep.subr.mxu0 0.0
        %1447 = vmatpush1.msra.mxu0 0.0
        %1448 = vmatprep.subr.mxu0 0.0
        %1449 = vmatpush1.msra.mxu0 0.0
        %1450 = vmatprep.subr.mxu0 0.0
        %1451 = vmatpush1.msra.mxu0 0.0
        %1452 = vmatprep.subr.mxu0 0.0
        %1453 = vmatpush1.msra.mxu0 0.0
        %1454 = vmatprep.subr.mxu0 0.0
        %1455 = vmatpush1.msra.mxu0 0.0
        %1456 = vmatprep.subr.mxu0 0.0
        %1457 = vmatpush1.msra.mxu0 %v1401
        %1458 = vmatprep.subr.mxu0 0.0
        %1459 = vmatpush1.msra.mxu0 %v1400
        %1460 = vmatprep.subr.mxu0 0.0
        %1461 = vmatpush1.msra.mxu0 %v1399
        %1462 = vmatprep.subr.mxu0 0.0
        %1463 = vmatpush1.msra.mxu0 %v1398
        %1464 = vmatprep.subr.mxu0 0.0
        %1465 = vmatpush2.msra.mxu0 0.0
        %1466 = vmatprep.subr.mxu0 0.0
        %1467 = vmatpush2.msra.mxu0 0.0
        %1468 = vmatprep.subr.mxu0 0.0
        %1469 = vmatpush2.msra.mxu0 0.0
        %1470 = vmatprep.subr.mxu0 0.0
        %1471 = vmatpush2.msra.mxu0 0.0
        %1472 = vmatprep.subr.mxu0 0.0
        %1473 = vmatpush2.msra.mxu0 0.0
        %1474 = vmatprep.subr.mxu0 0.0
        %1475 = vmatpush2.msra.mxu0 0.0
        %1476 = vmatprep.subr.mxu0 0.0
        %1477 = vmatpush2.msra.mxu0 0.0
        %1478 = vmatprep.subr.mxu0 0.0
        %1479 = vmatpush2.msra.mxu0 0.0
        %1480 = vmatprep.subr.mxu0 0.0
        %1481 = vmatpush2.msra.mxu0 0.0
        %1482 = vmatprep.subr.mxu0 0.0
        %1483 = vmatpush2.msra.mxu0 0.0
        %1484 = vmatprep.subr.mxu0 0.0
        %1485 = vmatpush2.msra.mxu0 0.0
        %1486 = vmatprep.subr.mxu0 0.0
        %1487 = vmatpush2.msra.mxu0 0.0
        %1488 = vmatprep.subr.mxu0 0.0
        %1489 = vmatpush2.msra.mxu0 0.0
        %1490 = vmatprep.subr.mxu0 0.0
        %1491 = vmatpush2.msra.mxu0 0.0
        %1492 = vmatprep.subr.mxu0 0.0
        %1493 = vmatpush2.msra.mxu0 0.0
        %1494 = vmatprep.subr.mxu0 0.0
        %1495 = vmatpush2.msra.mxu0 0.0
        %1496 = vmatprep.mubr.f32.mxu0 0.0
        %1497 = vmatmul.mubr.f32.gmra.mxu0 %v1403
        %v1498 = vpop.f32.mrf.mxu0
        %v1499 = vadd.f32 0.0, %v1498
        %v1500 = vpop.f32.mrf.mxu0
        %1501 = vmatprep.mubr.f32.mxu0 0.0
        %1502 = vmatmul.mubr.f32.gmra.mxu0 %v1406
        %v1503 = vpop.f32.mrf.mxu0
        %v1504 = vadd.f32 0.0, %v1503
        %v1505 = vpop.f32.mrf.mxu0
        %1506 = vmatprep.mubr.f32.mxu0 0.0
        %1507 = vmatmul.mubr.f32.gmra.mxu0 %v1409
        %v1508 = vpop.f32.mrf.mxu0
        %v1509 = vadd.f32 0.0, %v1508
        %v1510 = vpop.f32.mrf.mxu0
        %1511 = vmatprep.mubr.f32.mxu0 0.0
        %1512 = vmatmul.mubr.f32.gmra.mxu0 %v1412
        %v1513 = vpop.f32.mrf.mxu0
        %v1514 = vadd.f32 0.0, %v1513
        %v1515 = vpop.f32.mrf.mxu0
        %1516 = vmatprep.mubr.f32.mxu0 0.0
        %1517 = vmatmul.mubr.f32.gmra.mxu0 %v1415
        %v1518 = vpop.f32.mrf.mxu0
        %v1519 = vadd.f32 0.0, %v1518
        %v1520 = vpop.f32.mrf.mxu0
        %1521 = vmatprep.mubr.f32.mxu0 0.0
        %1522 = vmatmul.mubr.f32.gmra.mxu0 %v1418
        %v1523 = vpop.f32.mrf.mxu0
        %v1524 = vadd.f32 0.0, %v1523
        %v1525 = vpop.f32.mrf.mxu0
        %1526 = vmatprep.mubr.f32.mxu0 0.0
        %1527 = vmatmul.mubr.f32.gmra.mxu0 %v1421
        %v1528 = vpop.f32.mrf.mxu0
        %v1529 = vadd.f32 0.0, %v1528
        %v1530 = vpop.f32.mrf.mxu0
        %1531 = vmatprep.mubr.f32.mxu0 0.0
        %1532 = vmatmul.mubr.f32.gmra.mxu0 %v1424
        %v1533 = vpop.f32.mrf.mxu0
        %v1534 = vadd.f32 0.0, %v1533
        %v1535 = vpop.f32.mrf.mxu0
        %1536 = vmatprep.mubr.f32.mxu0 0.0
        %1537 = vmatmul.mubr.f32.gmra.mxu0 %v1427
        %v1538 = vpop.f32.mrf.mxu0
        %v1539 = vadd.f32 0.0, %v1538
        %v1540 = vpop.f32.mrf.mxu0
        %1541 = vmatprep.mubr.f32.mxu0 0.0
        %1542 = vmatmul.mubr.f32.gmra.mxu0 %v1430
        %v1543 = vpop.f32.mrf.mxu0
        %v1544 = vadd.f32 0.0, %v1543
        %v1545 = vpop.f32.mrf.mxu0
        %1546 = vdwg.mxu0
        %v1547 = vadd.f32 %v1378, %v1499
        %v1548 = vadd.f32 %v1379, %v1504
        %v1549 = vadd.f32 %v1380, %v1509
        %v1550 = vadd.f32 %v1381, %v1514
        %v1551 = vadd.f32 %v1382, %v1519
        %v1552 = vadd.f32 %v1383, %v1524
        %v1553 = vadd.f32 %v1384, %v1529
        %v1554 = vadd.f32 %v1385, %v1534
        %v1555 = vadd.f32 %v1386, %v1539
        %v1556 = vadd.f32 %v1387, %v1544
        %v1557 = vld [vmem:[#allocation2 + $0xc] sm:$0xff]
        %v1558 = vld [vmem:[#allocation2 + $0x14] sm:$0xff]
        %v1559 = vld [vmem:[#allocation2 + $0x1c] sm:$0xff]
        %v1560 = vld [vmem:[#allocation2 + $0x24] sm:$0xff]
        %v1561 = vld [vmem:[#allocation2 + $0x2c] sm:$0xff]
        %v1562 = vld [vmem:[#allocation2 + $0x34] sm:$0xff]
        %v1563 = vld [vmem:[#allocation2 + $0x3c] sm:$0xff]
        %v1564 = vld [vmem:[#allocation2 + $0x44] sm:$0xff]
        %v1565 = vld [vmem:[#allocation2 + $0x4c] sm:$0xff]
        %v1566 = vld [vmem:[#allocation2 + $0x54] sm:$0xff]
        %v1567 = vld [vmem:[%s5 + $0xa0] sm:$0xff]
        %v1568 = vld [vmem:[%s5 + $0xa8] sm:$0xff]
        %v1569 = vld [vmem:[%s5 + $0xb0] sm:$0xff]
        %v1570 = vld [vmem:[%s5 + $0xb8] sm:$0xff]
        %v1572 = vsel %vm385, %v1557, 0
        %v1575 = vsel %vm385, %v1558, 0
        %v1578 = vsel %vm385, %v1559, 0
        %v1581 = vsel %vm385, %v1560, 0
        %v1584 = vsel %vm385, %v1561, 0
        %v1587 = vsel %vm385, %v1562, 0
        %v1590 = vsel %vm385, %v1563, 0
        %v1593 = vsel %vm385, %v1564, 0
        %v1596 = vsel %vm385, %v1565, 0
        %v1599 = vsel %vm385, %v1566, 0
        %1601 = vmatprep.subr.mxu0 0.0
        %1602 = vmatpush1.msra.mxu0 0.0
        %1603 = vmatprep.subr.mxu0 0.0
        %1604 = vmatpush1.msra.mxu0 0.0
        %1605 = vmatprep.subr.mxu0 0.0
        %1606 = vmatpush1.msra.mxu0 0.0
        %1607 = vmatprep.subr.mxu0 0.0
        %1608 = vmatpush1.msra.mxu0 0.0
        %1609 = vmatprep.subr.mxu0 0.0
        %1610 = vmatpush1.msra.mxu0 0.0
        %1611 = vmatprep.subr.mxu0 0.0
        %1612 = vmatpush1.msra.mxu0 0.0
        %1613 = vmatprep.subr.mxu0 0.0
        %1614 = vmatpush1.msra.mxu0 0.0
        %1615 = vmatprep.subr.mxu0 0.0
        %1616 = vmatpush1.msra.mxu0 0.0
        %1617 = vmatprep.subr.mxu0 0.0
        %1618 = vmatpush1.msra.mxu0 0.0
        %1619 = vmatprep.subr.mxu0 0.0
        %1620 = vmatpush1.msra.mxu0 0.0
        %1621 = vmatprep.subr.mxu0 0.0
        %1622 = vmatpush1.msra.mxu0 0.0
        %1623 = vmatprep.subr.mxu0 0.0
        %1624 = vmatpush1.msra.mxu0 0.0
        %1625 = vmatprep.subr.mxu0 0.0
        %1626 = vmatpush1.msra.mxu0 %v1570
        %1627 = vmatprep.subr.mxu0 0.0
        %1628 = vmatpush1.msra.mxu0 %v1569
        %1629 = vmatprep.subr.mxu0 0.0
        %1630 = vmatpush1.msra.mxu0 %v1568
        %1631 = vmatprep.subr.mxu0 0.0
        %1632 = vmatpush1.msra.mxu0 %v1567
        %1633 = vmatprep.subr.mxu0 0.0
        %1634 = vmatpush2.msra.mxu0 0.0
        %1635 = vmatprep.subr.mxu0 0.0
        %1636 = vmatpush2.msra.mxu0 0.0
        %1637 = vmatprep.subr.mxu0 0.0
        %1638 = vmatpush2.msra.mxu0 0.0
        %1639 = vmatprep.subr.mxu0 0.0
        %1640 = vmatpush2.msra.mxu0 0.0
        %1641 = vmatprep.subr.mxu0 0.0
        %1642 = vmatpush2.msra.mxu0 0.0
        %1643 = vmatprep.subr.mxu0 0.0
        %1644 = vmatpush2.msra.mxu0 0.0
        %1645 = vmatprep.subr.mxu0 0.0
        %1646 = vmatpush2.msra.mxu0 0.0
        %1647 = vmatprep.subr.mxu0 0.0
        %1648 = vmatpush2.msra.mxu0 0.0
        %1649 = vmatprep.subr.mxu0 0.0
        %1650 = vmatpush2.msra.mxu0 0.0
        %1651 = vmatprep.subr.mxu0 0.0
        %1652 = vmatpush2.msra.mxu0 0.0
        %1653 = vmatprep.subr.mxu0 0.0
        %1654 = vmatpush2.msra.mxu0 0.0
        %1655 = vmatprep.subr.mxu0 0.0
        %1656 = vmatpush2.msra.mxu0 0.0
        %1657 = vmatprep.subr.mxu0 0.0
        %1658 = vmatpush2.msra.mxu0 0.0
        %1659 = vmatprep.subr.mxu0 0.0
        %1660 = vmatpush2.msra.mxu0 0.0
        %1661 = vmatprep.subr.mxu0 0.0
        %1662 = vmatpush2.msra.mxu0 0.0
        %1663 = vmatprep.subr.mxu0 0.0
        %1664 = vmatpush2.msra.mxu0 0.0
        %1665 = vmatprep.mubr.f32.mxu0 0.0
        %1666 = vmatmul.mubr.f32.gmra.mxu0 %v1572
        %v1667 = vpop.f32.mrf.mxu0
        %v1668 = vadd.f32 0.0, %v1667
        %v1669 = vpop.f32.mrf.mxu0
        %1670 = vmatprep.mubr.f32.mxu0 0.0
        %1671 = vmatmul.mubr.f32.gmra.mxu0 %v1575
        %v1672 = vpop.f32.mrf.mxu0
        %v1673 = vadd.f32 0.0, %v1672
        %v1674 = vpop.f32.mrf.mxu0
        %1675 = vmatprep.mubr.f32.mxu0 0.0
        %1676 = vmatmul.mubr.f32.gmra.mxu0 %v1578
        %v1677 = vpop.f32.mrf.mxu0
        %v1678 = vadd.f32 0.0, %v1677
        %v1679 = vpop.f32.mrf.mxu0
        %1680 = vmatprep.mubr.f32.mxu0 0.0
        %1681 = vmatmul.mubr.f32.gmra.mxu0 %v1581
        %v1682 = vpop.f32.mrf.mxu0
        %v1683 = vadd.f32 0.0, %v1682
        %v1684 = vpop.f32.mrf.mxu0
        %1685 = vmatprep.mubr.f32.mxu0 0.0
        %1686 = vmatmul.mubr.f32.gmra.mxu0 %v1584
        %v1687 = vpop.f32.mrf.mxu0
        %v1688 = vadd.f32 0.0, %v1687
        %v1689 = vpop.f32.mrf.mxu0
        %1690 = vmatprep.mubr.f32.mxu0 0.0
        %1691 = vmatmul.mubr.f32.gmra.mxu0 %v1587
        %v1692 = vpop.f32.mrf.mxu0
        %v1693 = vadd.f32 0.0, %v1692
        %v1694 = vpop.f32.mrf.mxu0
        %1695 = vmatprep.mubr.f32.mxu0 0.0
        %1696 = vmatmul.mubr.f32.gmra.mxu0 %v1590
        %v1697 = vpop.f32.mrf.mxu0
        %v1698 = vadd.f32 0.0, %v1697
        %v1699 = vpop.f32.mrf.mxu0
        %1700 = vmatprep.mubr.f32.mxu0 0.0
        %1701 = vmatmul.mubr.f32.gmra.mxu0 %v1593
        %v1702 = vpop.f32.mrf.mxu0
        %v1703 = vadd.f32 0.0, %v1702
        %v1704 = vpop.f32.mrf.mxu0
        %1705 = vmatprep.mubr.f32.mxu0 0.0
        %1706 = vmatmul.mubr.f32.gmra.mxu0 %v1596
        %v1707 = vpop.f32.mrf.mxu0
        %v1708 = vadd.f32 0.0, %v1707
        %v1709 = vpop.f32.mrf.mxu0
        %1710 = vmatprep.mubr.f32.mxu0 0.0
        %1711 = vmatmul.mubr.f32.gmra.mxu0 %v1599
        %v1712 = vpop.f32.mrf.mxu0
        %v1713 = vadd.f32 0.0, %v1712
        %v1714 = vpop.f32.mrf.mxu0
        %1715 = vdwg.mxu0
        %v1716 = vadd.f32 %v1547, %v1668
        %v1717 = vadd.f32 %v1548, %v1673
        %v1718 = vadd.f32 %v1549, %v1678
        %v1719 = vadd.f32 %v1550, %v1683
        %v1720 = vadd.f32 %v1551, %v1688
        %v1721 = vadd.f32 %v1552, %v1693
        %v1722 = vadd.f32 %v1553, %v1698
        %v1723 = vadd.f32 %v1554, %v1703
        %v1724 = vadd.f32 %v1555, %v1708
        %v1725 = vadd.f32 %v1556, %v1713
        %v1726 = vld [vmem:[#allocation2 + $0x14] sm:$0xff]
        %v1727 = vld [vmem:[#allocation2 + $0x1c] sm:$0xff]
        %v1728 = vld [vmem:[#allocation2 + $0x24] sm:$0xff]
        %v1729 = vld [vmem:[#allocation2 + $0x2c] sm:$0xff]
        %v1730 = vld [vmem:[#allocation2 + $0x34] sm:$0xff]
        %v1731 = vld [vmem:[#allocation2 + $0x3c] sm:$0xff]
        %v1732 = vld [vmem:[#allocation2 + $0x44] sm:$0xff]
        %v1733 = vld [vmem:[#allocation2 + $0x4c] sm:$0xff]
        %v1734 = vld [vmem:[#allocation2 + $0x54] sm:$0xff]
        %v1735 = vld [vmem:[#allocation2 + $0x5c] sm:$0xff]
        %v1736 = vld [vmem:[%s5 + $0xc0] sm:$0xff]
        %v1737 = vld [vmem:[%s5 + $0xc8] sm:$0xff]
        %v1738 = vld [vmem:[%s5 + $0xd0] sm:$0xff]
        %v1739 = vld [vmem:[%s5 + $0xd8] sm:$0xff]
        %v1741 = vsel %vm385, %v1726, 0
        %v1744 = vsel %vm385, %v1727, 0
        %v1747 = vsel %vm385, %v1728, 0
        %v1750 = vsel %vm385, %v1729, 0
        %v1753 = vsel %vm385, %v1730, 0
        %v1756 = vsel %vm385, %v1731, 0
        %v1759 = vsel %vm385, %v1732, 0
        %v1762 = vsel %vm385, %v1733, 0
        %v1765 = vsel %vm385, %v1734, 0
        %v1768 = vsel %vm385, %v1735, 0
        %1770 = vmatprep.subr.mxu0 0.0
        %1771 = vmatpush1.msra.mxu0 0.0
        %1772 = vmatprep.subr.mxu0 0.0
        %1773 = vmatpush1.msra.mxu0 0.0
        %1774 = vmatprep.subr.mxu0 0.0
        %1775 = vmatpush1.msra.mxu0 0.0
        %1776 = vmatprep.subr.mxu0 0.0
        %1777 = vmatpush1.msra.mxu0 0.0
        %1778 = vmatprep.subr.mxu0 0.0
        %1779 = vmatpush1.msra.mxu0 0.0
        %1780 = vmatprep.subr.mxu0 0.0
        %1781 = vmatpush1.msra.mxu0 0.0
        %1782 = vmatprep.subr.mxu0 0.0
        %1783 = vmatpush1.msra.mxu0 0.0
        %1784 = vmatprep.subr.mxu0 0.0
        %1785 = vmatpush1.msra.mxu0 0.0
        %1786 = vmatprep.subr.mxu0 0.0
        %1787 = vmatpush1.msra.mxu0 0.0
        %1788 = vmatprep.subr.mxu0 0.0
        %1789 = vmatpush1.msra.mxu0 0.0
        %1790 = vmatprep.subr.mxu0 0.0
        %1791 = vmatpush1.msra.mxu0 0.0
        %1792 = vmatprep.subr.mxu0 0.0
        %1793 = vmatpush1.msra.mxu0 0.0
        %1794 = vmatprep.subr.mxu0 0.0
        %1795 = vmatpush1.msra.mxu0 %v1739
        %1796 = vmatprep.subr.mxu0 0.0
        %1797 = vmatpush1.msra.mxu0 %v1738
        %1798 = vmatprep.subr.mxu0 0.0
        %1799 = vmatpush1.msra.mxu0 %v1737
        %1800 = vmatprep.subr.mxu0 0.0
        %1801 = vmatpush1.msra.mxu0 %v1736
        %1802 = vmatprep.subr.mxu0 0.0
        %1803 = vmatpush2.msra.mxu0 0.0
        %1804 = vmatprep.subr.mxu0 0.0
        %1805 = vmatpush2.msra.mxu0 0.0
        %1806 = vmatprep.subr.mxu0 0.0
        %1807 = vmatpush2.msra.mxu0 0.0
        %1808 = vmatprep.subr.mxu0 0.0
        %1809 = vmatpush2.msra.mxu0 0.0
        %1810 = vmatprep.subr.mxu0 0.0
        %1811 = vmatpush2.msra.mxu0 0.0
        %1812 = vmatprep.subr.mxu0 0.0
        %1813 = vmatpush2.msra.mxu0 0.0
        %1814 = vmatprep.subr.mxu0 0.0
        %1815 = vmatpush2.msra.mxu0 0.0
        %1816 = vmatprep.subr.mxu0 0.0
        %1817 = vmatpush2.msra.mxu0 0.0
        %1818 = vmatprep.subr.mxu0 0.0
        %1819 = vmatpush2.msra.mxu0 0.0
        %1820 = vmatprep.subr.mxu0 0.0
        %1821 = vmatpush2.msra.mxu0 0.0
        %1822 = vmatprep.subr.mxu0 0.0
        %1823 = vmatpush2.msra.mxu0 0.0
        %1824 = vmatprep.subr.mxu0 0.0
        %1825 = vmatpush2.msra.mxu0 0.0
        %1826 = vmatprep.subr.mxu0 0.0
        %1827 = vmatpush2.msra.mxu0 0.0
        %1828 = vmatprep.subr.mxu0 0.0
        %1829 = vmatpush2.msra.mxu0 0.0
        %1830 = vmatprep.subr.mxu0 0.0
        %1831 = vmatpush2.msra.mxu0 0.0
        %1832 = vmatprep.subr.mxu0 0.0
        %1833 = vmatpush2.msra.mxu0 0.0
        %1834 = vmatprep.mubr.f32.mxu0 0.0
        %1835 = vmatmul.mubr.f32.gmra.mxu0 %v1741
        %v1836 = vpop.f32.mrf.mxu0
        %v1837 = vadd.f32 0.0, %v1836
        %v1838 = vpop.f32.mrf.mxu0
        %1839 = vmatprep.mubr.f32.mxu0 0.0
        %1840 = vmatmul.mubr.f32.gmra.mxu0 %v1744
        %v1841 = vpop.f32.mrf.mxu0
        %v1842 = vadd.f32 0.0, %v1841
        %v1843 = vpop.f32.mrf.mxu0
        %1844 = vmatprep.mubr.f32.mxu0 0.0
        %1845 = vmatmul.mubr.f32.gmra.mxu0 %v1747
        %v1846 = vpop.f32.mrf.mxu0
        %v1847 = vadd.f32 0.0, %v1846
        %v1848 = vpop.f32.mrf.mxu0
        %1849 = vmatprep.mubr.f32.mxu0 0.0
        %1850 = vmatmul.mubr.f32.gmra.mxu0 %v1750
        %v1851 = vpop.f32.mrf.mxu0
        %v1852 = vadd.f32 0.0, %v1851
        %v1853 = vpop.f32.mrf.mxu0
        %1854 = vmatprep.mubr.f32.mxu0 0.0
        %1855 = vmatmul.mubr.f32.gmra.mxu0 %v1753
        %v1856 = vpop.f32.mrf.mxu0
        %v1857 = vadd.f32 0.0, %v1856
        %v1858 = vpop.f32.mrf.mxu0
        %1859 = vmatprep.mubr.f32.mxu0 0.0
        %1860 = vmatmul.mubr.f32.gmra.mxu0 %v1756
        %v1861 = vpop.f32.mrf.mxu0
        %v1862 = vadd.f32 0.0, %v1861
        %v1863 = vpop.f32.mrf.mxu0
        %1864 = vmatprep.mubr.f32.mxu0 0.0
        %1865 = vmatmul.mubr.f32.gmra.mxu0 %v1759
        %v1866 = vpop.f32.mrf.mxu0
        %v1867 = vadd.f32 0.0, %v1866
        %v1868 = vpop.f32.mrf.mxu0
        %1869 = vmatprep.mubr.f32.mxu0 0.0
        %1870 = vmatmul.mubr.f32.gmra.mxu0 %v1762
        %v1871 = vpop.f32.mrf.mxu0
        %v1872 = vadd.f32 0.0, %v1871
        %v1873 = vpop.f32.mrf.mxu0
        %1874 = vmatprep.mubr.f32.mxu0 0.0
        %1875 = vmatmul.mubr.f32.gmra.mxu0 %v1765
        %v1876 = vpop.f32.mrf.mxu0
        %v1877 = vadd.f32 0.0, %v1876
        %v1878 = vpop.f32.mrf.mxu0
        %1879 = vmatprep.mubr.f32.mxu0 0.0
        %1880 = vmatmul.mubr.f32.gmra.mxu0 %v1768
        %v1881 = vpop.f32.mrf.mxu0
        %v1882 = vadd.f32 0.0, %v1881
        %v1883 = vpop.f32.mrf.mxu0
        %1884 = vdwg.mxu0
        %v1885 = vadd.f32 %v1716, %v1837
        %v1886 = vadd.f32 %v1717, %v1842
        %v1887 = vadd.f32 %v1718, %v1847
        %v1888 = vadd.f32 %v1719, %v1852
        %v1889 = vadd.f32 %v1720, %v1857
        %v1890 = vadd.f32 %v1721, %v1862
        %v1891 = vadd.f32 %v1722, %v1867
        %v1892 = vadd.f32 %v1723, %v1872
        %v1893 = vadd.f32 %v1724, %v1877
        %v1894 = vadd.f32 %v1725, %v1882
        %v1895 = vld [vmem:[#allocation2 + $0x15] sm:$0xff]
        %v1896 = vld [vmem:[#allocation2 + $0x1d] sm:$0xff]
        %v1897 = vld [vmem:[#allocation2 + $0x25] sm:$0xff]
        %v1898 = vld [vmem:[#allocation2 + $0x2d] sm:$0xff]
        %v1899 = vld [vmem:[#allocation2 + $0x35] sm:$0xff]
        %v1900 = vld [vmem:[#allocation2 + $0x3d] sm:$0xff]
        %v1901 = vld [vmem:[#allocation2 + $0x45] sm:$0xff]
        %v1902 = vld [vmem:[#allocation2 + $0x4d] sm:$0xff]
        %v1903 = vld [vmem:[#allocation2 + $0x55] sm:$0xff]
        %v1904 = vld [vmem:[#allocation2 + $0x5d] sm:$0xff]
        %v1905 = vld [vmem:[%s5 + $0xe0] sm:$0xff]
        %v1906 = vld [vmem:[%s5 + $0xe8] sm:$0xff]
        %v1907 = vld [vmem:[%s5 + $0xf0] sm:$0xff]
        %v1908 = vld [vmem:[%s5 + $0xf8] sm:$0xff]
        %v1910 = vsel %vm385, %v1895, 0
        %v1913 = vsel %vm385, %v1896, 0
        %v1916 = vsel %vm385, %v1897, 0
        %v1919 = vsel %vm385, %v1898, 0
        %v1922 = vsel %vm385, %v1899, 0
        %v1925 = vsel %vm385, %v1900, 0
        %v1928 = vsel %vm385, %v1901, 0
        %v1931 = vsel %vm385, %v1902, 0
        %v1934 = vsel %vm385, %v1903, 0
        %v1937 = vsel %vm385, %v1904, 0
        %1939 = vmatprep.subr.mxu0 0.0
        %1940 = vmatpush1.msra.mxu0 0.0
        %1941 = vmatprep.subr.mxu0 0.0
        %1942 = vmatpush1.msra.mxu0 0.0
        %1943 = vmatprep.subr.mxu0 0.0
        %1944 = vmatpush1.msra.mxu0 0.0
        %1945 = vmatprep.subr.mxu0 0.0
        %1946 = vmatpush1.msra.mxu0 0.0
        %1947 = vmatprep.subr.mxu0 0.0
        %1948 = vmatpush1.msra.mxu0 0.0
        %1949 = vmatprep.subr.mxu0 0.0
        %1950 = vmatpush1.msra.mxu0 0.0
        %1951 = vmatprep.subr.mxu0 0.0
        %1952 = vmatpush1.msra.mxu0 0.0
        %1953 = vmatprep.subr.mxu0 0.0
        %1954 = vmatpush1.msra.mxu0 0.0
        %1955 = vmatprep.subr.mxu0 0.0
        %1956 = vmatpush1.msra.mxu0 0.0
        %1957 = vmatprep.subr.mxu0 0.0
        %1958 = vmatpush1.msra.mxu0 0.0
        %1959 = vmatprep.subr.mxu0 0.0
        %1960 = vmatpush1.msra.mxu0 0.0
        %1961 = vmatprep.subr.mxu0 0.0
        %1962 = vmatpush1.msra.mxu0 0.0
        %1963 = vmatprep.subr.mxu0 0.0
        %1964 = vmatpush1.msra.mxu0 %v1908
        %1965 = vmatprep.subr.mxu0 0.0
        %1966 = vmatpush1.msra.mxu0 %v1907
        %1967 = vmatprep.subr.mxu0 0.0
        %1968 = vmatpush1.msra.mxu0 %v1906
        %1969 = vmatprep.subr.mxu0 0.0
        %1970 = vmatpush1.msra.mxu0 %v1905
        %1971 = vmatprep.subr.mxu0 0.0
        %1972 = vmatpush2.msra.mxu0 0.0
        %1973 = vmatprep.subr.mxu0 0.0
        %1974 = vmatpush2.msra.mxu0 0.0
        %1975 = vmatprep.subr.mxu0 0.0
        %1976 = vmatpush2.msra.mxu0 0.0
        %1977 = vmatprep.subr.mxu0 0.0
        %1978 = vmatpush2.msra.mxu0 0.0
        %1979 = vmatprep.subr.mxu0 0.0
        %1980 = vmatpush2.msra.mxu0 0.0
        %1981 = vmatprep.subr.mxu0 0.0
        %1982 = vmatpush2.msra.mxu0 0.0
        %1983 = vmatprep.subr.mxu0 0.0
        %1984 = vmatpush2.msra.mxu0 0.0
        %1985 = vmatprep.subr.mxu0 0.0
        %1986 = vmatpush2.msra.mxu0 0.0
        %1987 = vmatprep.subr.mxu0 0.0
        %1988 = vmatpush2.msra.mxu0 0.0
        %1989 = vmatprep.subr.mxu0 0.0
        %1990 = vmatpush2.msra.mxu0 0.0
        %1991 = vmatprep.subr.mxu0 0.0
        %1992 = vmatpush2.msra.mxu0 0.0
        %1993 = vmatprep.subr.mxu0 0.0
        %1994 = vmatpush2.msra.mxu0 0.0
        %1995 = vmatprep.subr.mxu0 0.0
        %1996 = vmatpush2.msra.mxu0 0.0
        %1997 = vmatprep.subr.mxu0 0.0
        %1998 = vmatpush2.msra.mxu0 0.0
        %1999 = vmatprep.subr.mxu0 0.0
        %2000 = vmatpush2.msra.mxu0 0.0
        %2001 = vmatprep.subr.mxu0 0.0
        %2002 = vmatpush2.msra.mxu0 0.0
        %2003 = vmatprep.mubr.f32.mxu0 0.0
        %2004 = vmatmul.mubr.f32.gmra.mxu0 %v1910
        %v2005 = vpop.f32.mrf.mxu0
        %v2006 = vadd.f32 0.0, %v2005
        %v2007 = vpop.f32.mrf.mxu0
        %2008 = vmatprep.mubr.f32.mxu0 0.0
        %2009 = vmatmul.mubr.f32.gmra.mxu0 %v1913
        %v2010 = vpop.f32.mrf.mxu0
        %v2011 = vadd.f32 0.0, %v2010
        %v2012 = vpop.f32.mrf.mxu0
        %2013 = vmatprep.mubr.f32.mxu0 0.0
        %2014 = vmatmul.mubr.f32.gmra.mxu0 %v1916
        %v2015 = vpop.f32.mrf.mxu0
        %v2016 = vadd.f32 0.0, %v2015
        %v2017 = vpop.f32.mrf.mxu0
        %2018 = vmatprep.mubr.f32.mxu0 0.0
        %2019 = vmatmul.mubr.f32.gmra.mxu0 %v1919
        %v2020 = vpop.f32.mrf.mxu0
        %v2021 = vadd.f32 0.0, %v2020
        %v2022 = vpop.f32.mrf.mxu0
        %2023 = vmatprep.mubr.f32.mxu0 0.0
        %2024 = vmatmul.mubr.f32.gmra.mxu0 %v1922
        %v2025 = vpop.f32.mrf.mxu0
        %v2026 = vadd.f32 0.0, %v2025
        %v2027 = vpop.f32.mrf.mxu0
        %2028 = vmatprep.mubr.f32.mxu0 0.0
        %2029 = vmatmul.mubr.f32.gmra.mxu0 %v1925
        %v2030 = vpop.f32.mrf.mxu0
        %v2031 = vadd.f32 0.0, %v2030
        %v2032 = vpop.f32.mrf.mxu0
        %2033 = vmatprep.mubr.f32.mxu0 0.0
        %2034 = vmatmul.mubr.f32.gmra.mxu0 %v1928
        %v2035 = vpop.f32.mrf.mxu0
        %v2036 = vadd.f32 0.0, %v2035
        %v2037 = vpop.f32.mrf.mxu0
        %2038 = vmatprep.mubr.f32.mxu0 0.0
        %2039 = vmatmul.mubr.f32.gmra.mxu0 %v1931
        %v2040 = vpop.f32.mrf.mxu0
        %v2041 = vadd.f32 0.0, %v2040
        %v2042 = vpop.f32.mrf.mxu0
        %2043 = vmatprep.mubr.f32.mxu0 0.0
        %2044 = vmatmul.mubr.f32.gmra.mxu0 %v1934
        %v2045 = vpop.f32.mrf.mxu0
        %v2046 = vadd.f32 0.0, %v2045
        %v2047 = vpop.f32.mrf.mxu0
        %2048 = vmatprep.mubr.f32.mxu0 0.0
        %2049 = vmatmul.mubr.f32.gmra.mxu0 %v1937
        %v2050 = vpop.f32.mrf.mxu0
        %v2051 = vadd.f32 0.0, %v2050
        %v2052 = vpop.f32.mrf.mxu0
        %2053 = vdwg.mxu0
        %v2054 = vadd.f32 %v1885, %v2006
        %v2055 = vadd.f32 %v1886, %v2011
        %v2056 = vadd.f32 %v1887, %v2016
        %v2057 = vadd.f32 %v1888, %v2021
        %v2058 = vadd.f32 %v1889, %v2026
        %v2059 = vadd.f32 %v1890, %v2031
        %v2060 = vadd.f32 %v1891, %v2036
        %v2061 = vadd.f32 %v1892, %v2041
        %v2062 = vadd.f32 %v1893, %v2046
        %v2063 = vadd.f32 %v1894, %v2051
        %v2064 = vld [vmem:[#allocation2 + $0x16] sm:$0xff]
        %v2065 = vld [vmem:[#allocation2 + $0x1e] sm:$0xff]
        %v2066 = vld [vmem:[#allocation2 + $0x26] sm:$0xff]
        %v2067 = vld [vmem:[#allocation2 + $0x2e] sm:$0xff]
        %v2068 = vld [vmem:[#allocation2 + $0x36] sm:$0xff]
        %v2069 = vld [vmem:[#allocation2 + $0x3e] sm:$0xff]
        %v2070 = vld [vmem:[#allocation2 + $0x46] sm:$0xff]
        %v2071 = vld [vmem:[#allocation2 + $0x4e] sm:$0xff]
        %v2072 = vld [vmem:[#allocation2 + $0x56] sm:$0xff]
        %v2073 = vld [vmem:[#allocation2 + $0x5e] sm:$0xff]
        %v2074 = vld [vmem:[%s5 + $0x100] sm:$0xff]
        %v2075 = vld [vmem:[%s5 + $0x108] sm:$0xff]
        %v2076 = vld [vmem:[%s5 + $0x110] sm:$0xff]
        %v2077 = vld [vmem:[%s5 + $0x118] sm:$0xff]
        %v2079 = vsel %vm385, %v2064, 0
        %v2082 = vsel %vm385, %v2065, 0
        %v2085 = vsel %vm385, %v2066, 0
        %v2088 = vsel %vm385, %v2067, 0
        %v2091 = vsel %vm385, %v2068, 0
        %v2094 = vsel %vm385, %v2069, 0
        %v2097 = vsel %vm385, %v2070, 0
        %v2100 = vsel %vm385, %v2071, 0
        %v2103 = vsel %vm385, %v2072, 0
        %v2106 = vsel %vm385, %v2073, 0
        %2108 = vmatprep.subr.mxu0 0.0
        %2109 = vmatpush1.msra.mxu0 0.0
        %2110 = vmatprep.subr.mxu0 0.0
        %2111 = vmatpush1.msra.mxu0 0.0
        %2112 = vmatprep.subr.mxu0 0.0
        %2113 = vmatpush1.msra.mxu0 0.0
        %2114 = vmatprep.subr.mxu0 0.0
        %2115 = vmatpush1.msra.mxu0 0.0
        %2116 = vmatprep.subr.mxu0 0.0
        %2117 = vmatpush1.msra.mxu0 0.0
        %2118 = vmatprep.subr.mxu0 0.0
        %2119 = vmatpush1.msra.mxu0 0.0
        %2120 = vmatprep.subr.mxu0 0.0
        %2121 = vmatpush1.msra.mxu0 0.0
        %2122 = vmatprep.subr.mxu0 0.0
        %2123 = vmatpush1.msra.mxu0 0.0
        %2124 = vmatprep.subr.mxu0 0.0
        %2125 = vmatpush1.msra.mxu0 0.0
        %2126 = vmatprep.subr.mxu0 0.0
        %2127 = vmatpush1.msra.mxu0 0.0
        %2128 = vmatprep.subr.mxu0 0.0
        %2129 = vmatpush1.msra.mxu0 0.0
        %2130 = vmatprep.subr.mxu0 0.0
        %2131 = vmatpush1.msra.mxu0 0.0
        %2132 = vmatprep.subr.mxu0 0.0
        %2133 = vmatpush1.msra.mxu0 %v2077
        %2134 = vmatprep.subr.mxu0 0.0
        %2135 = vmatpush1.msra.mxu0 %v2076
        %2136 = vmatprep.subr.mxu0 0.0
        %2137 = vmatpush1.msra.mxu0 %v2075
        %2138 = vmatprep.subr.mxu0 0.0
        %2139 = vmatpush1.msra.mxu0 %v2074
        %2140 = vmatprep.subr.mxu0 0.0
        %2141 = vmatpush2.msra.mxu0 0.0
        %2142 = vmatprep.subr.mxu0 0.0
        %2143 = vmatpush2.msra.mxu0 0.0
        %2144 = vmatprep.subr.mxu0 0.0
        %2145 = vmatpush2.msra.mxu0 0.0
        %2146 = vmatprep.subr.mxu0 0.0
        %2147 = vmatpush2.msra.mxu0 0.0
        %2148 = vmatprep.subr.mxu0 0.0
        %2149 = vmatpush2.msra.mxu0 0.0
        %2150 = vmatprep.subr.mxu0 0.0
        %2151 = vmatpush2.msra.mxu0 0.0
        %2152 = vmatprep.subr.mxu0 0.0
        %2153 = vmatpush2.msra.mxu0 0.0
        %2154 = vmatprep.subr.mxu0 0.0
        %2155 = vmatpush2.msra.mxu0 0.0
        %2156 = vmatprep.subr.mxu0 0.0
        %2157 = vmatpush2.msra.mxu0 0.0
        %2158 = vmatprep.subr.mxu0 0.0
        %2159 = vmatpush2.msra.mxu0 0.0
        %2160 = vmatprep.subr.mxu0 0.0
        %2161 = vmatpush2.msra.mxu0 0.0
        %2162 = vmatprep.subr.mxu0 0.0
        %2163 = vmatpush2.msra.mxu0 0.0
        %2164 = vmatprep.subr.mxu0 0.0
        %2165 = vmatpush2.msra.mxu0 0.0
        %2166 = vmatprep.subr.mxu0 0.0
        %2167 = vmatpush2.msra.mxu0 0.0
        %2168 = vmatprep.subr.mxu0 0.0
        %2169 = vmatpush2.msra.mxu0 0.0
        %2170 = vmatprep.subr.mxu0 0.0
        %2171 = vmatpush2.msra.mxu0 0.0
        %2172 = vmatprep.mubr.f32.mxu0 0.0
        %2173 = vmatmul.mubr.f32.gmra.mxu0 %v2079
        %v2174 = vpop.f32.mrf.mxu0
        %v2175 = vadd.f32 0.0, %v2174
        %v2176 = vpop.f32.mrf.mxu0
        %2177 = vmatprep.mubr.f32.mxu0 0.0
        %2178 = vmatmul.mubr.f32.gmra.mxu0 %v2082
        %v2179 = vpop.f32.mrf.mxu0
        %v2180 = vadd.f32 0.0, %v2179
        %v2181 = vpop.f32.mrf.mxu0
        %2182 = vmatprep.mubr.f32.mxu0 0.0
        %2183 = vmatmul.mubr.f32.gmra.mxu0 %v2085
        %v2184 = vpop.f32.mrf.mxu0
        %v2185 = vadd.f32 0.0, %v2184
        %v2186 = vpop.f32.mrf.mxu0
        %2187 = vmatprep.mubr.f32.mxu0 0.0
        %2188 = vmatmul.mubr.f32.gmra.mxu0 %v2088
        %v2189 = vpop.f32.mrf.mxu0
        %v2190 = vadd.f32 0.0, %v2189
        %v2191 = vpop.f32.mrf.mxu0
        %2192 = vmatprep.mubr.f32.mxu0 0.0
        %2193 = vmatmul.mubr.f32.gmra.mxu0 %v2091
        %v2194 = vpop.f32.mrf.mxu0
        %v2195 = vadd.f32 0.0, %v2194
        %v2196 = vpop.f32.mrf.mxu0
        %2197 = vmatprep.mubr.f32.mxu0 0.0
        %2198 = vmatmul.mubr.f32.gmra.mxu0 %v2094
        %v2199 = vpop.f32.mrf.mxu0
        %v2200 = vadd.f32 0.0, %v2199
        %v2201 = vpop.f32.mrf.mxu0
        %2202 = vmatprep.mubr.f32.mxu0 0.0
        %2203 = vmatmul.mubr.f32.gmra.mxu0 %v2097
        %v2204 = vpop.f32.mrf.mxu0
        %v2205 = vadd.f32 0.0, %v2204
        %v2206 = vpop.f32.mrf.mxu0
        %2207 = vmatprep.mubr.f32.mxu0 0.0
        %2208 = vmatmul.mubr.f32.gmra.mxu0 %v2100
        %v2209 = vpop.f32.mrf.mxu0
        %v2210 = vadd.f32 0.0, %v2209
        %v2211 = vpop.f32.mrf.mxu0
        %2212 = vmatprep.mubr.f32.mxu0 0.0
        %2213 = vmatmul.mubr.f32.gmra.mxu0 %v2103
        %v2214 = vpop.f32.mrf.mxu0
        %v2215 = vadd.f32 0.0, %v2214
        %v2216 = vpop.f32.mrf.mxu0
        %2217 = vmatprep.mubr.f32.mxu0 0.0
        %2218 = vmatmul.mubr.f32.gmra.mxu0 %v2106
        %v2219 = vpop.f32.mrf.mxu0
        %v2220 = vadd.f32 0.0, %v2219
        %v2221 = vpop.f32.mrf.mxu0
        %2222 = vdwg.mxu0
        %v2223 = vadd.f32 %v2054, %v2175
        %v2224 = vadd.f32 %v2055, %v2180
        %v2225 = vadd.f32 %v2056, %v2185
        %v2226 = vadd.f32 %v2057, %v2190
        %v2227 = vadd.f32 %v2058, %v2195
        %v2228 = vadd.f32 %v2059, %v2200
        %v2229 = vadd.f32 %v2060, %v2205
        %v2230 = vadd.f32 %v2061, %v2210
        %v2231 = vadd.f32 %v2062, %v2215
        %v2232 = vadd.f32 %v2063, %v2220
        %v2233 = vld [vmem:[%s6] sm:$0x1]
        %v2235 = vlaneseq
        %v2236 = vshrl.u32 %v2235, 7
        %v2237 = vsub.s32 0, %v2236
        %v2238 = vrot.slane %v2233, %v2237
        %v2240 = vadd.f32 %v2223, %v2238
        %v2241 = vadd.f32 %v2224, %v2238
        %v2242 = vadd.f32 %v2225, %v2238
        %v2243 = vadd.f32 %v2226, %v2238
        %v2244 = vadd.f32 %v2227, %v2238
        %v2245 = vadd.f32 %v2228, %v2238
        %v2246 = vadd.f32 %v2229, %v2238
        %v2247 = vadd.f32 %v2230, %v2238
        %v2248 = vadd.f32 %v2231, %v2238
        %v2249 = vadd.f32 %v2232, %v2238
        %vm2252 = vcmask 1045504
        %v2253 = vrot.slane %v2241, 2
        %v2254 = vrot.slane %v2242, 2
        %v2255 = vsel %vm2252, %v2253, %v2254
        %v2257 = vadd.f32 %v2240, %v2255
        %vm2259 = vcmask 1043456
        %v2260 = vrot.slane %v2242, 4
        %v2261 = vrot.slane %v2243, 4
        %v2262 = vsel %vm2259, %v2260, %v2261
        %v2264 = vadd.f32 %v2257, %v2262
        %vm2266 = vcmask 1041408
        %v2267 = vrot.slane %v2243, 6
        %v2268 = vrot.slane %v2244, 6
        %v2269 = vsel %vm2266, %v2267, %v2268
        %v2271 = vadd.f32 %v2264, %v2269
        %v2272 = vadd.f32 %v2271, %v2245
        %v2275 = vrot.slane %v2246, 2
        %v2276 = vrot.slane %v2247, 2
        %v2277 = vsel %vm2252, %v2275, %v2276
        %v2279 = vadd.f32 %v2272, %v2277
        %v2281 = vrot.slane %v2247, 4
        %v2282 = vrot.slane %v2248, 4
        %v2283 = vsel %vm2259, %v2281, %v2282
        %v2285 = vadd.f32 %v2279, %v2283
        %v2287 = vrot.slane %v2248, 6
        %v2288 = vrot.slane %v2249, 6
        %v2289 = vsel %vm2266, %v2287, %v2288
        %v2291 = vadd.f32 %v2285, %v2289
        %v2292 = vsel %vm385, %v2291, 0.0
        %v2293 = vrot.slane %v2292, 4
        %v2294 = vadd.f32 %v2292, %v2293
        %v2295 = vrot.slane %v2294, 2
        %v2296 = vadd.f32 %v2294, %v2295
        %v2297 = vrot.slane %v2296, 1
        %v2298 = vadd.f32 %v2296, %v2297
        %v2299 = vmul.f32 %v2298, 0.015625
        %v2300 = vsub.f32 %v2240, %v2299
        %v2301 = vmul.f32 %v2300, %v2300
        %v2302 = vsub.f32 %v2241, %v2299
        %v2303 = vsub.f32 %v2242, %v2299
        %v2304 = vmul.f32 %v2302, %v2302
        %v2305 = vmul.f32 %v2303, %v2303
        %v2308 = vrot.slane %v2304, 2
        %v2309 = vrot.slane %v2305, 2
        %v2310 = vsel %vm2252, %v2308, %v2309
        %v2312 = vadd.f32 %v2301, %v2310
        %v2313 = vsub.f32 %v2243, %v2299
        %v2314 = vmul.f32 %v2313, %v2313
        %v2316 = vrot.slane %v2305, 4
        %v2317 = vrot.slane %v2314, 4
        %v2318 = vsel %vm2259, %v2316, %v2317
        %v2320 = vadd.f32 %v2312, %v2318
        %v2321 = vsub.f32 %v2244, %v2299
        %v2322 = vmul.f32 %v2321, %v2321
        %v2324 = vrot.slane %v2314, 6
        %v2325 = vrot.slane %v2322, 6
        %v2326 = vsel %vm2266, %v2324, %v2325
        %v2328 = vadd.f32 %v2320, %v2326
        %v2329 = vsub.f32 %v2245, %v2299
        %v2330 = vmul.f32 %v2329, %v2329
        %v2331 = vadd.f32 %v2328, %v2330
        %v2332 = vsub.f32 %v2246, %v2299
        %v2333 = vsub.f32 %v2247, %v2299
        %v2334 = vmul.f32 %v2332, %v2332
        %v2335 = vmul.f32 %v2333, %v2333
        %v2338 = vrot.slane %v2334, 2
        %v2339 = vrot.slane %v2335, 2
        %v2340 = vsel %vm2252, %v2338, %v2339
        %v2342 = vadd.f32 %v2331, %v2340
        %v2343 = vsub.f32 %v2248, %v2299
        %v2344 = vmul.f32 %v2343, %v2343
        %v2346 = vrot.slane %v2335, 4
        %v2347 = vrot.slane %v2344, 4
        %v2348 = vsel %vm2259, %v2346, %v2347
        %v2350 = vadd.f32 %v2342, %v2348
        %v2351 = vsub.f32 %v2249, %v2299
        %v2352 = vmul.f32 %v2351, %v2351
        %v2354 = vrot.slane %v2344, 6
        %v2355 = vrot.slane %v2352, 6
        %v2356 = vsel %vm2266, %v2354, %v2355
        %v2358 = vadd.f32 %v2350, %v2356
        %v2359 = vsel %vm385, %v2358, 0.0
        %v2360 = vrot.slane %v2359, 4
        %v2361 = vadd.f32 %v2359, %v2360
        %v2362 = vrot.slane %v2361, 2
        %v2363 = vadd.f32 %v2361, %v2362
        %v2364 = vrot.slane %v2363, 1
        %v2365 = vadd.f32 %v2363, %v2364
        %v2366 = vmul.f32 %v2365, 0.015625
        %v2367 = vadd.f32 %v2366, 1e-06
        %v2368 = vrsqrt.pop %v2367
        %v2369 = vmul.f32 %v2300, %v2368
        %v2370 = vmul.f32 %v2302, %v2368
        %v2371 = vmul.f32 %v2303, %v2368
        %v2372 = vmul.f32 %v2313, %v2368
        %v2373 = vmul.f32 %v2321, %v2368
        %v2374 = vmul.f32 %v2329, %v2368
        %v2375 = vmul.f32 %v2332, %v2368
        %v2376 = vmul.f32 %v2333, %v2368
        %v2377 = vmul.f32 %v2343, %v2368
        %v2378 = vmul.f32 %v2351, %v2368
        %v2379 = vld [vmem:[%s7] sm:$0x1]
        %v2381 = vlaneseq
        %v2382 = vshrl.u32 %v2381, 7
        %v2383 = vsub.s32 0, %v2382
        %v2384 = vrot.slane %v2379, %v2383
        %v2386 = vmul.f32 %v2369, %v2384
        %v2387 = vmul.f32 %v2370, %v2384
        %v2388 = vmul.f32 %v2371, %v2384
        %v2389 = vmul.f32 %v2372, %v2384
        %v2390 = vmul.f32 %v2373, %v2384
        %v2391 = vmul.f32 %v2374, %v2384
        %v2392 = vmul.f32 %v2375, %v2384
        %v2393 = vmul.f32 %v2376, %v2384
        %v2394 = vmul.f32 %v2377, %v2384
        %v2395 = vmul.f32 %v2378, %v2384
        %v2396 = vld [vmem:[%s8] sm:$0x1]
        %v2398 = vlaneseq
        %v2399 = vshrl.u32 %v2398, 7
        %v2400 = vsub.s32 0, %v2399
        %v2401 = vrot.slane %v2396, %v2400
        %v2403 = vadd.f32 %v2386, %v2401
        %v2404 = vadd.f32 %v2387, %v2401
        %v2405 = vadd.f32 %v2388, %v2401
        %v2406 = vadd.f32 %v2389, %v2401
        %v2407 = vadd.f32 %v2390, %v2401
        %v2408 = vadd.f32 %v2391, %v2401
        %v2409 = vadd.f32 %v2392, %v2401
        %v2410 = vadd.f32 %v2393, %v2401
        %v2411 = vadd.f32 %v2394, %v2401
        %v2412 = vadd.f32 %v2395, %v2401
        %2413 = vst.msk [vmem:[#allocation2 + $0xb] sm:$0xff] %vm385, %v2403
        %2414 = vst.msk [vmem:[#allocation2 + $0x3] sm:$0x80] %vm707, %v2403
        %2415 = vst.msk [vmem:[#allocation2 + $0x13] sm:$0x1] %vm709, %v2403
        %vm2416 = vcmask 261122
        %2417 = vst.msk [vmem:[#allocation2 + $0x13] sm:$0xfc] %vm2416, %v2404
        %vm2418 = vcmask 254976
        %2419 = vst.msk [vmem:[#allocation2 + $0x1b] sm:$0x3] %vm2418, %v2405
        %vm2420 = vcmask 254977
        %2421 = vst.msk [vmem:[#allocation2 + $0x13] sm:$0x2] %vm2420, %v2405
        %vm2422 = vcmask 256002
        %2423 = vst.msk [vmem:[#allocation2 + $0x1b] sm:$0x4] %vm2422, %v2404
        %vm2424 = vcmask 261124
        %2425 = vst.msk [vmem:[#allocation2 + $0x1b] sm:$0xf0] %vm2424, %v2405
        %vm2426 = vcmask 257024
        %2427 = vst.msk [vmem:[#allocation2 + $0x23] sm:$0xf] %vm2426, %v2406
        %vm2428 = vcmask 257027
        %2429 = vst.msk [vmem:[#allocation2 + $0x1b] sm:$0x8] %vm2428, %v2406
        %vm2430 = vcmask 258052
        %2431 = vst.msk [vmem:[#allocation2 + $0x23] sm:$0x10] %vm2430, %v2405
        %vm2432 = vcmask 261126
        %2433 = vst.msk [vmem:[#allocation2 + $0x23] sm:$0xc0] %vm2432, %v2406
        %vm2434 = vcmask 259072
        %2435 = vst.msk [vmem:[#allocation2 + $0x2b] sm:$0x3f] %vm2434, %v2407
        %vm2436 = vcmask 259077
        %2437 = vst.msk [vmem:[#allocation2 + $0x23] sm:$0x20] %vm2436, %v2407
        %vm2438 = vcmask 260102
        %2439 = vst.msk [vmem:[#allocation2 + $0x2b] sm:$0x40] %vm2438, %v2406
        %2440 = vst.msk [vmem:[#allocation2 + $0x33] sm:$0xff] %vm385, %v2408
        %2441 = vst.msk [vmem:[#allocation2 + $0x2b] sm:$0x80] %vm707, %v2408
        %2442 = vst.msk [vmem:[#allocation2 + $0x3b] sm:$0x1] %vm709, %v2408
        %2443 = vst.msk [vmem:[#allocation2 + $0x3b] sm:$0xfc] %vm2416, %v2409
        %2444 = vst.msk [vmem:[#allocation2 + $0x43] sm:$0x3] %vm2418, %v2410
        %2445 = vst.msk [vmem:[#allocation2 + $0x3b] sm:$0x2] %vm2420, %v2410
        %2446 = vst.msk [vmem:[#allocation2 + $0x43] sm:$0x4] %vm2422, %v2409
        %2447 = vst.msk [vmem:[#allocation2 + $0x43] sm:$0xf0] %vm2424, %v2410
        %2448 = vst.msk [vmem:[#allocation2 + $0x4b] sm:$0xf] %vm2426, %v2411
        %2449 = vst.msk [vmem:[#allocation2 + $0x43] sm:$0x8] %vm2428, %v2411
        %2450 = vst.msk [vmem:[#allocation2 + $0x4b] sm:$0x10] %vm2430, %v2410
        %2451 = vst.msk [vmem:[#allocation2 + $0x4b] sm:$0xc0] %vm2432, %v2411
        %2452 = vst.msk [vmem:[#allocation2 + $0x53] sm:$0x3f] %vm2434, %v2412
        %2453 = vst.msk [vmem:[#allocation2 + $0x4b] sm:$0x20] %vm2436, %v2412
        %2454 = vst.msk [vmem:[#allocation2 + $0x53] sm:$0x40] %vm2438, %v2411
        %v2455 = vld [vmem:[#allocation2] sm:$0xff]
        %v2456 = vld [vmem:[#allocation2 + $0x8] sm:$0xff]
        %v2457 = vld [vmem:[#allocation2 + $0x10] sm:$0xff]
        %v2458 = vld [vmem:[#allocation2 + $0x18] sm:$0xff]
        %v2459 = vld [vmem:[#allocation2 + $0x20] sm:$0xff]
        %v2460 = vld [vmem:[#allocation2 + $0x28] sm:$0xff]
        %v2461 = vld [vmem:[#allocation2 + $0x30] sm:$0xff]
        %v2462 = vld [vmem:[#allocation2 + $0x38] sm:$0xff]
        %v2463 = vld [vmem:[#allocation2 + $0x40] sm:$0xff]
        %v2464 = vld [vmem:[#allocation2 + $0x48] sm:$0xff]
        %v2465 = vld [vmem:[%s9] sm:$0xff]
        %v2466 = vld [vmem:[%s9 + $0x8] sm:$0xff]
        %v2467 = vld [vmem:[%s9 + $0x10] sm:$0xff]
        %v2468 = vld [vmem:[%s9 + $0x18] sm:$0xff]
        %v2469 = vld [vmem:[#allocation2 + $0x1] sm:$0xff]
        %v2470 = vld [vmem:[#allocation2 + $0x9] sm:$0xff]
        %v2471 = vld [vmem:[#allocation2 + $0x11] sm:$0xff]
        %v2472 = vld [vmem:[#allocation2 + $0x19] sm:$0xff]
        %v2473 = vld [vmem:[#allocation2 + $0x21] sm:$0xff]
        %v2474 = vld [vmem:[#allocation2 + $0x29] sm:$0xff]
        %v2475 = vld [vmem:[#allocation2 + $0x31] sm:$0xff]
        %v2476 = vld [vmem:[#allocation2 + $0x39] sm:$0xff]
        %v2477 = vld [vmem:[#allocation2 + $0x41] sm:$0xff]
        %v2478 = vld [vmem:[#allocation2 + $0x49] sm:$0xff]
        %v2479 = vld [vmem:[%s9 + $0x20] sm:$0xff]
        %v2480 = vld [vmem:[%s9 + $0x28] sm:$0xff]
        %v2481 = vld [vmem:[%s9 + $0x30] sm:$0xff]
        %v2482 = vld [vmem:[%s9 + $0x38] sm:$0xff]
        %v2484 = vsel %vm385, %v2469, 0
        %v2487 = vsel %vm385, %v2470, 0
        %v2490 = vsel %vm385, %v2471, 0
        %v2493 = vsel %vm385, %v2472, 0
        %v2496 = vsel %vm385, %v2473, 0
        %v2499 = vsel %vm385, %v2474, 0
        %v2502 = vsel %vm385, %v2475, 0
        %v2505 = vsel %vm385, %v2476, 0
        %v2508 = vsel %vm385, %v2477, 0
        %v2511 = vsel %vm385, %v2478, 0
        %2513 = vmatprep.subr.mxu0 0.0
        %2514 = vmatpush1.msra.mxu0 0.0
        %2515 = vmatprep.subr.mxu0 0.0
        %2516 = vmatpush1.msra.mxu0 0.0
        %2517 = vmatprep.subr.mxu0 0.0
        %2518 = vmatpush1.msra.mxu0 0.0
        %2519 = vmatprep.subr.mxu0 0.0
        %2520 = vmatpush1.msra.mxu0 0.0
        %2521 = vmatprep.subr.mxu0 0.0
        %2522 = vmatpush1.msra.mxu0 0.0
        %2523 = vmatprep.subr.mxu0 0.0
        %2524 = vmatpush1.msra.mxu0 0.0
        %2525 = vmatprep.subr.mxu0 0.0
        %2526 = vmatpush1.msra.mxu0 0.0
        %2527 = vmatprep.subr.mxu0 0.0
        %2528 = vmatpush1.msra.mxu0 0.0
        %2529 = vmatprep.subr.mxu0 0.0
        %2530 = vmatpush1.msra.mxu0 0.0
        %2531 = vmatprep.subr.mxu0 0.0
        %2532 = vmatpush1.msra.mxu0 0.0
        %2533 = vmatprep.subr.mxu0 0.0
        %2534 = vmatpush1.msra.mxu0 0.0
        %2535 = vmatprep.subr.mxu0 0.0
        %2536 = vmatpush1.msra.mxu0 0.0
        %2537 = vmatprep.subr.mxu0 0.0
        %2538 = vmatpush1.msra.mxu0 %v2482
        %2539 = vmatprep.subr.mxu0 0.0
        %2540 = vmatpush1.msra.mxu0 %v2481
        %2541 = vmatprep.subr.mxu0 0.0
        %2542 = vmatpush1.msra.mxu0 %v2480
        %2543 = vmatprep.subr.mxu0 0.0
        %2544 = vmatpush1.msra.mxu0 %v2479
        %2545 = vmatprep.subr.mxu0 0.0
        %2546 = vmatpush2.msra.mxu0 0.0
        %2547 = vmatprep.subr.mxu0 0.0
        %2548 = vmatpush2.msra.mxu0 0.0
        %2549 = vmatprep.subr.mxu0 0.0
        %2550 = vmatpush2.msra.mxu0 0.0
        %2551 = vmatprep.subr.mxu0 0.0
        %2552 = vmatpush2.msra.mxu0 0.0
        %2553 = vmatprep.subr.mxu0 0.0
        %2554 = vmatpush2.msra.mxu0 0.0
        %2555 = vmatprep.subr.mxu0 0.0
        %2556 = vmatpush2.msra.mxu0 0.0
        %2557 = vmatprep.subr.mxu0 0.0
        %2558 = vmatpush2.msra.mxu0 0.0
        %2559 = vmatprep.subr.mxu0 0.0
        %2560 = vmatpush2.msra.mxu0 0.0
        %2561 = vmatprep.subr.mxu0 0.0
        %2562 = vmatpush2.msra.mxu0 0.0
        %2563 = vmatprep.subr.mxu0 0.0
        %2564 = vmatpush2.msra.mxu0 0.0
        %2565 = vmatprep.subr.mxu0 0.0
        %2566 = vmatpush2.msra.mxu0 0.0
        %2567 = vmatprep.subr.mxu0 0.0
        %2568 = vmatpush2.msra.mxu0 0.0
        %2569 = vmatprep.subr.mxu0 0.0
        %2570 = vmatpush2.msra.mxu0 0.0
        %2571 = vmatprep.subr.mxu0 0.0
        %2572 = vmatpush2.msra.mxu0 0.0
        %2573 = vmatprep.subr.mxu0 0.0
        %2574 = vmatpush2.msra.mxu0 0.0
        %2575 = vmatprep.subr.mxu0 0.0
        %2576 = vmatpush2.msra.mxu0 0.0
        %2577 = vmatprep.mubr.f32.mxu0 0.0
        %2578 = vmatmul.mubr.f32.gmra.mxu0 %v2484
        %v2579 = vpop.f32.mrf.mxu0
        %v2580 = vadd.f32 0.0, %v2579
        %v2581 = vpop.f32.mrf.mxu0
        %2582 = vmatprep.mubr.f32.mxu0 0.0
        %2583 = vmatmul.mubr.f32.gmra.mxu0 %v2487
        %v2584 = vpop.f32.mrf.mxu0
        %v2585 = vadd.f32 0.0, %v2584
        %v2586 = vpop.f32.mrf.mxu0
        %2587 = vmatprep.mubr.f32.mxu0 0.0
        %2588 = vmatmul.mubr.f32.gmra.mxu0 %v2490
        %v2589 = vpop.f32.mrf.mxu0
        %v2590 = vadd.f32 0.0, %v2589
        %v2591 = vpop.f32.mrf.mxu0
        %2592 = vmatprep.mubr.f32.mxu0 0.0
        %2593 = vmatmul.mubr.f32.gmra.mxu0 %v2493
        %v2594 = vpop.f32.mrf.mxu0
        %v2595 = vadd.f32 0.0, %v2594
        %v2596 = vpop.f32.mrf.mxu0
        %2597 = vmatprep.mubr.f32.mxu0 0.0
        %2598 = vmatmul.mubr.f32.gmra.mxu0 %v2496
        %v2599 = vpop.f32.mrf.mxu0
        %v2600 = vadd.f32 0.0, %v2599
        %v2601 = vpop.f32.mrf.mxu0
        %2602 = vmatprep.mubr.f32.mxu0 0.0
        %2603 = vmatmul.mubr.f32.gmra.mxu0 %v2499
        %v2604 = vpop.f32.mrf.mxu0
        %v2605 = vadd.f32 0.0, %v2604
        %v2606 = vpop.f32.mrf.mxu0
        %2607 = vmatprep.mubr.f32.mxu0 0.0
        %2608 = vmatmul.mubr.f32.gmra.mxu0 %v2502
        %v2609 = vpop.f32.mrf.mxu0
        %v2610 = vadd.f32 0.0, %v2609
        %v2611 = vpop.f32.mrf.mxu0
        %2612 = vmatprep.mubr.f32.mxu0 0.0
        %2613 = vmatmul.mubr.f32.gmra.mxu0 %v2505
        %v2614 = vpop.f32.mrf.mxu0
        %v2615 = vadd.f32 0.0, %v2614
        %v2616 = vpop.f32.mrf.mxu0
        %2617 = vmatprep.mubr.f32.mxu0 0.0
        %2618 = vmatmul.mubr.f32.gmra.mxu0 %v2508
        %v2619 = vpop.f32.mrf.mxu0
        %v2620 = vadd.f32 0.0, %v2619
        %v2621 = vpop.f32.mrf.mxu0
        %2622 = vmatprep.mubr.f32.mxu0 0.0
        %2623 = vmatmul.mubr.f32.gmra.mxu0 %v2511
        %v2624 = vpop.f32.mrf.mxu0
        %v2625 = vadd.f32 0.0, %v2624
        %v2626 = vpop.f32.mrf.mxu0
        %2627 = vdwg.mxu0
        %v2629 = vsel %vm385, %v2455, 0
        %v2632 = vsel %vm385, %v2456, 0
        %v2635 = vsel %vm385, %v2457, 0
        %v2638 = vsel %vm385, %v2458, 0
        %v2641 = vsel %vm385, %v2459, 0
        %v2644 = vsel %vm385, %v2460, 0
        %v2647 = vsel %vm385, %v2461, 0
        %v2650 = vsel %vm385, %v2462, 0
        %v2653 = vsel %vm385, %v2463, 0
        %v2656 = vsel %vm385, %v2464, 0
        %2658 = vmatprep.subr.mxu0 0.0
        %2659 = vmatpush1.msra.mxu0 0.0
        %2660 = vmatprep.subr.mxu0 0.0
        %2661 = vmatpush1.msra.mxu0 0.0
        %2662 = vmatprep.subr.mxu0 0.0
        %2663 = vmatpush1.msra.mxu0 0.0
        %2664 = vmatprep.subr.mxu0 0.0
        %2665 = vmatpush1.msra.mxu0 0.0
        %2666 = vmatprep.subr.mxu0 0.0
        %2667 = vmatpush1.msra.mxu0 0.0
        %2668 = vmatprep.subr.mxu0 0.0
        %2669 = vmatpush1.msra.mxu0 0.0
        %2670 = vmatprep.subr.mxu0 0.0
        %2671 = vmatpush1.msra.mxu0 0.0
        %2672 = vmatprep.subr.mxu0 0.0
        %2673 = vmatpush1.msra.mxu0 0.0
        %2674 = vmatprep.subr.mxu0 0.0
        %2675 = vmatpush1.msra.mxu0 0.0
        %2676 = vmatprep.subr.mxu0 0.0
        %2677 = vmatpush1.msra.mxu0 0.0
        %2678 = vmatprep.subr.mxu0 0.0
        %2679 = vmatpush1.msra.mxu0 0.0
        %2680 = vmatprep.subr.mxu0 0.0
        %2681 = vmatpush1.msra.mxu0 0.0
        %2682 = vmatprep.subr.mxu0 0.0
        %2683 = vmatpush1.msra.mxu0 %v2468
        %2684 = vmatprep.subr.mxu0 0.0
        %2685 = vmatpush1.msra.mxu0 %v2467
        %2686 = vmatprep.subr.mxu0 0.0
        %2687 = vmatpush1.msra.mxu0 %v2466
        %2688 = vmatprep.subr.mxu0 0.0
        %2689 = vmatpush1.msra.mxu0 %v2465
        %2690 = vmatprep.subr.mxu0 0.0
        %2691 = vmatpush2.msra.mxu0 0.0
        %2692 = vmatprep.subr.mxu0 0.0
        %2693 = vmatpush2.msra.mxu0 0.0
        %2694 = vmatprep.subr.mxu0 0.0
        %2695 = vmatpush2.msra.mxu0 0.0
        %2696 = vmatprep.subr.mxu0 0.0
        %2697 = vmatpush2.msra.mxu0 0.0
        %2698 = vmatprep.subr.mxu0 0.0
        %2699 = vmatpush2.msra.mxu0 0.0
        %2700 = vmatprep.subr.mxu0 0.0
        %2701 = vmatpush2.msra.mxu0 0.0
        %2702 = vmatprep.subr.mxu0 0.0
        %2703 = vmatpush2.msra.mxu0 0.0
        %2704 = vmatprep.subr.mxu0 0.0
        %2705 = vmatpush2.msra.mxu0 0.0
        %2706 = vmatprep.subr.mxu0 0.0
        %2707 = vmatpush2.msra.mxu0 0.0
        %2708 = vmatprep.subr.mxu0 0.0
        %2709 = vmatpush2.msra.mxu0 0.0
        %2710 = vmatprep.subr.mxu0 0.0
        %2711 = vmatpush2.msra.mxu0 0.0
        %2712 = vmatprep.subr.mxu0 0.0
        %2713 = vmatpush2.msra.mxu0 0.0
        %2714 = vmatprep.subr.mxu0 0.0
        %2715 = vmatpush2.msra.mxu0 0.0
        %2716 = vmatprep.subr.mxu0 0.0
        %2717 = vmatpush2.msra.mxu0 0.0
        %2718 = vmatprep.subr.mxu0 0.0
        %2719 = vmatpush2.msra.mxu0 0.0
        %2720 = vmatprep.subr.mxu0 0.0
        %2721 = vmatpush2.msra.mxu0 0.0
        %2722 = vmatprep.mubr.f32.mxu0 0.0
        %2723 = vmatmul.mubr.f32.gmra.mxu0 %v2629
        %v2724 = vpop.f32.mrf.mxu0
        %v2725 = vadd.f32 %v2580, %v2724
        %v2726 = vpop.f32.mrf.mxu0
        %2727 = vmatprep.mubr.f32.mxu0 0.0
        %2728 = vmatmul.mubr.f32.gmra.mxu0 %v2632
        %v2729 = vpop.f32.mrf.mxu0
        %v2730 = vadd.f32 %v2585, %v2729
        %v2731 = vpop.f32.mrf.mxu0
        %2732 = vmatprep.mubr.f32.mxu0 0.0
        %2733 = vmatmul.mubr.f32.gmra.mxu0 %v2635
        %v2734 = vpop.f32.mrf.mxu0
        %v2735 = vadd.f32 %v2590, %v2734
        %v2736 = vpop.f32.mrf.mxu0
        %2737 = vmatprep.mubr.f32.mxu0 0.0
        %2738 = vmatmul.mubr.f32.gmra.mxu0 %v2638
        %v2739 = vpop.f32.mrf.mxu0
        %v2740 = vadd.f32 %v2595, %v2739
        %v2741 = vpop.f32.mrf.mxu0
        %2742 = vmatprep.mubr.f32.mxu0 0.0
        %2743 = vmatmul.mubr.f32.gmra.mxu0 %v2641
        %v2744 = vpop.f32.mrf.mxu0
        %v2745 = vadd.f32 %v2600, %v2744
        %v2746 = vpop.f32.mrf.mxu0
        %2747 = vmatprep.mubr.f32.mxu0 0.0
        %2748 = vmatmul.mubr.f32.gmra.mxu0 %v2644
        %v2749 = vpop.f32.mrf.mxu0
        %v2750 = vadd.f32 %v2605, %v2749
        %v2751 = vpop.f32.mrf.mxu0
        %2752 = vmatprep.mubr.f32.mxu0 0.0
        %2753 = vmatmul.mubr.f32.gmra.mxu0 %v2647
        %v2754 = vpop.f32.mrf.mxu0
        %v2755 = vadd.f32 %v2610, %v2754
        %v2756 = vpop.f32.mrf.mxu0
        %2757 = vmatprep.mubr.f32.mxu0 0.0
        %2758 = vmatmul.mubr.f32.gmra.mxu0 %v2650
        %v2759 = vpop.f32.mrf.mxu0
        %v2760 = vadd.f32 %v2615, %v2759
        %v2761 = vpop.f32.mrf.mxu0
        %2762 = vmatprep.mubr.f32.mxu0 0.0
        %2763 = vmatmul.mubr.f32.gmra.mxu0 %v2653
        %v2764 = vpop.f32.mrf.mxu0
        %v2765 = vadd.f32 %v2620, %v2764
        %v2766 = vpop.f32.mrf.mxu0
        %2767 = vmatprep.mubr.f32.mxu0 0.0
        %2768 = vmatmul.mubr.f32.gmra.mxu0 %v2656
        %v2769 = vpop.f32.mrf.mxu0
        %v2770 = vadd.f32 %v2625, %v2769
        %v2771 = vpop.f32.mrf.mxu0
        %2772 = vdwg.mxu0
        %v2773 = vld [vmem:[#allocation2 + $0x2] sm:$0xff]
        %v2774 = vld [vmem:[#allocation2 + $0xa] sm:$0xff]
        %v2775 = vld [vmem:[#allocation2 + $0x12] sm:$0xff]
        %v2776 = vld [vmem:[#allocation2 + $0x1a] sm:$0xff]
        %v2777 = vld [vmem:[#allocation2 + $0x22] sm:$0xff]
        %v2778 = vld [vmem:[#allocation2 + $0x2a] sm:$0xff]
        %v2779 = vld [vmem:[#allocation2 + $0x32] sm:$0xff]
        %v2780 = vld [vmem:[#allocation2 + $0x3a] sm:$0xff]
        %v2781 = vld [vmem:[#allocation2 + $0x42] sm:$0xff]
        %v2782 = vld [vmem:[#allocation2 + $0x4a] sm:$0xff]
        %v2783 = vld [vmem:[%s9 + $0x40] sm:$0xff]
        %v2784 = vld [vmem:[%s9 + $0x48] sm:$0xff]
        %v2785 = vld [vmem:[%s9 + $0x50] sm:$0xff]
        %v2786 = vld [vmem:[%s9 + $0x58] sm:$0xff]
        %v2788 = vsel %vm385, %v2773, 0
        %v2791 = vsel %vm385, %v2774, 0
        %v2794 = vsel %vm385, %v2775, 0
        %v2797 = vsel %vm385, %v2776, 0
        %v2800 = vsel %vm385, %v2777, 0
        %v2803 = vsel %vm385, %v2778, 0
        %v2806 = vsel %vm385, %v2779, 0
        %v2809 = vsel %vm385, %v2780, 0
        %v2812 = vsel %vm385, %v2781, 0
        %v2815 = vsel %vm385, %v2782, 0
        %2817 = vmatprep.subr.mxu0 0.0
        %2818 = vmatpush1.msra.mxu0 0.0
        %2819 = vmatprep.subr.mxu0 0.0
        %2820 = vmatpush1.msra.mxu0 0.0
        %2821 = vmatprep.subr.mxu0 0.0
        %2822 = vmatpush1.msra.mxu0 0.0
        %2823 = vmatprep.subr.mxu0 0.0
        %2824 = vmatpush1.msra.mxu0 0.0
        %2825 = vmatprep.subr.mxu0 0.0
        %2826 = vmatpush1.msra.mxu0 0.0
        %2827 = vmatprep.subr.mxu0 0.0
        %2828 = vmatpush1.msra.mxu0 0.0
        %2829 = vmatprep.subr.mxu0 0.0
        %2830 = vmatpush1.msra.mxu0 0.0
        %2831 = vmatprep.subr.mxu0 0.0
        %2832 = vmatpush1.msra.mxu0 0.0
        %2833 = vmatprep.subr.mxu0 0.0
        %2834 = vmatpush1.msra.mxu0 0.0
        %2835 = vmatprep.subr.mxu0 0.0
        %2836 = vmatpush1.msra.mxu0 0.0
        %2837 = vmatprep.subr.mxu0 0.0
        %2838 = vmatpush1.msra.mxu0 0.0
        %2839 = vmatprep.subr.mxu0 0.0
        %2840 = vmatpush1.msra.mxu0 0.0
        %2841 = vmatprep.subr.mxu0 0.0
        %2842 = vmatpush1.msra.mxu0 %v2786
        %2843 = vmatprep.subr.mxu0 0.0
        %2844 = vmatpush1.msra.mxu0 %v2785
        %2845 = vmatprep.subr.mxu0 0.0
        %2846 = vmatpush1.msra.mxu0 %v2784
        %2847 = vmatprep.subr.mxu0 0.0
        %2848 = vmatpush1.msra.mxu0 %v2783
        %2849 = vmatprep.subr.mxu0 0.0
        %2850 = vmatpush2.msra.mxu0 0.0
        %2851 = vmatprep.subr.mxu0 0.0
        %2852 = vmatpush2.msra.mxu0 0.0
        %2853 = vmatprep.subr.mxu0 0.0
        %2854 = vmatpush2.msra.mxu0 0.0
        %2855 = vmatprep.subr.mxu0 0.0
        %2856 = vmatpush2.msra.mxu0 0.0
        %2857 = vmatprep.subr.mxu0 0.0
        %2858 = vmatpush2.msra.mxu0 0.0
        %2859 = vmatprep.subr.mxu0 0.0
        %2860 = vmatpush2.msra.mxu0 0.0
        %2861 = vmatprep.subr.mxu0 0.0
        %2862 = vmatpush2.msra.mxu0 0.0
        %2863 = vmatprep.subr.mxu0 0.0
        %2864 = vmatpush2.msra.mxu0 0.0
        %2865 = vmatprep.subr.mxu0 0.0
        %2866 = vmatpush2.msra.mxu0 0.0
        %2867 = vmatprep.subr.mxu0 0.0
        %2868 = vmatpush2.msra.mxu0 0.0
        %2869 = vmatprep.subr.mxu0 0.0
        %2870 = vmatpush2.msra.mxu0 0.0
        %2871 = vmatprep.subr.mxu0 0.0
        %2872 = vmatpush2.msra.mxu0 0.0
        %2873 = vmatprep.subr.mxu0 0.0
        %2874 = vmatpush2.msra.mxu0 0.0
        %2875 = vmatprep.subr.mxu0 0.0
        %2876 = vmatpush2.msra.mxu0 0.0
        %2877 = vmatprep.subr.mxu0 0.0
        %2878 = vmatpush2.msra.mxu0 0.0
        %2879 = vmatprep.subr.mxu0 0.0
        %2880 = vmatpush2.msra.mxu0 0.0
        %2881 = vmatprep.mubr.f32.mxu0 0.0
        %2882 = vmatmul.mubr.f32.gmra.mxu0 %v2788
        %v2883 = vpop.f32.mrf.mxu0
        %v2884 = vadd.f32 0.0, %v2883
        %v2885 = vpop.f32.mrf.mxu0
        %2886 = vmatprep.mubr.f32.mxu0 0.0
        %2887 = vmatmul.mubr.f32.gmra.mxu0 %v2791
        %v2888 = vpop.f32.mrf.mxu0
        %v2889 = vadd.f32 0.0, %v2888
        %v2890 = vpop.f32.mrf.mxu0
        %2891 = vmatprep.mubr.f32.mxu0 0.0
        %2892 = vmatmul.mubr.f32.gmra.mxu0 %v2794
        %v2893 = vpop.f32.mrf.mxu0
        %v2894 = vadd.f32 0.0, %v2893
        %v2895 = vpop.f32.mrf.mxu0
        %2896 = vmatprep.mubr.f32.mxu0 0.0
        %2897 = vmatmul.mubr.f32.gmra.mxu0 %v2797
        %v2898 = vpop.f32.mrf.mxu0
        %v2899 = vadd.f32 0.0, %v2898
        %v2900 = vpop.f32.mrf.mxu0
        %2901 = vmatprep.mubr.f32.mxu0 0.0
        %2902 = vmatmul.mubr.f32.gmra.mxu0 %v2800
        %v2903 = vpop.f32.mrf.mxu0
        %v2904 = vadd.f32 0.0, %v2903
        %v2905 = vpop.f32.mrf.mxu0
        %2906 = vmatprep.mubr.f32.mxu0 0.0
        %2907 = vmatmul.mubr.f32.gmra.mxu0 %v2803
        %v2908 = vpop.f32.mrf.mxu0
        %v2909 = vadd.f32 0.0, %v2908
        %v2910 = vpop.f32.mrf.mxu0
        %2911 = vmatprep.mubr.f32.mxu0 0.0
        %2912 = vmatmul.mubr.f32.gmra.mxu0 %v2806
        %v2913 = vpop.f32.mrf.mxu0
        %v2914 = vadd.f32 0.0, %v2913
        %v2915 = vpop.f32.mrf.mxu0
        %2916 = vmatprep.mubr.f32.mxu0 0.0
        %2917 = vmatmul.mubr.f32.gmra.mxu0 %v2809
        %v2918 = vpop.f32.mrf.mxu0
        %v2919 = vadd.f32 0.0, %v2918
        %v2920 = vpop.f32.mrf.mxu0
        %2921 = vmatprep.mubr.f32.mxu0 0.0
        %2922 = vmatmul.mubr.f32.gmra.mxu0 %v2812
        %v2923 = vpop.f32.mrf.mxu0
        %v2924 = vadd.f32 0.0, %v2923
        %v2925 = vpop.f32.mrf.mxu0
        %2926 = vmatprep.mubr.f32.mxu0 0.0
        %2927 = vmatmul.mubr.f32.gmra.mxu0 %v2815
        %v2928 = vpop.f32.mrf.mxu0
        %v2929 = vadd.f32 0.0, %v2928
        %v2930 = vpop.f32.mrf.mxu0
        %2931 = vdwg.mxu0
        %v2932 = vadd.f32 %v2725, %v2884
        %v2933 = vadd.f32 %v2730, %v2889
        %v2934 = vadd.f32 %v2735, %v2894
        %v2935 = vadd.f32 %v2740, %v2899
        %v2936 = vadd.f32 %v2745, %v2904
        %v2937 = vadd.f32 %v2750, %v2909
        %v2938 = vadd.f32 %v2755, %v2914
        %v2939 = vadd.f32 %v2760, %v2919
        %v2940 = vadd.f32 %v2765, %v2924
        %v2941 = vadd.f32 %v2770, %v2929
        %v2942 = vld [vmem:[#allocation2 + $0xa] sm:$0xff]
        %v2943 = vld [vmem:[#allocation2 + $0x12] sm:$0xff]
        %v2944 = vld [vmem:[#allocation2 + $0x1a] sm:$0xff]
        %v2945 = vld [vmem:[#allocation2 + $0x22] sm:$0xff]
        %v2946 = vld [vmem:[#allocation2 + $0x2a] sm:$0xff]
        %v2947 = vld [vmem:[#allocation2 + $0x32] sm:$0xff]
        %v2948 = vld [vmem:[#allocation2 + $0x3a] sm:$0xff]
        %v2949 = vld [vmem:[#allocation2 + $0x42] sm:$0xff]
        %v2950 = vld [vmem:[#allocation2 + $0x4a] sm:$0xff]
        %v2951 = vld [vmem:[#allocation2 + $0x52] sm:$0xff]
        %v2952 = vld [vmem:[%s9 + $0x60] sm:$0xff]
        %v2953 = vld [vmem:[%s9 + $0x68] sm:$0xff]
        %v2954 = vld [vmem:[%s9 + $0x70] sm:$0xff]
        %v2955 = vld [vmem:[%s9 + $0x78] sm:$0xff]
        %v2957 = vsel %vm385, %v2942, 0
        %v2960 = vsel %vm385, %v2943, 0
        %v2963 = vsel %vm385, %v2944, 0
        %v2966 = vsel %vm385, %v2945, 0
        %v2969 = vsel %vm385, %v2946, 0
        %v2972 = vsel %vm385, %v2947, 0
        %v2975 = vsel %vm385, %v2948, 0
        %v2978 = vsel %vm385, %v2949, 0
        %v2981 = vsel %vm385, %v2950, 0
        %v2984 = vsel %vm385, %v2951, 0
        %2986 = vmatprep.subr.mxu0 0.0
        %2987 = vmatpush1.msra.mxu0 0.0
        %2988 = vmatprep.subr.mxu0 0.0
        %2989 = vmatpush1.msra.mxu0 0.0
        %2990 = vmatprep.subr.mxu0 0.0
        %2991 = vmatpush1.msra.mxu0 0.0
        %2992 = vmatprep.subr.mxu0 0.0
        %2993 = vmatpush1.msra.mxu0 0.0
        %2994 = vmatprep.subr.mxu0 0.0
        %2995 = vmatpush1.msra.mxu0 0.0
        %2996 = vmatprep.subr.mxu0 0.0
        %2997 = vmatpush1.msra.mxu0 0.0
        %2998 = vmatprep.subr.mxu0 0.0
        %2999 = vmatpush1.msra.mxu0 0.0
        %3000 = vmatprep.subr.mxu0 0.0
        %3001 = vmatpush1.msra.mxu0 0.0
        %3002 = vmatprep.subr.mxu0 0.0
        %3003 = vmatpush1.msra.mxu0 0.0
        %3004 = vmatprep.subr.mxu0 0.0
        %3005 = vmatpush1.msra.mxu0 0.0
        %3006 = vmatprep.subr.mxu0 0.0
        %3007 = vmatpush1.msra.mxu0 0.0
        %3008 = vmatprep.subr.mxu0 0.0
        %3009 = vmatpush1.msra.mxu0 0.0
        %3010 = vmatprep.subr.mxu0 0.0
        %3011 = vmatpush1.msra.mxu0 %v2955
        %3012 = vmatprep.subr.mxu0 0.0
        %3013 = vmatpush1.msra.mxu0 %v2954
        %3014 = vmatprep.subr.mxu0 0.0
        %3015 = vmatpush1.msra.mxu0 %v2953
        %3016 = vmatprep.subr.mxu0 0.0
        %3017 = vmatpush1.msra.mxu0 %v2952
        %3018 = vmatprep.subr.mxu0 0.0
        %3019 = vmatpush2.msra.mxu0 0.0
        %3020 = vmatprep.subr.mxu0 0.0
        %3021 = vmatpush2.msra.mxu0 0.0
        %3022 = vmatprep.subr.mxu0 0.0
        %3023 = vmatpush2.msra.mxu0 0.0
        %3024 = vmatprep.subr.mxu0 0.0
        %3025 = vmatpush2.msra.mxu0 0.0
        %3026 = vmatprep.subr.mxu0 0.0
        %3027 = vmatpush2.msra.mxu0 0.0
        %3028 = vmatprep.subr.mxu0 0.0
        %3029 = vmatpush2.msra.mxu0 0.0
        %3030 = vmatprep.subr.mxu0 0.0
        %3031 = vmatpush2.msra.mxu0 0.0
        %3032 = vmatprep.subr.mxu0 0.0
        %3033 = vmatpush2.msra.mxu0 0.0
        %3034 = vmatprep.subr.mxu0 0.0
        %3035 = vmatpush2.msra.mxu0 0.0
        %3036 = vmatprep.subr.mxu0 0.0
        %3037 = vmatpush2.msra.mxu0 0.0
        %3038 = vmatprep.subr.mxu0 0.0
        %3039 = vmatpush2.msra.mxu0 0.0
        %3040 = vmatprep.subr.mxu0 0.0
        %3041 = vmatpush2.msra.mxu0 0.0
        %3042 = vmatprep.subr.mxu0 0.0
        %3043 = vmatpush2.msra.mxu0 0.0
        %3044 = vmatprep.subr.mxu0 0.0
        %3045 = vmatpush2.msra.mxu0 0.0
        %3046 = vmatprep.subr.mxu0 0.0
        %3047 = vmatpush2.msra.mxu0 0.0
        %3048 = vmatprep.subr.mxu0 0.0
        %3049 = vmatpush2.msra.mxu0 0.0
        %3050 = vmatprep.mubr.f32.mxu0 0.0
        %3051 = vmatmul.mubr.f32.gmra.mxu0 %v2957
        %v3052 = vpop.f32.mrf.mxu0
        %v3053 = vadd.f32 0.0, %v3052
        %v3054 = vpop.f32.mrf.mxu0
        %3055 = vmatprep.mubr.f32.mxu0 0.0
        %3056 = vmatmul.mubr.f32.gmra.mxu0 %v2960
        %v3057 = vpop.f32.mrf.mxu0
        %v3058 = vadd.f32 0.0, %v3057
        %v3059 = vpop.f32.mrf.mxu0
        %3060 = vmatprep.mubr.f32.mxu0 0.0
        %3061 = vmatmul.mubr.f32.gmra.mxu0 %v2963
        %v3062 = vpop.f32.mrf.mxu0
        %v3063 = vadd.f32 0.0, %v3062
        %v3064 = vpop.f32.mrf.mxu0
        %3065 = vmatprep.mubr.f32.mxu0 0.0
        %3066 = vmatmul.mubr.f32.gmra.mxu0 %v2966
        %v3067 = vpop.f32.mrf.mxu0
        %v3068 = vadd.f32 0.0, %v3067
        %v3069 = vpop.f32.mrf.mxu0
        %3070 = vmatprep.mubr.f32.mxu0 0.0
        %3071 = vmatmul.mubr.f32.gmra.mxu0 %v2969
        %v3072 = vpop.f32.mrf.mxu0
        %v3073 = vadd.f32 0.0, %v3072
        %v3074 = vpop.f32.mrf.mxu0
        %3075 = vmatprep.mubr.f32.mxu0 0.0
        %3076 = vmatmul.mubr.f32.gmra.mxu0 %v2972
        %v3077 = vpop.f32.mrf.mxu0
        %v3078 = vadd.f32 0.0, %v3077
        %v3079 = vpop.f32.mrf.mxu0
        %3080 = vmatprep.mubr.f32.mxu0 0.0
        %3081 = vmatmul.mubr.f32.gmra.mxu0 %v2975
        %v3082 = vpop.f32.mrf.mxu0
        %v3083 = vadd.f32 0.0, %v3082
        %v3084 = vpop.f32.mrf.mxu0
        %3085 = vmatprep.mubr.f32.mxu0 0.0
        %3086 = vmatmul.mubr.f32.gmra.mxu0 %v2978
        %v3087 = vpop.f32.mrf.mxu0
        %v3088 = vadd.f32 0.0, %v3087
        %v3089 = vpop.f32.mrf.mxu0
        %3090 = vmatprep.mubr.f32.mxu0 0.0
        %3091 = vmatmul.mubr.f32.gmra.mxu0 %v2981
        %v3092 = vpop.f32.mrf.mxu0
        %v3093 = vadd.f32 0.0, %v3092
        %v3094 = vpop.f32.mrf.mxu0
        %3095 = vmatprep.mubr.f32.mxu0 0.0
        %3096 = vmatmul.mubr.f32.gmra.mxu0 %v2984
        %v3097 = vpop.f32.mrf.mxu0
        %v3098 = vadd.f32 0.0, %v3097
        %v3099 = vpop.f32.mrf.mxu0
        %3100 = vdwg.mxu0
        %v3101 = vadd.f32 %v2932, %v3053
        %v3102 = vadd.f32 %v2933, %v3058
        %v3103 = vadd.f32 %v2934, %v3063
        %v3104 = vadd.f32 %v2935, %v3068
        %v3105 = vadd.f32 %v2936, %v3073
        %v3106 = vadd.f32 %v2937, %v3078
        %v3107 = vadd.f32 %v2938, %v3083
        %v3108 = vadd.f32 %v2939, %v3088
        %v3109 = vadd.f32 %v2940, %v3093
        %v3110 = vadd.f32 %v2941, %v3098
        %v3111 = vld [vmem:[#allocation2 + $0xb] sm:$0xff]
        %v3112 = vld [vmem:[#allocation2 + $0x13] sm:$0xff]
        %v3113 = vld [vmem:[#allocation2 + $0x1b] sm:$0xff]
        %v3114 = vld [vmem:[#allocation2 + $0x23] sm:$0xff]
        %v3115 = vld [vmem:[#allocation2 + $0x2b] sm:$0xff]
        %v3116 = vld [vmem:[#allocation2 + $0x33] sm:$0xff]
        %v3117 = vld [vmem:[#allocation2 + $0x3b] sm:$0xff]
        %v3118 = vld [vmem:[#allocation2 + $0x43] sm:$0xff]
        %v3119 = vld [vmem:[#allocation2 + $0x4b] sm:$0xff]
        %v3120 = vld [vmem:[#allocation2 + $0x53] sm:$0xff]
        %v3121 = vld [vmem:[%s9 + $0x80] sm:$0xff]
        %v3122 = vld [vmem:[%s9 + $0x88] sm:$0xff]
        %v3123 = vld [vmem:[%s9 + $0x90] sm:$0xff]
        %v3124 = vld [vmem:[%s9 + $0x98] sm:$0xff]
        %v3126 = vsel %vm385, %v3111, 0
        %v3129 = vsel %vm385, %v3112, 0
        %v3132 = vsel %vm385, %v3113, 0
        %v3135 = vsel %vm385, %v3114, 0
        %v3138 = vsel %vm385, %v3115, 0
        %v3141 = vsel %vm385, %v3116, 0
        %v3144 = vsel %vm385, %v3117, 0
        %v3147 = vsel %vm385, %v3118, 0
        %v3150 = vsel %vm385, %v3119, 0
        %v3153 = vsel %vm385, %v3120, 0
        %3155 = vmatprep.subr.mxu0 0.0
        %3156 = vmatpush1.msra.mxu0 0.0
        %3157 = vmatprep.subr.mxu0 0.0
        %3158 = vmatpush1.msra.mxu0 0.0
        %3159 = vmatprep.subr.mxu0 0.0
        %3160 = vmatpush1.msra.mxu0 0.0
        %3161 = vmatprep.subr.mxu0 0.0
        %3162 = vmatpush1.msra.mxu0 0.0
        %3163 = vmatprep.subr.mxu0 0.0
        %3164 = vmatpush1.msra.mxu0 0.0
        %3165 = vmatprep.subr.mxu0 0.0
        %3166 = vmatpush1.msra.mxu0 0.0
        %3167 = vmatprep.subr.mxu0 0.0
        %3168 = vmatpush1.msra.mxu0 0.0
        %3169 = vmatprep.subr.mxu0 0.0
        %3170 = vmatpush1.msra.mxu0 0.0
        %3171 = vmatprep.subr.mxu0 0.0
        %3172 = vmatpush1.msra.mxu0 0.0
        %3173 = vmatprep.subr.mxu0 0.0
        %3174 = vmatpush1.msra.mxu0 0.0
        %3175 = vmatprep.subr.mxu0 0.0
        %3176 = vmatpush1.msra.mxu0 0.0
        %3177 = vmatprep.subr.mxu0 0.0
        %3178 = vmatpush1.msra.mxu0 0.0
        %3179 = vmatprep.subr.mxu0 0.0
        %3180 = vmatpush1.msra.mxu0 %v3124
        %3181 = vmatprep.subr.mxu0 0.0
        %3182 = vmatpush1.msra.mxu0 %v3123
        %3183 = vmatprep.subr.mxu0 0.0
        %3184 = vmatpush1.msra.mxu0 %v3122
        %3185 = vmatprep.subr.mxu0 0.0
        %3186 = vmatpush1.msra.mxu0 %v3121
        %3187 = vmatprep.subr.mxu0 0.0
        %3188 = vmatpush2.msra.mxu0 0.0
        %3189 = vmatprep.subr.mxu0 0.0
        %3190 = vmatpush2.msra.mxu0 0.0
        %3191 = vmatprep.subr.mxu0 0.0
        %3192 = vmatpush2.msra.mxu0 0.0
        %3193 = vmatprep.subr.mxu0 0.0
        %3194 = vmatpush2.msra.mxu0 0.0
        %3195 = vmatprep.subr.mxu0 0.0
        %3196 = vmatpush2.msra.mxu0 0.0
        %3197 = vmatprep.subr.mxu0 0.0
        %3198 = vmatpush2.msra.mxu0 0.0
        %3199 = vmatprep.subr.mxu0 0.0
        %3200 = vmatpush2.msra.mxu0 0.0
        %3201 = vmatprep.subr.mxu0 0.0
        %3202 = vmatpush2.msra.mxu0 0.0
        %3203 = vmatprep.subr.mxu0 0.0
        %3204 = vmatpush2.msra.mxu0 0.0
        %3205 = vmatprep.subr.mxu0 0.0
        %3206 = vmatpush2.msra.mxu0 0.0
        %3207 = vmatprep.subr.mxu0 0.0
        %3208 = vmatpush2.msra.mxu0 0.0
        %3209 = vmatprep.subr.mxu0 0.0
        %3210 = vmatpush2.msra.mxu0 0.0
        %3211 = vmatprep.subr.mxu0 0.0
        %3212 = vmatpush2.msra.mxu0 0.0
        %3213 = vmatprep.subr.mxu0 0.0
        %3214 = vmatpush2.msra.mxu0 0.0
        %3215 = vmatprep.subr.mxu0 0.0
        %3216 = vmatpush2.msra.mxu0 0.0
        %3217 = vmatprep.subr.mxu0 0.0
        %3218 = vmatpush2.msra.mxu0 0.0
        %3219 = vmatprep.mubr.f32.mxu0 0.0
        %3220 = vmatmul.mubr.f32.gmra.mxu0 %v3126
        %v3221 = vpop.f32.mrf.mxu0
        %v3222 = vadd.f32 0.0, %v3221
        %v3223 = vpop.f32.mrf.mxu0
        %3224 = vmatprep.mubr.f32.mxu0 0.0
        %3225 = vmatmul.mubr.f32.gmra.mxu0 %v3129
        %v3226 = vpop.f32.mrf.mxu0
        %v3227 = vadd.f32 0.0, %v3226
        %v3228 = vpop.f32.mrf.mxu0
        %3229 = vmatprep.mubr.f32.mxu0 0.0
        %3230 = vmatmul.mubr.f32.gmra.mxu0 %v3132
        %v3231 = vpop.f32.mrf.mxu0
        %v3232 = vadd.f32 0.0, %v3231
        %v3233 = vpop.f32.mrf.mxu0
        %3234 = vmatprep.mubr.f32.mxu0 0.0
        %3235 = vmatmul.mubr.f32.gmra.mxu0 %v3135
        %v3236 = vpop.f32.mrf.mxu0
        %v3237 = vadd.f32 0.0, %v3236
        %v3238 = vpop.f32.mrf.mxu0
        %3239 = vmatprep.mubr.f32.mxu0 0.0
        %3240 = vmatmul.mubr.f32.gmra.mxu0 %v3138
        %v3241 = vpop.f32.mrf.mxu0
        %v3242 = vadd.f32 0.0, %v3241
        %v3243 = vpop.f32.mrf.mxu0
        %3244 = vmatprep.mubr.f32.mxu0 0.0
        %3245 = vmatmul.mubr.f32.gmra.mxu0 %v3141
        %v3246 = vpop.f32.mrf.mxu0
        %v3247 = vadd.f32 0.0, %v3246
        %v3248 = vpop.f32.mrf.mxu0
        %3249 = vmatprep.mubr.f32.mxu0 0.0
        %3250 = vmatmul.mubr.f32.gmra.mxu0 %v3144
        %v3251 = vpop.f32.mrf.mxu0
        %v3252 = vadd.f32 0.0, %v3251
        %v3253 = vpop.f32.mrf.mxu0
        %3254 = vmatprep.mubr.f32.mxu0 0.0
        %3255 = vmatmul.mubr.f32.gmra.mxu0 %v3147
        %v3256 = vpop.f32.mrf.mxu0
        %v3257 = vadd.f32 0.0, %v3256
        %v3258 = vpop.f32.mrf.mxu0
        %3259 = vmatprep.mubr.f32.mxu0 0.0
        %3260 = vmatmul.mubr.f32.gmra.mxu0 %v3150
        %v3261 = vpop.f32.mrf.mxu0
        %v3262 = vadd.f32 0.0, %v3261
        %v3263 = vpop.f32.mrf.mxu0
        %3264 = vmatprep.mubr.f32.mxu0 0.0
        %3265 = vmatmul.mubr.f32.gmra.mxu0 %v3153
        %v3266 = vpop.f32.mrf.mxu0
        %v3267 = vadd.f32 0.0, %v3266
        %v3268 = vpop.f32.mrf.mxu0
        %3269 = vdwg.mxu0
        %v3270 = vadd.f32 %v3101, %v3222
        %v3271 = vadd.f32 %v3102, %v3227
        %v3272 = vadd.f32 %v3103, %v3232
        %v3273 = vadd.f32 %v3104, %v3237
        %v3274 = vadd.f32 %v3105, %v3242
        %v3275 = vadd.f32 %v3106, %v3247
        %v3276 = vadd.f32 %v3107, %v3252
        %v3277 = vadd.f32 %v3108, %v3257
        %v3278 = vadd.f32 %v3109, %v3262
        %v3279 = vadd.f32 %v3110, %v3267
        %v3280 = vld [vmem:[#allocation2 + $0xc] sm:$0xff]
        %v3281 = vld [vmem:[#allocation2 + $0x14] sm:$0xff]
        %v3282 = vld [vmem:[#allocation2 + $0x1c] sm:$0xff]
        %v3283 = vld [vmem:[#allocation2 + $0x24] sm:$0xff]
        %v3284 = vld [vmem:[#allocation2 + $0x2c] sm:$0xff]
        %v3285 = vld [vmem:[#allocation2 + $0x34] sm:$0xff]
        %v3286 = vld [vmem:[#allocation2 + $0x3c] sm:$0xff]
        %v3287 = vld [vmem:[#allocation2 + $0x44] sm:$0xff]
        %v3288 = vld [vmem:[#allocation2 + $0x4c] sm:$0xff]
        %v3289 = vld [vmem:[#allocation2 + $0x54] sm:$0xff]
        %v3290 = vld [vmem:[%s9 + $0xa0] sm:$0xff]
        %v3291 = vld [vmem:[%s9 + $0xa8] sm:$0xff]
        %v3292 = vld [vmem:[%s9 + $0xb0] sm:$0xff]
        %v3293 = vld [vmem:[%s9 + $0xb8] sm:$0xff]
        %v3295 = vsel %vm385, %v3280, 0
        %v3298 = vsel %vm385, %v3281, 0
        %v3301 = vsel %vm385, %v3282, 0
        %v3304 = vsel %vm385, %v3283, 0
        %v3307 = vsel %vm385, %v3284, 0
        %v3310 = vsel %vm385, %v3285, 0
        %v3313 = vsel %vm385, %v3286, 0
        %v3316 = vsel %vm385, %v3287, 0
        %v3319 = vsel %vm385, %v3288, 0
        %v3322 = vsel %vm385, %v3289, 0
        %3324 = vmatprep.subr.mxu0 0.0
        %3325 = vmatpush1.msra.mxu0 0.0
        %3326 = vmatprep.subr.mxu0 0.0
        %3327 = vmatpush1.msra.mxu0 0.0
        %3328 = vmatprep.subr.mxu0 0.0
        %3329 = vmatpush1.msra.mxu0 0.0
        %3330 = vmatprep.subr.mxu0 0.0
        %3331 = vmatpush1.msra.mxu0 0.0
        %3332 = vmatprep.subr.mxu0 0.0
        %3333 = vmatpush1.msra.mxu0 0.0
        %3334 = vmatprep.subr.mxu0 0.0
        %3335 = vmatpush1.msra.mxu0 0.0
        %3336 = vmatprep.subr.mxu0 0.0
        %3337 = vmatpush1.msra.mxu0 0.0
        %3338 = vmatprep.subr.mxu0 0.0
        %3339 = vmatpush1.msra.mxu0 0.0
        %3340 = vmatprep.subr.mxu0 0.0
        %3341 = vmatpush1.msra.mxu0 0.0
        %3342 = vmatprep.subr.mxu0 0.0
        %3343 = vmatpush1.msra.mxu0 0.0
        %3344 = vmatprep.subr.mxu0 0.0
        %3345 = vmatpush1.msra.mxu0 0.0
        %3346 = vmatprep.subr.mxu0 0.0
        %3347 = vmatpush1.msra.mxu0 0.0
        %3348 = vmatprep.subr.mxu0 0.0
        %3349 = vmatpush1.msra.mxu0 %v3293
        %3350 = vmatprep.subr.mxu0 0.0
        %3351 = vmatpush1.msra.mxu0 %v3292
        %3352 = vmatprep.subr.mxu0 0.0
        %3353 = vmatpush1.msra.mxu0 %v3291
        %3354 = vmatprep.subr.mxu0 0.0
        %3355 = vmatpush1.msra.mxu0 %v3290
        %3356 = vmatprep.subr.mxu0 0.0
        %3357 = vmatpush2.msra.mxu0 0.0
        %3358 = vmatprep.subr.mxu0 0.0
        %3359 = vmatpush2.msra.mxu0 0.0
        %3360 = vmatprep.subr.mxu0 0.0
        %3361 = vmatpush2.msra.mxu0 0.0
        %3362 = vmatprep.subr.mxu0 0.0
        %3363 = vmatpush2.msra.mxu0 0.0
        %3364 = vmatprep.subr.mxu0 0.0
        %3365 = vmatpush2.msra.mxu0 0.0
        %3366 = vmatprep.subr.mxu0 0.0
        %3367 = vmatpush2.msra.mxu0 0.0
        %3368 = vmatprep.subr.mxu0 0.0
        %3369 = vmatpush2.msra.mxu0 0.0
        %3370 = vmatprep.subr.mxu0 0.0
        %3371 = vmatpush2.msra.mxu0 0.0
        %3372 = vmatprep.subr.mxu0 0.0
        %3373 = vmatpush2.msra.mxu0 0.0
        %3374 = vmatprep.subr.mxu0 0.0
        %3375 = vmatpush2.msra.mxu0 0.0
        %3376 = vmatprep.subr.mxu0 0.0
        %3377 = vmatpush2.msra.mxu0 0.0
        %3378 = vmatprep.subr.mxu0 0.0
        %3379 = vmatpush2.msra.mxu0 0.0
        %3380 = vmatprep.subr.mxu0 0.0
        %3381 = vmatpush2.msra.mxu0 0.0
        %3382 = vmatprep.subr.mxu0 0.0
        %3383 = vmatpush2.msra.mxu0 0.0
        %3384 = vmatprep.subr.mxu0 0.0
        %3385 = vmatpush2.msra.mxu0 0.0
        %3386 = vmatprep.subr.mxu0 0.0
        %3387 = vmatpush2.msra.mxu0 0.0
        %3388 = vmatprep.mubr.f32.mxu0 0.0
        %3389 = vmatmul.mubr.f32.gmra.mxu0 %v3295
        %v3390 = vpop.f32.mrf.mxu0
        %v3391 = vadd.f32 0.0, %v3390
        %v3392 = vpop.f32.mrf.mxu0
        %3393 = vmatprep.mubr.f32.mxu0 0.0
        %3394 = vmatmul.mubr.f32.gmra.mxu0 %v3298
        %v3395 = vpop.f32.mrf.mxu0
        %v3396 = vadd.f32 0.0, %v3395
        %v3397 = vpop.f32.mrf.mxu0
        %3398 = vmatprep.mubr.f32.mxu0 0.0
        %3399 = vmatmul.mubr.f32.gmra.mxu0 %v3301
        %v3400 = vpop.f32.mrf.mxu0
        %v3401 = vadd.f32 0.0, %v3400
        %v3402 = vpop.f32.mrf.mxu0
        %3403 = vmatprep.mubr.f32.mxu0 0.0
        %3404 = vmatmul.mubr.f32.gmra.mxu0 %v3304
        %v3405 = vpop.f32.mrf.mxu0
        %v3406 = vadd.f32 0.0, %v3405
        %v3407 = vpop.f32.mrf.mxu0
        %3408 = vmatprep.mubr.f32.mxu0 0.0
        %3409 = vmatmul.mubr.f32.gmra.mxu0 %v3307
        %v3410 = vpop.f32.mrf.mxu0
        %v3411 = vadd.f32 0.0, %v3410
        %v3412 = vpop.f32.mrf.mxu0
        %3413 = vmatprep.mubr.f32.mxu0 0.0
        %3414 = vmatmul.mubr.f32.gmra.mxu0 %v3310
        %v3415 = vpop.f32.mrf.mxu0
        %v3416 = vadd.f32 0.0, %v3415
        %v3417 = vpop.f32.mrf.mxu0
        %3418 = vmatprep.mubr.f32.mxu0 0.0
        %3419 = vmatmul.mubr.f32.gmra.mxu0 %v3313
        %v3420 = vpop.f32.mrf.mxu0
        %v3421 = vadd.f32 0.0, %v3420
        %v3422 = vpop.f32.mrf.mxu0
        %3423 = vmatprep.mubr.f32.mxu0 0.0
        %3424 = vmatmul.mubr.f32.gmra.mxu0 %v3316
        %v3425 = vpop.f32.mrf.mxu0
        %v3426 = vadd.f32 0.0, %v3425
        %v3427 = vpop.f32.mrf.mxu0
        %3428 = vmatprep.mubr.f32.mxu0 0.0
        %3429 = vmatmul.mubr.f32.gmra.mxu0 %v3319
        %v3430 = vpop.f32.mrf.mxu0
        %v3431 = vadd.f32 0.0, %v3430
        %v3432 = vpop.f32.mrf.mxu0
        %3433 = vmatprep.mubr.f32.mxu0 0.0
        %3434 = vmatmul.mubr.f32.gmra.mxu0 %v3322
        %v3435 = vpop.f32.mrf.mxu0
        %v3436 = vadd.f32 0.0, %v3435
        %v3437 = vpop.f32.mrf.mxu0
        %3438 = vdwg.mxu0
        %v3439 = vadd.f32 %v3270, %v3391
        %v3440 = vadd.f32 %v3271, %v3396
        %v3441 = vadd.f32 %v3272, %v3401
        %v3442 = vadd.f32 %v3273, %v3406
        %v3443 = vadd.f32 %v3274, %v3411
        %v3444 = vadd.f32 %v3275, %v3416
        %v3445 = vadd.f32 %v3276, %v3421
        %v3446 = vadd.f32 %v3277, %v3426
        %v3447 = vadd.f32 %v3278, %v3431
        %v3448 = vadd.f32 %v3279, %v3436
        %v3449 = vld [vmem:[#allocation2 + $0x14] sm:$0xff]
        %v3450 = vld [vmem:[#allocation2 + $0x1c] sm:$0xff]
        %v3451 = vld [vmem:[#allocation2 + $0x24] sm:$0xff]
        %v3452 = vld [vmem:[#allocation2 + $0x2c] sm:$0xff]
        %v3453 = vld [vmem:[#allocation2 + $0x34] sm:$0xff]
        %v3454 = vld [vmem:[#allocation2 + $0x3c] sm:$0xff]
        %v3455 = vld [vmem:[#allocation2 + $0x44] sm:$0xff]
        %v3456 = vld [vmem:[#allocation2 + $0x4c] sm:$0xff]
        %v3457 = vld [vmem:[#allocation2 + $0x54] sm:$0xff]
        %v3458 = vld [vmem:[#allocation2 + $0x5c] sm:$0xff]
        %v3459 = vld [vmem:[%s9 + $0xc0] sm:$0xff]
        %v3460 = vld [vmem:[%s9 + $0xc8] sm:$0xff]
        %v3461 = vld [vmem:[%s9 + $0xd0] sm:$0xff]
        %v3462 = vld [vmem:[%s9 + $0xd8] sm:$0xff]
        %v3464 = vsel %vm385, %v3449, 0
        %v3467 = vsel %vm385, %v3450, 0
        %v3470 = vsel %vm385, %v3451, 0
        %v3473 = vsel %vm385, %v3452, 0
        %v3476 = vsel %vm385, %v3453, 0
        %v3479 = vsel %vm385, %v3454, 0
        %v3482 = vsel %vm385, %v3455, 0
        %v3485 = vsel %vm385, %v3456, 0
        %v3488 = vsel %vm385, %v3457, 0
        %v3491 = vsel %vm385, %v3458, 0
        %3493 = vmatprep.subr.mxu0 0.0
        %3494 = vmatpush1.msra.mxu0 0.0
        %3495 = vmatprep.subr.mxu0 0.0
        %3496 = vmatpush1.msra.mxu0 0.0
        %3497 = vmatprep.subr.mxu0 0.0
        %3498 = vmatpush1.msra.mxu0 0.0
        %3499 = vmatprep.subr.mxu0 0.0
        %3500 = vmatpush1.msra.mxu0 0.0
        %3501 = vmatprep.subr.mxu0 0.0
        %3502 = vmatpush1.msra.mxu0 0.0
        %3503 = vmatprep.subr.mxu0 0.0
        %3504 = vmatpush1.msra.mxu0 0.0
        %3505 = vmatprep.subr.mxu0 0.0
        %3506 = vmatpush1.msra.mxu0 0.0
        %3507 = vmatprep.subr.mxu0 0.0
        %3508 = vmatpush1.msra.mxu0 0.0
        %3509 = vmatprep.subr.mxu0 0.0
        %3510 = vmatpush1.msra.mxu0 0.0
        %3511 = vmatprep.subr.mxu0 0.0
        %3512 = vmatpush1.msra.mxu0 0.0
        %3513 = vmatprep.subr.mxu0 0.0
        %3514 = vmatpush1.msra.mxu0 0.0
        %3515 = vmatprep.subr.mxu0 0.0
        %3516 = vmatpush1.msra.mxu0 0.0
        %3517 = vmatprep.subr.mxu0 0.0
        %3518 = vmatpush1.msra.mxu0 %v3462
        %3519 = vmatprep.subr.mxu0 0.0
        %3520 = vmatpush1.msra.mxu0 %v3461
        %3521 = vmatprep.subr.mxu0 0.0
        %3522 = vmatpush1.msra.mxu0 %v3460
        %3523 = vmatprep.subr.mxu0 0.0
        %3524 = vmatpush1.msra.mxu0 %v3459
        %3525 = vmatprep.subr.mxu0 0.0
        %3526 = vmatpush2.msra.mxu0 0.0
        %3527 = vmatprep.subr.mxu0 0.0
        %3528 = vmatpush2.msra.mxu0 0.0
        %3529 = vmatprep.subr.mxu0 0.0
        %3530 = vmatpush2.msra.mxu0 0.0
        %3531 = vmatprep.subr.mxu0 0.0
        %3532 = vmatpush2.msra.mxu0 0.0
        %3533 = vmatprep.subr.mxu0 0.0
        %3534 = vmatpush2.msra.mxu0 0.0
        %3535 = vmatprep.subr.mxu0 0.0
        %3536 = vmatpush2.msra.mxu0 0.0
        %3537 = vmatprep.subr.mxu0 0.0
        %3538 = vmatpush2.msra.mxu0 0.0
        %3539 = vmatprep.subr.mxu0 0.0
        %3540 = vmatpush2.msra.mxu0 0.0
        %3541 = vmatprep.subr.mxu0 0.0
        %3542 = vmatpush2.msra.mxu0 0.0
        %3543 = vmatprep.subr.mxu0 0.0
        %3544 = vmatpush2.msra.mxu0 0.0
        %3545 = vmatprep.subr.mxu0 0.0
        %3546 = vmatpush2.msra.mxu0 0.0
        %3547 = vmatprep.subr.mxu0 0.0
        %3548 = vmatpush2.msra.mxu0 0.0
        %3549 = vmatprep.subr.mxu0 0.0
        %3550 = vmatpush2.msra.mxu0 0.0
        %3551 = vmatprep.subr.mxu0 0.0
        %3552 = vmatpush2.msra.mxu0 0.0
        %3553 = vmatprep.subr.mxu0 0.0
        %3554 = vmatpush2.msra.mxu0 0.0
        %3555 = vmatprep.subr.mxu0 0.0
        %3556 = vmatpush2.msra.mxu0 0.0
        %3557 = vmatprep.mubr.f32.mxu0 0.0
        %3558 = vmatmul.mubr.f32.gmra.mxu0 %v3464
        %v3559 = vpop.f32.mrf.mxu0
        %v3560 = vadd.f32 0.0, %v3559
        %v3561 = vpop.f32.mrf.mxu0
        %3562 = vmatprep.mubr.f32.mxu0 0.0
        %3563 = vmatmul.mubr.f32.gmra.mxu0 %v3467
        %v3564 = vpop.f32.mrf.mxu0
        %v3565 = vadd.f32 0.0, %v3564
        %v3566 = vpop.f32.mrf.mxu0
        %3567 = vmatprep.mubr.f32.mxu0 0.0
        %3568 = vmatmul.mubr.f32.gmra.mxu0 %v3470
        %v3569 = vpop.f32.mrf.mxu0
        %v3570 = vadd.f32 0.0, %v3569
        %v3571 = vpop.f32.mrf.mxu0
        %3572 = vmatprep.mubr.f32.mxu0 0.0
        %3573 = vmatmul.mubr.f32.gmra.mxu0 %v3473
        %v3574 = vpop.f32.mrf.mxu0
        %v3575 = vadd.f32 0.0, %v3574
        %v3576 = vpop.f32.mrf.mxu0
        %3577 = vmatprep.mubr.f32.mxu0 0.0
        %3578 = vmatmul.mubr.f32.gmra.mxu0 %v3476
        %v3579 = vpop.f32.mrf.mxu0
        %v3580 = vadd.f32 0.0, %v3579
        %v3581 = vpop.f32.mrf.mxu0
        %3582 = vmatprep.mubr.f32.mxu0 0.0
        %3583 = vmatmul.mubr.f32.gmra.mxu0 %v3479
        %v3584 = vpop.f32.mrf.mxu0
        %v3585 = vadd.f32 0.0, %v3584
        %v3586 = vpop.f32.mrf.mxu0
        %3587 = vmatprep.mubr.f32.mxu0 0.0
        %3588 = vmatmul.mubr.f32.gmra.mxu0 %v3482
        %v3589 = vpop.f32.mrf.mxu0
        %v3590 = vadd.f32 0.0, %v3589
        %v3591 = vpop.f32.mrf.mxu0
        %3592 = vmatprep.mubr.f32.mxu0 0.0
        %3593 = vmatmul.mubr.f32.gmra.mxu0 %v3485
        %v3594 = vpop.f32.mrf.mxu0
        %v3595 = vadd.f32 0.0, %v3594
        %v3596 = vpop.f32.mrf.mxu0
        %3597 = vmatprep.mubr.f32.mxu0 0.0
        %3598 = vmatmul.mubr.f32.gmra.mxu0 %v3488
        %v3599 = vpop.f32.mrf.mxu0
        %v3600 = vadd.f32 0.0, %v3599
        %v3601 = vpop.f32.mrf.mxu0
        %3602 = vmatprep.mubr.f32.mxu0 0.0
        %3603 = vmatmul.mubr.f32.gmra.mxu0 %v3491
        %v3604 = vpop.f32.mrf.mxu0
        %v3605 = vadd.f32 0.0, %v3604
        %v3606 = vpop.f32.mrf.mxu0
        %3607 = vdwg.mxu0
        %v3608 = vadd.f32 %v3439, %v3560
        %v3609 = vadd.f32 %v3440, %v3565
        %v3610 = vadd.f32 %v3441, %v3570
        %v3611 = vadd.f32 %v3442, %v3575
        %v3612 = vadd.f32 %v3443, %v3580
        %v3613 = vadd.f32 %v3444, %v3585
        %v3614 = vadd.f32 %v3445, %v3590
        %v3615 = vadd.f32 %v3446, %v3595
        %v3616 = vadd.f32 %v3447, %v3600
        %v3617 = vadd.f32 %v3448, %v3605
        %v3618 = vld [vmem:[#allocation2 + $0x15] sm:$0xff]
        %v3619 = vld [vmem:[#allocation2 + $0x1d] sm:$0xff]
        %v3620 = vld [vmem:[#allocation2 + $0x25] sm:$0xff]
        %v3621 = vld [vmem:[#allocation2 + $0x2d] sm:$0xff]
        %v3622 = vld [vmem:[#allocation2 + $0x35] sm:$0xff]
        %v3623 = vld [vmem:[#allocation2 + $0x3d] sm:$0xff]
        %v3624 = vld [vmem:[#allocation2 + $0x45] sm:$0xff]
        %v3625 = vld [vmem:[#allocation2 + $0x4d] sm:$0xff]
        %v3626 = vld [vmem:[#allocation2 + $0x55] sm:$0xff]
        %v3627 = vld [vmem:[#allocation2 + $0x5d] sm:$0xff]
        %v3628 = vld [vmem:[%s9 + $0xe0] sm:$0xff]
        %v3629 = vld [vmem:[%s9 + $0xe8] sm:$0xff]
        %v3630 = vld [vmem:[%s9 + $0xf0] sm:$0xff]
        %v3631 = vld [vmem:[%s9 + $0xf8] sm:$0xff]
        %v3633 = vsel %vm385, %v3618, 0
        %v3636 = vsel %vm385, %v3619, 0
        %v3639 = vsel %vm385, %v3620, 0
        %v3642 = vsel %vm385, %v3621, 0
        %v3645 = vsel %vm385, %v3622, 0
        %v3648 = vsel %vm385, %v3623, 0
        %v3651 = vsel %vm385, %v3624, 0
        %v3654 = vsel %vm385, %v3625, 0
        %v3657 = vsel %vm385, %v3626, 0
        %v3660 = vsel %vm385, %v3627, 0
        %3662 = vmatprep.subr.mxu0 0.0
        %3663 = vmatpush1.msra.mxu0 0.0
        %3664 = vmatprep.subr.mxu0 0.0
        %3665 = vmatpush1.msra.mxu0 0.0
        %3666 = vmatprep.subr.mxu0 0.0
        %3667 = vmatpush1.msra.mxu0 0.0
        %3668 = vmatprep.subr.mxu0 0.0
        %3669 = vmatpush1.msra.mxu0 0.0
        %3670 = vmatprep.subr.mxu0 0.0
        %3671 = vmatpush1.msra.mxu0 0.0
        %3672 = vmatprep.subr.mxu0 0.0
        %3673 = vmatpush1.msra.mxu0 0.0
        %3674 = vmatprep.subr.mxu0 0.0
        %3675 = vmatpush1.msra.mxu0 0.0
        %3676 = vmatprep.subr.mxu0 0.0
        %3677 = vmatpush1.msra.mxu0 0.0
        %3678 = vmatprep.subr.mxu0 0.0
        %3679 = vmatpush1.msra.mxu0 0.0
        %3680 = vmatprep.subr.mxu0 0.0
        %3681 = vmatpush1.msra.mxu0 0.0
        %3682 = vmatprep.subr.mxu0 0.0
        %3683 = vmatpush1.msra.mxu0 0.0
        %3684 = vmatprep.subr.mxu0 0.0
        %3685 = vmatpush1.msra.mxu0 0.0
        %3686 = vmatprep.subr.mxu0 0.0
        %3687 = vmatpush1.msra.mxu0 %v3631
        %3688 = vmatprep.subr.mxu0 0.0
        %3689 = vmatpush1.msra.mxu0 %v3630
        %3690 = vmatprep.subr.mxu0 0.0
        %3691 = vmatpush1.msra.mxu0 %v3629
        %3692 = vmatprep.subr.mxu0 0.0
        %3693 = vmatpush1.msra.mxu0 %v3628
        %3694 = vmatprep.subr.mxu0 0.0
        %3695 = vmatpush2.msra.mxu0 0.0
        %3696 = vmatprep.subr.mxu0 0.0
        %3697 = vmatpush2.msra.mxu0 0.0
        %3698 = vmatprep.subr.mxu0 0.0
        %3699 = vmatpush2.msra.mxu0 0.0
        %3700 = vmatprep.subr.mxu0 0.0
        %3701 = vmatpush2.msra.mxu0 0.0
        %3702 = vmatprep.subr.mxu0 0.0
        %3703 = vmatpush2.msra.mxu0 0.0
        %3704 = vmatprep.subr.mxu0 0.0
        %3705 = vmatpush2.msra.mxu0 0.0
        %3706 = vmatprep.subr.mxu0 0.0
        %3707 = vmatpush2.msra.mxu0 0.0
        %3708 = vmatprep.subr.mxu0 0.0
        %3709 = vmatpush2.msra.mxu0 0.0
        %3710 = vmatprep.subr.mxu0 0.0
        %3711 = vmatpush2.msra.mxu0 0.0
        %3712 = vmatprep.subr.mxu0 0.0
        %3713 = vmatpush2.msra.mxu0 0.0
        %3714 = vmatprep.subr.mxu0 0.0
        %3715 = vmatpush2.msra.mxu0 0.0
        %3716 = vmatprep.subr.mxu0 0.0
        %3717 = vmatpush2.msra.mxu0 0.0
        %3718 = vmatprep.subr.mxu0 0.0
        %3719 = vmatpush2.msra.mxu0 0.0
        %3720 = vmatprep.subr.mxu0 0.0
        %3721 = vmatpush2.msra.mxu0 0.0
        %3722 = vmatprep.subr.mxu0 0.0
        %3723 = vmatpush2.msra.mxu0 0.0
        %3724 = vmatprep.subr.mxu0 0.0
        %3725 = vmatpush2.msra.mxu0 0.0
        %3726 = vmatprep.mubr.f32.mxu0 0.0
        %3727 = vmatmul.mubr.f32.gmra.mxu0 %v3633
        %v3728 = vpop.f32.mrf.mxu0
        %v3729 = vadd.f32 0.0, %v3728
        %v3730 = vpop.f32.mrf.mxu0
        %3731 = vmatprep.mubr.f32.mxu0 0.0
        %3732 = vmatmul.mubr.f32.gmra.mxu0 %v3636
        %v3733 = vpop.f32.mrf.mxu0
        %v3734 = vadd.f32 0.0, %v3733
        %v3735 = vpop.f32.mrf.mxu0
        %3736 = vmatprep.mubr.f32.mxu0 0.0
        %3737 = vmatmul.mubr.f32.gmra.mxu0 %v3639
        %v3738 = vpop.f32.mrf.mxu0
        %v3739 = vadd.f32 0.0, %v3738
        %v3740 = vpop.f32.mrf.mxu0
        %3741 = vmatprep.mubr.f32.mxu0 0.0
        %3742 = vmatmul.mubr.f32.gmra.mxu0 %v3642
        %v3743 = vpop.f32.mrf.mxu0
        %v3744 = vadd.f32 0.0, %v3743
        %v3745 = vpop.f32.mrf.mxu0
        %3746 = vmatprep.mubr.f32.mxu0 0.0
        %3747 = vmatmul.mubr.f32.gmra.mxu0 %v3645
        %v3748 = vpop.f32.mrf.mxu0
        %v3749 = vadd.f32 0.0, %v3748
        %v3750 = vpop.f32.mrf.mxu0
        %3751 = vmatprep.mubr.f32.mxu0 0.0
        %3752 = vmatmul.mubr.f32.gmra.mxu0 %v3648
        %v3753 = vpop.f32.mrf.mxu0
        %v3754 = vadd.f32 0.0, %v3753
        %v3755 = vpop.f32.mrf.mxu0
        %3756 = vmatprep.mubr.f32.mxu0 0.0
        %3757 = vmatmul.mubr.f32.gmra.mxu0 %v3651
        %v3758 = vpop.f32.mrf.mxu0
        %v3759 = vadd.f32 0.0, %v3758
        %v3760 = vpop.f32.mrf.mxu0
        %3761 = vmatprep.mubr.f32.mxu0 0.0
        %3762 = vmatmul.mubr.f32.gmra.mxu0 %v3654
        %v3763 = vpop.f32.mrf.mxu0
        %v3764 = vadd.f32 0.0, %v3763
        %v3765 = vpop.f32.mrf.mxu0
        %3766 = vmatprep.mubr.f32.mxu0 0.0
        %3767 = vmatmul.mubr.f32.gmra.mxu0 %v3657
        %v3768 = vpop.f32.mrf.mxu0
        %v3769 = vadd.f32 0.0, %v3768
        %v3770 = vpop.f32.mrf.mxu0
        %3771 = vmatprep.mubr.f32.mxu0 0.0
        %3772 = vmatmul.mubr.f32.gmra.mxu0 %v3660
        %v3773 = vpop.f32.mrf.mxu0
        %v3774 = vadd.f32 0.0, %v3773
        %v3775 = vpop.f32.mrf.mxu0
        %3776 = vdwg.mxu0
        %v3777 = vadd.f32 %v3608, %v3729
        %v3778 = vadd.f32 %v3609, %v3734
        %v3779 = vadd.f32 %v3610, %v3739
        %v3780 = vadd.f32 %v3611, %v3744
        %v3781 = vadd.f32 %v3612, %v3749
        %v3782 = vadd.f32 %v3613, %v3754
        %v3783 = vadd.f32 %v3614, %v3759
        %v3784 = vadd.f32 %v3615, %v3764
        %v3785 = vadd.f32 %v3616, %v3769
        %v3786 = vadd.f32 %v3617, %v3774
        %v3787 = vld [vmem:[#allocation2 + $0x16] sm:$0xff]
        %v3788 = vld [vmem:[#allocation2 + $0x1e] sm:$0xff]
        %v3789 = vld [vmem:[#allocation2 + $0x26] sm:$0xff]
        %v3790 = vld [vmem:[#allocation2 + $0x2e] sm:$0xff]
        %v3791 = vld [vmem:[#allocation2 + $0x36] sm:$0xff]
        %v3792 = vld [vmem:[#allocation2 + $0x3e] sm:$0xff]
        %v3793 = vld [vmem:[#allocation2 + $0x46] sm:$0xff]
        %v3794 = vld [vmem:[#allocation2 + $0x4e] sm:$0xff]
        %v3795 = vld [vmem:[#allocation2 + $0x56] sm:$0xff]
        %v3796 = vld [vmem:[#allocation2 + $0x5e] sm:$0xff]
        %v3797 = vld [vmem:[%s9 + $0x100] sm:$0xff]
        %v3798 = vld [vmem:[%s9 + $0x108] sm:$0xff]
        %v3799 = vld [vmem:[%s9 + $0x110] sm:$0xff]
        %v3800 = vld [vmem:[%s9 + $0x118] sm:$0xff]
        %v3802 = vsel %vm385, %v3787, 0
        %v3805 = vsel %vm385, %v3788, 0
        %v3808 = vsel %vm385, %v3789, 0
        %v3811 = vsel %vm385, %v3790, 0
        %v3814 = vsel %vm385, %v3791, 0
        %v3817 = vsel %vm385, %v3792, 0
        %v3820 = vsel %vm385, %v3793, 0
        %v3823 = vsel %vm385, %v3794, 0
        %v3826 = vsel %vm385, %v3795, 0
        %v3829 = vsel %vm385, %v3796, 0
        %3831 = vmatprep.subr.mxu0 0.0
        %3832 = vmatpush1.msra.mxu0 0.0
        %3833 = vmatprep.subr.mxu0 0.0
        %3834 = vmatpush1.msra.mxu0 0.0
        %3835 = vmatprep.subr.mxu0 0.0
        %3836 = vmatpush1.msra.mxu0 0.0
        %3837 = vmatprep.subr.mxu0 0.0
        %3838 = vmatpush1.msra.mxu0 0.0
        %3839 = vmatprep.subr.mxu0 0.0
        %3840 = vmatpush1.msra.mxu0 0.0
        %3841 = vmatprep.subr.mxu0 0.0
        %3842 = vmatpush1.msra.mxu0 0.0
        %3843 = vmatprep.subr.mxu0 0.0
        %3844 = vmatpush1.msra.mxu0 0.0
        %3845 = vmatprep.subr.mxu0 0.0
        %3846 = vmatpush1.msra.mxu0 0.0
        %3847 = vmatprep.subr.mxu0 0.0
        %3848 = vmatpush1.msra.mxu0 0.0
        %3849 = vmatprep.subr.mxu0 0.0
        %3850 = vmatpush1.msra.mxu0 0.0
        %3851 = vmatprep.subr.mxu0 0.0
        %3852 = vmatpush1.msra.mxu0 0.0
        %3853 = vmatprep.subr.mxu0 0.0
        %3854 = vmatpush1.msra.mxu0 0.0
        %3855 = vmatprep.subr.mxu0 0.0
        %3856 = vmatpush1.msra.mxu0 %v3800
        %3857 = vmatprep.subr.mxu0 0.0
        %3858 = vmatpush1.msra.mxu0 %v3799
        %3859 = vmatprep.subr.mxu0 0.0
        %3860 = vmatpush1.msra.mxu0 %v3798
        %3861 = vmatprep.subr.mxu0 0.0
        %3862 = vmatpush1.msra.mxu0 %v3797
        %3863 = vmatprep.subr.mxu0 0.0
        %3864 = vmatpush2.msra.mxu0 0.0
        %3865 = vmatprep.subr.mxu0 0.0
        %3866 = vmatpush2.msra.mxu0 0.0
        %3867 = vmatprep.subr.mxu0 0.0
        %3868 = vmatpush2.msra.mxu0 0.0
        %3869 = vmatprep.subr.mxu0 0.0
        %3870 = vmatpush2.msra.mxu0 0.0
        %3871 = vmatprep.subr.mxu0 0.0
        %3872 = vmatpush2.msra.mxu0 0.0
        %3873 = vmatprep.subr.mxu0 0.0
        %3874 = vmatpush2.msra.mxu0 0.0
        %3875 = vmatprep.subr.mxu0 0.0
        %3876 = vmatpush2.msra.mxu0 0.0
        %3877 = vmatprep.subr.mxu0 0.0
        %3878 = vmatpush2.msra.mxu0 0.0
        %3879 = vmatprep.subr.mxu0 0.0
        %3880 = vmatpush2.msra.mxu0 0.0
        %3881 = vmatprep.subr.mxu0 0.0
        %3882 = vmatpush2.msra.mxu0 0.0
        %3883 = vmatprep.subr.mxu0 0.0
        %3884 = vmatpush2.msra.mxu0 0.0
        %3885 = vmatprep.subr.mxu0 0.0
        %3886 = vmatpush2.msra.mxu0 0.0
        %3887 = vmatprep.subr.mxu0 0.0
        %3888 = vmatpush2.msra.mxu0 0.0
        %3889 = vmatprep.subr.mxu0 0.0
        %3890 = vmatpush2.msra.mxu0 0.0
        %3891 = vmatprep.subr.mxu0 0.0
        %3892 = vmatpush2.msra.mxu0 0.0
        %3893 = vmatprep.subr.mxu0 0.0
        %3894 = vmatpush2.msra.mxu0 0.0
        %3895 = vmatprep.mubr.f32.mxu0 0.0
        %3896 = vmatmul.mubr.f32.gmra.mxu0 %v3802
        %v3897 = vpop.f32.mrf.mxu0
        %v3898 = vadd.f32 0.0, %v3897
        %v3899 = vpop.f32.mrf.mxu0
        %3900 = vmatprep.mubr.f32.mxu0 0.0
        %3901 = vmatmul.mubr.f32.gmra.mxu0 %v3805
        %v3902 = vpop.f32.mrf.mxu0
        %v3903 = vadd.f32 0.0, %v3902
        %v3904 = vpop.f32.mrf.mxu0
        %3905 = vmatprep.mubr.f32.mxu0 0.0
        %3906 = vmatmul.mubr.f32.gmra.mxu0 %v3808
        %v3907 = vpop.f32.mrf.mxu0
        %v3908 = vadd.f32 0.0, %v3907
        %v3909 = vpop.f32.mrf.mxu0
        %3910 = vmatprep.mubr.f32.mxu0 0.0
        %3911 = vmatmul.mubr.f32.gmra.mxu0 %v3811
        %v3912 = vpop.f32.mrf.mxu0
        %v3913 = vadd.f32 0.0, %v3912
        %v3914 = vpop.f32.mrf.mxu0
        %3915 = vmatprep.mubr.f32.mxu0 0.0
        %3916 = vmatmul.mubr.f32.gmra.mxu0 %v3814
        %v3917 = vpop.f32.mrf.mxu0
        %v3918 = vadd.f32 0.0, %v3917
        %v3919 = vpop.f32.mrf.mxu0
        %3920 = vmatprep.mubr.f32.mxu0 0.0
        %3921 = vmatmul.mubr.f32.gmra.mxu0 %v3817
        %v3922 = vpop.f32.mrf.mxu0
        %v3923 = vadd.f32 0.0, %v3922
        %v3924 = vpop.f32.mrf.mxu0
        %3925 = vmatprep.mubr.f32.mxu0 0.0
        %3926 = vmatmul.mubr.f32.gmra.mxu0 %v3820
        %v3927 = vpop.f32.mrf.mxu0
        %v3928 = vadd.f32 0.0, %v3927
        %v3929 = vpop.f32.mrf.mxu0
        %3930 = vmatprep.mubr.f32.mxu0 0.0
        %3931 = vmatmul.mubr.f32.gmra.mxu0 %v3823
        %v3932 = vpop.f32.mrf.mxu0
        %v3933 = vadd.f32 0.0, %v3932
        %v3934 = vpop.f32.mrf.mxu0
        %3935 = vmatprep.mubr.f32.mxu0 0.0
        %3936 = vmatmul.mubr.f32.gmra.mxu0 %v3826
        %v3937 = vpop.f32.mrf.mxu0
        %v3938 = vadd.f32 0.0, %v3937
        %v3939 = vpop.f32.mrf.mxu0
        %3940 = vmatprep.mubr.f32.mxu0 0.0
        %3941 = vmatmul.mubr.f32.gmra.mxu0 %v3829
        %v3942 = vpop.f32.mrf.mxu0
        %v3943 = vadd.f32 0.0, %v3942
        %v3944 = vpop.f32.mrf.mxu0
        %3945 = vdwg.mxu0
        %v3946 = vadd.f32 %v3777, %v3898
        %v3947 = vadd.f32 %v3778, %v3903
        %v3948 = vadd.f32 %v3779, %v3908
        %v3949 = vadd.f32 %v3780, %v3913
        %v3950 = vadd.f32 %v3781, %v3918
        %v3951 = vadd.f32 %v3782, %v3923
        %v3952 = vadd.f32 %v3783, %v3928
        %v3953 = vadd.f32 %v3784, %v3933
        %v3954 = vadd.f32 %v3785, %v3938
        %v3955 = vadd.f32 %v3786, %v3943
        %v3956 = vld [vmem:[%s10] sm:$0x1]
        %v3958 = vlaneseq
        %v3959 = vshrl.u32 %v3958, 7
        %v3960 = vsub.s32 0, %v3959
        %v3961 = vrot.slane %v3956, %v3960
        %v3963 = vadd.f32 %v3946, %v3961
        %v3964 = vadd.f32 %v3947, %v3961
        %v3965 = vadd.f32 %v3948, %v3961
        %v3966 = vadd.f32 %v3949, %v3961
        %v3967 = vadd.f32 %v3950, %v3961
        %v3968 = vadd.f32 %v3951, %v3961
        %v3969 = vadd.f32 %v3952, %v3961
        %v3970 = vadd.f32 %v3953, %v3961
        %v3971 = vadd.f32 %v3954, %v3961
        %v3972 = vadd.f32 %v3955, %v3961
        %v3973 = vadd.f32 %v511, %v3963
        %3974 = vst.msk [vmem:[%s379] sm:$0xff] %vm385, %v3973
        %v3977 = vrot.slane %v3964, 2
        %v3978 = vrot.slane %v3965, 2
        %v3979 = vsel %vm2252, %v3977, %v3978
        %v3981 = vadd.f32 %v516, %v3979
        %3982 = vst.msk [vmem:[%s379 + $0x8] sm:$0xff] %vm385, %v3981
        %v3984 = vrot.slane %v3965, 4
        %v3985 = vrot.slane %v3966, 4
        %v3986 = vsel %vm2259, %v3984, %v3985
        %v3988 = vadd.f32 %v521, %v3986
        %3989 = vst.msk [vmem:[%s379 + $0x10] sm:$0xff] %vm385, %v3988
        %v3991 = vrot.slane %v3966, 6
        %v3992 = vrot.slane %v3967, 6
        %v3993 = vsel %vm2266, %v3991, %v3992
        %v3995 = vadd.f32 %v526, %v3993
        %3996 = vst.msk [vmem:[%s379 + $0x18] sm:$0xff] %vm385, %v3995
        %v3997 = vadd.f32 %v531, %v3968
        %3998 = vst.msk [vmem:[%s379 + $0x20] sm:$0xff] %vm385, %v3997
        %v4001 = vrot.slane %v3969, 2
        %v4002 = vrot.slane %v3970, 2
        %v4003 = vsel %vm2252, %v4001, %v4002
        %v4005 = vadd.f32 %v536, %v4003
        %4006 = vst.msk [vmem:[%s379 + $0x28] sm:$0xff] %vm385, %v4005
        %v4008 = vrot.slane %v3970, 4
        %v4009 = vrot.slane %v3971, 4
        %v4010 = vsel %vm2259, %v4008, %v4009
        %v4012 = vadd.f32 %v541, %v4010
        %4013 = vst.msk [vmem:[%s379 + $0x30] sm:$0xff] %vm385, %v4012
        %v4015 = vrot.slane %v3971, 6
        %v4016 = vrot.slane %v3972, 6
        %v4017 = vsel %vm2266, %v4015, %v4016
        %v4019 = vadd.f32 %v546, %v4017
        %4020 = vst.msk [vmem:[%s379 + $0x38] sm:$0xff] %vm385, %v4019
        %s4021 = sand.u32 %s269, 1
        %s4022 = scalar_lea.sflag [#allocation4], %s4021
        %s4023 = sand.u32 %s269, 1
        %s4024 = smul.addr %s4023, 64
        %s4025 = scalar_lea.vmem [#allocation3], %s4024
        // Predicated region
        $region65: #{downblock2d_forward.1} parent=63 // pred_check
          %p4026 = pneg %p279
        $region66: #{downblock2d_forward.1} parent=63 // pred_check_branch
          %4028 = sbr.rel (%p4026) target = $region68
        $region67: #{downblock2d_forward.1} parent=63 // pred_region
          %s4030 = ssub.s32 1024, 1024
          %4031 = vsyncadd %s4022, %s4030
          %s4032 = smul.addr %s25, 8
          %s4033 = smul.addr %s4032, 128
          %s4034 = scalar_lea.hbm %s11, %s4033
          %s4035 = sshll.u32 %s4025, 4
          %s4036 = int_to_ptr.vmem [resolvable:$true] %s4035
          %4041 = dma.vmem_to_hbm [thread:$0]  %s4036, 1024, %s4034, %s4022, 128, 128, 8
        $region68: #{downblock2d_forward.1} parent=63 // pred_fallthru
          _
      $region64: #{downblock2d_forward.1} parent=5 // pred_fallthru
        _
      %p4042 = scmp.le.s32.totalorder 2, %s20
      // Predicated region
      $region69: #{downblock2d_forward.1} parent=5 // pred_check
        %p4043 = pneg %p4042
      $region70: #{downblock2d_forward.1} parent=5 // pred_check_branch
        %4045 = sbr.rel (%p4043) target = $region72
      $region71: #{downblock2d_forward.1} parent=5 // pred_region
        %s4046 = ssub.s32 %s20, 2
        // Predicated region
        $region73: #{downblock2d_forward.1} parent=71 // pred_check
          %p4047 = pneg %p285
        $region74: #{downblock2d_forward.1} parent=71 // pred_check_branch
          %4049 = sbr.rel (%p4047) target = $region76
        $region75: #{downblock2d_forward.1} parent=71 // pred_region
          %s4050 = sand.u32 %s270, 1
          %s4051 = scalar_lea.sflag [#allocation4], %s4050
          %s4052 = sand.u32 %s270, 1
          %s4053 = smul.addr %s4052, 64
          %s4054 = scalar_lea.vmem [#allocation3], %s4053
          %4055 = dma.done %s4051, 1024
        $region76: #{downblock2d_forward.1} parent=71 // pred_fallthru
          _
      $region72: #{downblock2d_forward.1} parent=5 // pred_fallthru
        _
    $region6: #{downblock2d_forward.1} parent=1 // loop_footer
      %s24 = sadd.s32 1, %s20
    $region7: #{downblock2d_forward.1} parent=1 // loop_footer_branch
      %19 = sbr.rel target = $region3
    $region8: #{downblock2d_forward.1} parent=1 // loop_exit
      _
    %4056 = vsyncpa [#allocation4], 1
    %s4057 = scalar_lea.sflag [#allocation4], 1
    %4058 = vsyncpa %s4057, 1

</llo_original>
